<compile_context>
chip_gen: v5e
topology: v5e:2x2
jax: 0.10.0
libtpu: 0.0.40
codegen_flags: <defaults>
</compile_context>

<pallas_src>
import jax
import jax.numpy as jnp
from jax import lax
from jax.experimental import pallas as pl
from jax.experimental.pallas import tpu as pltpu

# ----------------------------- model hyper-parameters -----------------------------
B, T = 2, 4                    # batch, timesteps
CIN, H, W = 2, 8, 8            # input channels / spatial
OC1, OC2, OC3 = 4, 4, 4        # conv out channels (layer2 uses k1, mirroring the module)
K1, K3 = 3, 3
PAD = 1                        # 'same' padding for 3x3
H2, W2 = H // 2, W // 2        # after first maxpool
HF, WF = H2 // 2, W2 // 2      # after final maxpool
F_LEN = OC3 * HF * WF

# flattened-padded-spatial geometry
WP1 = W + 2 * PAD              # padded width, layer 1 grid (10)
LP1 = (H + 2 * PAD) * WP1      # padded flat length, layer 1 (100)
LS1 = LP1 - 2 * (WP1 + 1)      # conv "span" length, layer 1 (78); span j = WP1*y + x
WP2 = W2 + 2 * PAD             # padded width, layers 2/3 grid (6)
LP2 = (H2 + 2 * PAD) * WP2     # padded flat length, layers 2/3 (36)
LS2 = LP2 - 2 * (WP2 + 1)      # conv span length, layers 2/3 (22); span j = WP2*y + x

DELTA_T = 1.0
TAU_SYN, TAU_MEM, TAU_REF = 5.0, 10.0, 4.0   # tau_low == tau_high -> scalar path
BETA = 1.0 - DELTA_T / TAU_SYN
QMULT = 1.0 / (1.0 - BETA)
ALPHA = 1.0 - DELTA_T / TAU_MEM
PMULT = 1.0 / (1.0 - ALPHA)
GAMMA = 1.0 - DELTA_T / TAU_REF
RMULT = 1.0 / (1.0 - GAMMA)
THR = 1.0
GAIN1 = GAIN2 = GAIN3 = 0.5


# --------------------------------- kernel helpers -----------------------------------
def _lif_conv(inp_pad, p, q, r, w, k, wp, lspan, cin, cout):
    """One LIF conv-layer timestep on (channel*batch, flat-spatial) slabs.

    inp_pad, p, q : (cin*B, Lp)  zero-padded flat layout (halo lanes are exactly 0)
    r             : (cout*B, lspan)
    w             : (cout*B, k*k*cin)  column (dy*k+dx)*cin+ci = W[co,ci,dy,dx] per row co*B+b
    returns new (p, q, r) and the spike slab s (cout*B, lspan).
    """
    # simultaneous update semantics: P uses old Q, Q uses old Q + input, R just decays.
    p_new = ALPHA * p + PMULT * q
    q_new = BETA * q + QMULT * inp_pad          # halo stays 0 (inp halo is 0)

    # replicate each input-channel (B-row) block across the cout output-channel rows,
    # once per layer, so every MAC below is a dense (cout*B, lspan) vreg op.
    reps = [jnp.concatenate([p_new[ci * B:(ci + 1) * B, :]] * cout, axis=0)
            for ci in range(cin)]               # each (cout*B, Lp)

    u = jnp.zeros((cout * B, lspan), jnp.float32)
    for dy in range(k):
        for dx in range(k):
            off = dy * wp + dx                  # lane shift for this tap
            for ci in range(cin):
                col = (dy * k + dx) * cin + ci
                u = u + reps[ci][:, off:off + lspan] * w[:, col:col + 1]

    r_dec = GAMMA * r
    u = u - r_dec
    s = jnp.where(u >= THR, jnp.float32(1.0), jnp.float32(0.0))
    r_new = r_dec + RMULT * s
    return p_new, q_new, r_new, s


def _pool_s1_to_pad2(s):
    """2x2 maxpool of layer-1 spikes (span layout, (8, LS1)) embedded into the
    layer-2 zero-padded flat layout (8, LP2) with exact zero halo."""
    rows = s.shape[0]
    pieces = [jnp.zeros((rows, WP2 + 1), jnp.float32)]          # top halo row + left halo
    for yo in range(H2):
        base = 2 * yo * WP1                                     # span index of row 2*yo
        v = jnp.maximum(s[:, base:base + W], s[:, base + WP1:base + WP1 + W])  # (8, W)
        cols = []
        for xo in range(W2):
            cols.append(jnp.maximum(v[:, 2 * xo:2 * xo + 1], v[:, 2 * xo + 1:2 * xo + 2]))
        pieces.append(jnp.concatenate(cols, axis=-1))           # (8, W2)
        gap = (WP2 + 1) if yo == H2 - 1 else (WP2 - W2)
        pieces.append(jnp.zeros((rows, gap), jnp.float32))
    return jnp.concatenate(pieces, axis=-1)                     # (8, LP2)


def _embed_span_to_pad(s):
    """Copy a layer-2 spike slab (span layout, (8, LS2)) into the layer-3 zero-padded
    flat layout (8, LP2), halo exactly zero."""
    rows = s.shape[0]
    pieces = [jnp.zeros((rows, WP2 + 1), jnp.float32)]
    for y in range(H2):
        pieces.append(s[:, y * WP2:y * WP2 + W2])
        gap = (WP2 + 1) if y == H2 - 1 else (WP2 - W2)
        pieces.append(jnp.zeros((rows, gap), jnp.float32))
    return jnp.concatenate(pieces, axis=-1)                     # (8, LP2)


def _pool_s3(s):
    """2x2 maxpool of layer-3 spikes (span layout, (8, LS2)) -> compact (8, HF*WF)."""
    cols = []
    for yo in range(HF):
        base = 2 * yo * WP2
        v = jnp.maximum(s[:, base:base + W2], s[:, base + WP2:base + WP2 + W2])  # (8, W2)
        for xo in range(WF):
            cols.append(jnp.maximum(v[:, 2 * xo:2 * xo + 1], v[:, 2 * xo + 1:2 * xo + 2]))
    return jnp.concatenate(cols, axis=-1)                       # (8, HF*WF)


def _backbone_kernel(x_ref, w1_ref, w2_ref, w3_ref, out_ref):
    """Full T-step spiking backbone in a single invocation (no grid)."""
    # LIF states as values; they stay in vregs across the (small) unrolled time loop.
    p1 = jnp.zeros((CIN * B, LP1), jnp.float32)
    q1 = jnp.zeros((CIN * B, LP1), jnp.float32)
    r1 = jnp.zeros((OC1 * B, LS1), jnp.float32)
    p2 = jnp.zeros((OC1 * B, LP2), jnp.float32)
    q2 = jnp.zeros((OC1 * B, LP2), jnp.float32)
    r2 = jnp.zeros((OC2 * B, LS2), jnp.float32)
    p3 = jnp.zeros((OC2 * B, LP2), jnp.float32)
    q3 = jnp.zeros((OC2 * B, LP2), jnp.float32)
    r3 = jnp.zeros((OC3 * B, LS2), jnp.float32)

    outs = []
    for t in range(T):
        w1 = w1_ref[...]
        w2 = w2_ref[...]
        w3 = w3_ref[...]
        inp1 = x_ref[t]                                           # (CIN*B, LP1)
        p1, q1, r1, s1 = _lif_conv(inp1, p1, q1, r1, w1, K1, WP1, LS1, CIN, OC1)
        inp2 = _pool_s1_to_pad2(s1)                               # (OC1*B, LP2)
        p2, q2, r2, s2 = _lif_conv(inp2, p2, q2, r2, w2, K1, WP2, LS2, OC1, OC2)
        inp3 = _embed_span_to_pad(s2)                             # (OC2*B, LP2)
        p3, q3, r3, s3 = _lif_conv(inp3, p3, q3, r3, w3, K3, WP2, LS2, OC2, OC3)
        outs.append(_pool_s3(s3))                                 # (OC3*B, HF*WF)

    out_ref[...] = jnp.concatenate(outs, axis=-1)                 # single dense store (8, T*4)


# ----------------------------------- wrapper ----------------------------------------
def _pack_conv_weight(w):
    """(O, Cin, K, K) torch-layout weight -> (O*B, K*K*Cin),
    row = co*B + b (value independent of b), col = (dy*K+dx)*Cin + ci."""
    o, cin, k, _ = w.shape
    wm = jnp.transpose(w, (2, 3, 1, 0)).reshape(k * k * cin, o)   # (K*K*Cin, O)
    wm = jnp.transpose(wm, (1, 0))                                # (O, K*K*Cin)
    return jnp.repeat(wm, B, axis=0)                              # (O*B, K*K*Cin)


def backbone_forward(x_btchw, w1, w2, w3):
    """x_btchw: (B, T, CIN, H, W) -> s_t: (B, T, F_LEN) with PyTorch C-major flatten."""
    Bb, Tt, Cc, Hh, Ww = x_btchw.shape
    assert (Bb, Tt, Cc, Hh, Ww) == (B, T, CIN, H, W)

    # input -> (T, CIN*B, LP1) zero-padded flat layout, sublane order ci*B + b
    xk = jnp.transpose(x_btchw.astype(jnp.float32), (1, 2, 0, 3, 4))      # (T, C, B, H, W)
    xk = jnp.pad(xk, ((0, 0), (0, 0), (0, 0), (PAD, PAD), (PAD, PAD)))
    xk = xk.reshape(T, CIN * B, LP1)

    w1p = _pack_conv_weight(w1.astype(jnp.float32))
    w2p = _pack_conv_weight(w2.astype(jnp.float32))
    w3p = _pack_conv_weight(w3.astype(jnp.float32))

    vmem = pl.BlockSpec(memory_space=pltpu.MemorySpace.VMEM)
    out = pl.pallas_call(
        _backbone_kernel,
        out_shape=jax.ShapeDtypeStruct((OC3 * B, T * HF * WF), jnp.float32),
        in_specs=[vmem, vmem, vmem, vmem],
        out_specs=vmem,
    )(xk, w1p, w2p, w3p)

    # (OC3*B, T*HF*WF) -> (B, T, OC3, HF*WF) -> (B, T, F): matches torch .view(-1, f_length)
    out = out.reshape(OC3, B, T, HF * WF)
    out = jnp.transpose(out, (1, 2, 0, 3))
    return out.reshape(B, T, F_LEN)


# ----------------------------- pure-JAX reference (for checking) --------------------
def reference_forward(x, w1, w2, w3):
    Bb, Tt = x.shape[0], x.shape[1]

    def conv(p, w):
        return lax.conv_general_dilated(
            p, w, window_strides=(1, 1), padding=((PAD, PAD), (PAD, PAD)),
            dimension_numbers=("NCHW", "OIHW", "NCHW"))

    def mpool(v):
        return lax.reduce_window(v, -jnp.inf, lax.max, (1, 1, 2, 2), (1, 1, 2, 2), "VALID")

    def lif(state, inp, w):
        p, q, r = state
        p = ALPHA * p + PMULT * q
        q = BETA * q + QMULT * inp
        r = GAMMA * r
        u = conv(p, w) - r
        s = (u >= THR).astype(jnp.float32)
        r = r + s * RMULT
        return (p, q, r), s

    z = lambda c, h, w_: jnp.zeros((Bb, c, h, w_), jnp.float32)
    st1 = (z(CIN, H, W), z(CIN, H, W), z(OC1, H, W))
    st2 = (z(OC1, H2, W2), z(OC1, H2, W2), z(OC2, H2, W2))
    st3 = (z(OC2, H2, W2), z(OC2, H2, W2), z(OC3, H2, W2))
    outs = []
    for t in range(Tt):
        st1, s1 = lif(st1, x[:, t].astype(jnp.float32), w1)
        s1p = mpool(s1)
        st2, s2 = lif(st2, s1p, w2)
        st3, s3 = lif(st3, s2, w3)
        s3p = mpool(s3)
        outs.append(s3p.reshape(Bb, -1))
    return jnp.stack(outs, axis=1)


# ------------------------------------- main ------------------------------------------
def _init_conv_weight(key, out_c, in_c, k, gain):
    # mirrors torch.nn.init.uniform_(weight, -gain, gain); bias=False
    return jax.random.uniform(key, (out_c, in_c, k, k), jnp.float32, minval=-gain, maxval=gain)


if __name__ == "__main__":
    key = jax.random.PRNGKey(0)
    kx, kw1, kw2, kw3 = jax.random.split(key, 4)
    x = jax.random.bernoulli(kx, p=0.3, shape=(B, T, CIN, H, W)).astype(jnp.float32)
    w1 = _init_conv_weight(kw1, OC1, CIN, K1, GAIN1)
    w2 = _init_conv_weight(kw2, OC2, OC1, K1, GAIN2)   # module passes k1 to layer 2
    w3 = _init_conv_weight(kw3, OC3, OC2, K3, GAIN3)

    s_t = jax.jit(backbone_forward)(x, w1, w2, w3)
    s_t = jax.block_until_ready(s_t)

    assert s_t.shape == (B, T, F_LEN), s_t.shape

    # sanity check against an independent pure-JAX reference (spikes are 0/1; near-threshold
    # accumulation-order flips are tolerated by the 0.98 match fraction).
    s_ref = jax.block_until_ready(reference_forward(x, w1, w2, w3))
    match_frac = float(jnp.mean((jnp.abs(s_t - s_ref) < 1e-3).astype(jnp.float32)))
    assert match_frac > 0.98, f"kernel/reference mismatch, match fraction {match_frac}"

    print("KERNEL_OK")
</pallas_src>

<mosaic_0001>
module attributes {stable_mosaic.version = 11 : i64} {
  func.func @_backbone_kernel(%arg0: memref<4x4x100xf32, #tpu.memory_space<vmem>>, %arg1: memref<8x18xf32, #tpu.memory_space<vmem>>, %arg2: memref<8x36xf32, #tpu.memory_space<vmem>>, %arg3: memref<8x36xf32, #tpu.memory_space<vmem>>, %arg4: memref<8x16xf32, #tpu.memory_space<vmem>>) attributes {dimension_semantics = [], scalar_prefetch = 0 : i64, scratch_operands = 0 : i64, tpu.core_type = #tpu.core_type<tc>} {
    %cst = arith.constant 0.000000e+00 : f32
    %0 = vector.broadcast %cst : f32 to vector<4x100xf32>
    %cst_0 = arith.constant 0.000000e+00 : f32
    %1 = vector.broadcast %cst_0 : f32 to vector<4x100xf32>
    %cst_1 = arith.constant 0.000000e+00 : f32
    %2 = vector.broadcast %cst_1 : f32 to vector<8x78xf32>
    %cst_2 = arith.constant 0.000000e+00 : f32
    %3 = vector.broadcast %cst_2 : f32 to vector<8x36xf32>
    %cst_3 = arith.constant 0.000000e+00 : f32
    %4 = vector.broadcast %cst_3 : f32 to vector<8x36xf32>
    %cst_4 = arith.constant 0.000000e+00 : f32
    %5 = vector.broadcast %cst_4 : f32 to vector<8x22xf32>
    %cst_5 = arith.constant 0.000000e+00 : f32
    %6 = vector.broadcast %cst_5 : f32 to vector<8x36xf32>
    %cst_6 = arith.constant 0.000000e+00 : f32
    %7 = vector.broadcast %cst_6 : f32 to vector<8x36xf32>
    %cst_7 = arith.constant 0.000000e+00 : f32
    %8 = vector.broadcast %cst_7 : f32 to vector<8x22xf32>
    %c0 = arith.constant 0 : index
    %c0_8 = arith.constant 0 : index
    %9 = vector.load %arg1[%c0, %c0_8] : memref<8x18xf32, #tpu.memory_space<vmem>>, vector<8x18xf32>
    %c0_9 = arith.constant 0 : index
    %c0_10 = arith.constant 0 : index
    %10 = vector.load %arg2[%c0_9, %c0_10] : memref<8x36xf32, #tpu.memory_space<vmem>>, vector<8x36xf32>
    %c0_11 = arith.constant 0 : index
    %c0_12 = arith.constant 0 : index
    %11 = vector.load %arg3[%c0_11, %c0_12] : memref<8x36xf32, #tpu.memory_space<vmem>>, vector<8x36xf32>
    %c0_13 = arith.constant 0 : index
    %c0_14 = arith.constant 0 : index
    %c0_15 = arith.constant 0 : index
    %12 = vector.load %arg0[%c0_13, %c0_14, %c0_15] : memref<4x4x100xf32, #tpu.memory_space<vmem>>, vector<1x4x100xf32>
    %13 = vector.shape_cast %12 : vector<1x4x100xf32> to vector<4x100xf32>
    %cst_16 = arith.constant 0.899999976 : f32
    %14 = vector.broadcast %cst_16 : f32 to vector<4x100xf32>
    %15 = arith.mulf %14, %0 : vector<4x100xf32>
    %cst_17 = arith.constant 1.000000e+01 : f32
    %16 = vector.broadcast %cst_17 : f32 to vector<4x100xf32>
    %17 = arith.mulf %16, %1 : vector<4x100xf32>
    %18 = arith.addf %15, %17 : vector<4x100xf32>
    %cst_18 = arith.constant 8.000000e-01 : f32
    %19 = vector.broadcast %cst_18 : f32 to vector<4x100xf32>
    %20 = arith.mulf %19, %1 : vector<4x100xf32>
    %cst_19 = arith.constant 5.000000e+00 : f32
    %21 = vector.broadcast %cst_19 : f32 to vector<4x100xf32>
    %22 = arith.mulf %21, %13 : vector<4x100xf32>
    %23 = arith.addf %20, %22 : vector<4x100xf32>
    %24 = vector.extract_strided_slice %18 {offsets = [0, 0], sizes = [2, 100], strides = [1, 1]} : vector<4x100xf32> to vector<2x100xf32>
    %25 = tpu.concatenate %24, %24, %24, %24 in 0 : vector<2x100xf32>, vector<2x100xf32>, vector<2x100xf32>, vector<2x100xf32> -> vector<8x100xf32>
    %26 = vector.extract_strided_slice %18 {offsets = [2, 0], sizes = [2, 100], strides = [1, 1]} : vector<4x100xf32> to vector<2x100xf32>
    %27 = tpu.concatenate %26, %26, %26, %26 in 0 : vector<2x100xf32>, vector<2x100xf32>, vector<2x100xf32>, vector<2x100xf32> -> vector<8x100xf32>
    %cst_20 = arith.constant 0.000000e+00 : f32
    %28 = vector.broadcast %cst_20 : f32 to vector<8x78xf32>
    %29 = vector.extract_strided_slice %25 {offsets = [0, 0], sizes = [8, 78], strides = [1, 1]} : vector<8x100xf32> to vector<8x78xf32>
    %30 = vector.extract_strided_slice %9 {offsets = [0, 0], sizes = [8, 1], strides = [1, 1]} : vector<8x18xf32> to vector<8x1xf32>
    %31 = vector.broadcast %30 : vector<8x1xf32> to vector<8x78xf32>
    %32 = arith.mulf %29, %31 : vector<8x78xf32>
    %33 = arith.addf %28, %32 : vector<8x78xf32>
    %34 = vector.extract_strided_slice %27 {offsets = [0, 0], sizes = [8, 78], strides = [1, 1]} : vector<8x100xf32> to vector<8x78xf32>
    %35 = vector.extract_strided_slice %9 {offsets = [0, 1], sizes = [8, 1], strides = [1, 1]} : vector<8x18xf32> to vector<8x1xf32>
    %36 = vector.broadcast %35 : vector<8x1xf32> to vector<8x78xf32>
    %37 = arith.mulf %34, %36 : vector<8x78xf32>
    %38 = arith.addf %33, %37 : vector<8x78xf32>
    %39 = vector.extract_strided_slice %25 {offsets = [0, 1], sizes = [8, 78], strides = [1, 1]} : vector<8x100xf32> to vector<8x78xf32>
    %40 = vector.extract_strided_slice %9 {offsets = [0, 2], sizes = [8, 1], strides = [1, 1]} : vector<8x18xf32> to vector<8x1xf32>
    %41 = vector.broadcast %40 : vector<8x1xf32> to vector<8x78xf32>
    %42 = arith.mulf %39, %41 : vector<8x78xf32>
    %43 = arith.addf %38, %42 : vector<8x78xf32>
    %44 = vector.extract_strided_slice %27 {offsets = [0, 1], sizes = [8, 78], strides = [1, 1]} : vector<8x100xf32> to vector<8x78xf32>
    %45 = vector.extract_strided_slice %9 {offsets = [0, 3], sizes = [8, 1], strides = [1, 1]} : vector<8x18xf32> to vector<8x1xf32>
    %46 = vector.broadcast %45 : vector<8x1xf32> to vector<8x78xf32>
    %47 = arith.mulf %44, %46 : vector<8x78xf32>
    %48 = arith.addf %43, %47 : vector<8x78xf32>
    %49 = vector.extract_strided_slice %25 {offsets = [0, 2], sizes = [8, 78], strides = [1, 1]} : vector<8x100xf32> to vector<8x78xf32>
    %50 = vector.extract_strided_slice %9 {offsets = [0, 4], sizes = [8, 1], strides = [1, 1]} : vector<8x18xf32> to vector<8x1xf32>
    %51 = vector.broadcast %50 : vector<8x1xf32> to vector<8x78xf32>
    %52 = arith.mulf %49, %51 : vector<8x78xf32>
    %53 = arith.addf %48, %52 : vector<8x78xf32>
    %54 = vector.extract_strided_slice %27 {offsets = [0, 2], sizes = [8, 78], strides = [1, 1]} : vector<8x100xf32> to vector<8x78xf32>
    %55 = vector.extract_strided_slice %9 {offsets = [0, 5], sizes = [8, 1], strides = [1, 1]} : vector<8x18xf32> to vector<8x1xf32>
    %56 = vector.broadcast %55 : vector<8x1xf32> to vector<8x78xf32>
    %57 = arith.mulf %54, %56 : vector<8x78xf32>
    %58 = arith.addf %53, %57 : vector<8x78xf32>
    %59 = vector.extract_strided_slice %25 {offsets = [0, 10], sizes = [8, 78], strides = [1, 1]} : vector<8x100xf32> to vector<8x78xf32>
    %60 = vector.extract_strided_slice %9 {offsets = [0, 6], sizes = [8, 1], strides = [1, 1]} : vector<8x18xf32> to vector<8x1xf32>
    %61 = vector.broadcast %60 : vector<8x1xf32> to vector<8x78xf32>
    %62 = arith.mulf %59, %61 : vector<8x78xf32>
    %63 = arith.addf %58, %62 : vector<8x78xf32>
    %64 = vector.extract_strided_slice %27 {offsets = [0, 10], sizes = [8, 78], strides = [1, 1]} : vector<8x100xf32> to vector<8x78xf32>
    %65 = vector.extract_strided_slice %9 {offsets = [0, 7], sizes = [8, 1], strides = [1, 1]} : vector<8x18xf32> to vector<8x1xf32>
    %66 = vector.broadcast %65 : vector<8x1xf32> to vector<8x78xf32>
    %67 = arith.mulf %64, %66 : vector<8x78xf32>
    %68 = arith.addf %63, %67 : vector<8x78xf32>
    %69 = vector.extract_strided_slice %25 {offsets = [0, 11], sizes = [8, 78], strides = [1, 1]} : vector<8x100xf32> to vector<8x78xf32>
    %70 = vector.extract_strided_slice %9 {offsets = [0, 8], sizes = [8, 1], strides = [1, 1]} : vector<8x18xf32> to vector<8x1xf32>
    %71 = vector.broadcast %70 : vector<8x1xf32> to vector<8x78xf32>
    %72 = arith.mulf %69, %71 : vector<8x78xf32>
    %73 = arith.addf %68, %72 : vector<8x78xf32>
    %74 = vector.extract_strided_slice %27 {offsets = [0, 11], sizes = [8, 78], strides = [1, 1]} : vector<8x100xf32> to vector<8x78xf32>
    %75 = vector.extract_strided_slice %9 {offsets = [0, 9], sizes = [8, 1], strides = [1, 1]} : vector<8x18xf32> to vector<8x1xf32>
    %76 = vector.broadcast %75 : vector<8x1xf32> to vector<8x78xf32>
    %77 = arith.mulf %74, %76 : vector<8x78xf32>
    %78 = arith.addf %73, %77 : vector<8x78xf32>
    %79 = vector.extract_strided_slice %25 {offsets = [0, 12], sizes = [8, 78], strides = [1, 1]} : vector<8x100xf32> to vector<8x78xf32>
    %80 = vector.extract_strided_slice %9 {offsets = [0, 10], sizes = [8, 1], strides = [1, 1]} : vector<8x18xf32> to vector<8x1xf32>
    %81 = vector.broadcast %80 : vector<8x1xf32> to vector<8x78xf32>
    %82 = arith.mulf %79, %81 : vector<8x78xf32>
    %83 = arith.addf %78, %82 : vector<8x78xf32>
    %84 = vector.extract_strided_slice %27 {offsets = [0, 12], sizes = [8, 78], strides = [1, 1]} : vector<8x100xf32> to vector<8x78xf32>
    %85 = vector.extract_strided_slice %9 {offsets = [0, 11], sizes = [8, 1], strides = [1, 1]} : vector<8x18xf32> to vector<8x1xf32>
    %86 = vector.broadcast %85 : vector<8x1xf32> to vector<8x78xf32>
    %87 = arith.mulf %84, %86 : vector<8x78xf32>
    %88 = arith.addf %83, %87 : vector<8x78xf32>
    %89 = vector.extract_strided_slice %25 {offsets = [0, 20], sizes = [8, 78], strides = [1, 1]} : vector<8x100xf32> to vector<8x78xf32>
    %90 = vector.extract_strided_slice %9 {offsets = [0, 12], sizes = [8, 1], strides = [1, 1]} : vector<8x18xf32> to vector<8x1xf32>
    %91 = vector.broadcast %90 : vector<8x1xf32> to vector<8x78xf32>
    %92 = arith.mulf %89, %91 : vector<8x78xf32>
    %93 = arith.addf %88, %92 : vector<8x78xf32>
    %94 = vector.extract_strided_slice %27 {offsets = [0, 20], sizes = [8, 78], strides = [1, 1]} : vector<8x100xf32> to vector<8x78xf32>
    %95 = vector.extract_strided_slice %9 {offsets = [0, 13], sizes = [8, 1], strides = [1, 1]} : vector<8x18xf32> to vector<8x1xf32>
    %96 = vector.broadcast %95 : vector<8x1xf32> to vector<8x78xf32>
    %97 = arith.mulf %94, %96 : vector<8x78xf32>
    %98 = arith.addf %93, %97 : vector<8x78xf32>
    %99 = vector.extract_strided_slice %25 {offsets = [0, 21], sizes = [8, 78], strides = [1, 1]} : vector<8x100xf32> to vector<8x78xf32>
    %100 = vector.extract_strided_slice %9 {offsets = [0, 14], sizes = [8, 1], strides = [1, 1]} : vector<8x18xf32> to vector<8x1xf32>
    %101 = vector.broadcast %100 : vector<8x1xf32> to vector<8x78xf32>
    %102 = arith.mulf %99, %101 : vector<8x78xf32>
    %103 = arith.addf %98, %102 : vector<8x78xf32>
    %104 = vector.extract_strided_slice %27 {offsets = [0, 21], sizes = [8, 78], strides = [1, 1]} : vector<8x100xf32> to vector<8x78xf32>
    %105 = vector.extract_strided_slice %9 {offsets = [0, 15], sizes = [8, 1], strides = [1, 1]} : vector<8x18xf32> to vector<8x1xf32>
    %106 = vector.broadcast %105 : vector<8x1xf32> to vector<8x78xf32>
    %107 = arith.mulf %104, %106 : vector<8x78xf32>
    %108 = arith.addf %103, %107 : vector<8x78xf32>
    %109 = vector.extract_strided_slice %25 {offsets = [0, 22], sizes = [8, 78], strides = [1, 1]} : vector<8x100xf32> to vector<8x78xf32>
    %110 = vector.extract_strided_slice %9 {offsets = [0, 16], sizes = [8, 1], strides = [1, 1]} : vector<8x18xf32> to vector<8x1xf32>
    %111 = vector.broadcast %110 : vector<8x1xf32> to vector<8x78xf32>
    %112 = arith.mulf %109, %111 : vector<8x78xf32>
    %113 = arith.addf %108, %112 : vector<8x78xf32>
    %114 = vector.extract_strided_slice %27 {offsets = [0, 22], sizes = [8, 78], strides = [1, 1]} : vector<8x100xf32> to vector<8x78xf32>
    %115 = vector.extract_strided_slice %9 {offsets = [0, 17], sizes = [8, 1], strides = [1, 1]} : vector<8x18xf32> to vector<8x1xf32>
    %116 = vector.broadcast %115 : vector<8x1xf32> to vector<8x78xf32>
    %117 = arith.mulf %114, %116 : vector<8x78xf32>
    %118 = arith.addf %113, %117 : vector<8x78xf32>
    %cst_21 = arith.constant 7.500000e-01 : f32
    %119 = vector.broadcast %cst_21 : f32 to vector<8x78xf32>
    %120 = arith.mulf %119, %2 : vector<8x78xf32>
    %121 = arith.subf %118, %120 : vector<8x78xf32>
    %cst_22 = arith.constant 1.000000e+00 : f32
    %122 = vector.broadcast %cst_22 : f32 to vector<8x78xf32>
    %123 = arith.cmpf oge, %121, %122 : vector<8x78xf32>
    %cst_23 = arith.constant 1.000000e+00 : f32
    %cst_24 = arith.constant 0.000000e+00 : f32
    %124 = vector.broadcast %cst_23 : f32 to vector<8x78xf32>
    %125 = vector.broadcast %cst_24 : f32 to vector<8x78xf32>
    %126 = arith.select %123, %124, %125 : vector<8x78xi1>, vector<8x78xf32>
    %cst_25 = arith.constant 4.000000e+00 : f32
    %127 = vector.broadcast %cst_25 : f32 to vector<8x78xf32>
    %128 = arith.mulf %127, %126 : vector<8x78xf32>
    %129 = arith.addf %120, %128 : vector<8x78xf32>
    %cst_26 = arith.constant 0.000000e+00 : f32
    %130 = vector.broadcast %cst_26 : f32 to vector<8x7xf32>
    %131 = vector.extract_strided_slice %126 {offsets = [0, 0], sizes = [8, 8], strides = [1, 1]} : vector<8x78xf32> to vector<8x8xf32>
    %132 = vector.extract_strided_slice %126 {offsets = [0, 10], sizes = [8, 8], strides = [1, 1]} : vector<8x78xf32> to vector<8x8xf32>
    %133 = arith.maximumf %131, %132 : vector<8x8xf32>
    %134 = vector.extract_strided_slice %133 {offsets = [0, 0], sizes = [8, 1], strides = [1, 1]} : vector<8x8xf32> to vector<8x1xf32>
    %135 = vector.extract_strided_slice %133 {offsets = [0, 1], sizes = [8, 1], strides = [1, 1]} : vector<8x8xf32> to vector<8x1xf32>
    %136 = arith.maximumf %134, %135 : vector<8x1xf32>
    %137 = vector.extract_strided_slice %133 {offsets = [0, 2], sizes = [8, 1], strides = [1, 1]} : vector<8x8xf32> to vector<8x1xf32>
    %138 = vector.extract_strided_slice %133 {offsets = [0, 3], sizes = [8, 1], strides = [1, 1]} : vector<8x8xf32> to vector<8x1xf32>
    %139 = arith.maximumf %137, %138 : vector<8x1xf32>
    %140 = vector.extract_strided_slice %133 {offsets = [0, 4], sizes = [8, 1], strides = [1, 1]} : vector<8x8xf32> to vector<8x1xf32>
    %141 = vector.extract_strided_slice %133 {offsets = [0, 5], sizes = [8, 1], strides = [1, 1]} : vector<8x8xf32> to vector<8x1xf32>
    %142 = arith.maximumf %140, %141 : vector<8x1xf32>
    %143 = vector.extract_strided_slice %133 {offsets = [0, 6], sizes = [8, 1], strides = [1, 1]} : vector<8x8xf32> to vector<8x1xf32>
    %144 = vector.extract_strided_slice %133 {offsets = [0, 7], sizes = [8, 1], strides = [1, 1]} : vector<8x8xf32> to vector<8x1xf32>
    %145 = arith.maximumf %143, %144 : vector<8x1xf32>
    %146 = tpu.concatenate %136, %139, %142, %145 in 1 : vector<8x1xf32>, vector<8x1xf32>, vector<8x1xf32>, vector<8x1xf32> -> vector<8x4xf32>
    %cst_27 = arith.constant 0.000000e+00 : f32
    %147 = vector.broadcast %cst_27 : f32 to vector<8x2xf32>
    %148 = vector.extract_strided_slice %126 {offsets = [0, 20], sizes = [8, 8], strides = [1, 1]} : vector<8x78xf32> to vector<8x8xf32>
    %149 = vector.extract_strided_slice %126 {offsets = [0, 30], sizes = [8, 8], strides = [1, 1]} : vector<8x78xf32> to vector<8x8xf32>
    %150 = arith.maximumf %148, %149 : vector<8x8xf32>
    %151 = vector.extract_strided_slice %150 {offsets = [0, 0], sizes = [8, 1], strides = [1, 1]} : vector<8x8xf32> to vector<8x1xf32>
    %152 = vector.extract_strided_slice %150 {offsets = [0, 1], sizes = [8, 1], strides = [1, 1]} : vector<8x8xf32> to vector<8x1xf32>
    %153 = arith.maximumf %151, %152 : vector<8x1xf32>
    %154 = vector.extract_strided_slice %150 {offsets = [0, 2], sizes = [8, 1], strides = [1, 1]} : vector<8x8xf32> to vector<8x1xf32>
    %155 = vector.extract_strided_slice %150 {offsets = [0, 3], sizes = [8, 1], strides = [1, 1]} : vector<8x8xf32> to vector<8x1xf32>
    %156 = arith.maximumf %154, %155 : vector<8x1xf32>
    %157 = vector.extract_strided_slice %150 {offsets = [0, 4], sizes = [8, 1], strides = [1, 1]} : vector<8x8xf32> to vector<8x1xf32>
    %158 = vector.extract_strided_slice %150 {offsets = [0, 5], sizes = [8, 1], strides = [1, 1]} : vector<8x8xf32> to vector<8x1xf32>
    %159 = arith.maximumf %157, %158 : vector<8x1xf32>
    %160 = vector.extract_strided_slice %150 {offsets = [0, 6], sizes = [8, 1], strides = [1, 1]} : vector<8x8xf32> to vector<8x1xf32>
    %161 = vector.extract_strided_slice %150 {offsets = [0, 7], sizes = [8, 1], strides = [1, 1]} : vector<8x8xf32> to vector<8x1xf32>
    %162 = arith.maximumf %160, %161 : vector<8x1xf32>
    %163 = tpu.concatenate %153, %156, %159, %162 in 1 : vector<8x1xf32>, vector<8x1xf32>, vector<8x1xf32>, vector<8x1xf32> -> vector<8x4xf32>
    %cst_28 = arith.constant 0.000000e+00 : f32
    %164 = vector.broadcast %cst_28 : f32 to vector<8x2xf32>
    %165 = vector.extract_strided_slice %126 {offsets = [0, 40], sizes = [8, 8], strides = [1, 1]} : vector<8x78xf32> to vector<8x8xf32>
    %166 = vector.extract_strided_slice %126 {offsets = [0, 50], sizes = [8, 8], strides = [1, 1]} : vector<8x78xf32> to vector<8x8xf32>
    %167 = arith.maximumf %165, %166 : vector<8x8xf32>
    %168 = vector.extract_strided_slice %167 {offsets = [0, 0], sizes = [8, 1], strides = [1, 1]} : vector<8x8xf32> to vector<8x1xf32>
    %169 = vector.extract_strided_slice %167 {offsets = [0, 1], sizes = [8, 1], strides = [1, 1]} : vector<8x8xf32> to vector<8x1xf32>
    %170 = arith.maximumf %168, %169 : vector<8x1xf32>
    %171 = vector.extract_strided_slice %167 {offsets = [0, 2], sizes = [8, 1], strides = [1, 1]} : vector<8x8xf32> to vector<8x1xf32>
    %172 = vector.extract_strided_slice %167 {offsets = [0, 3], sizes = [8, 1], strides = [1, 1]} : vector<8x8xf32> to vector<8x1xf32>
    %173 = arith.maximumf %171, %172 : vector<8x1xf32>
    %174 = vector.extract_strided_slice %167 {offsets = [0, 4], sizes = [8, 1], strides = [1, 1]} : vector<8x8xf32> to vector<8x1xf32>
    %175 = vector.extract_strided_slice %167 {offsets = [0, 5], sizes = [8, 1], strides = [1, 1]} : vector<8x8xf32> to vector<8x1xf32>
    %176 = arith.maximumf %174, %175 : vector<8x1xf32>
    %177 = vector.extract_strided_slice %167 {offsets = [0, 6], sizes = [8, 1], strides = [1, 1]} : vector<8x8xf32> to vector<8x1xf32>
    %178 = vector.extract_strided_slice %167 {offsets = [0, 7], sizes = [8, 1], strides = [1, 1]} : vector<8x8xf32> to vector<8x1xf32>
    %179 = arith.maximumf %177, %178 : vector<8x1xf32>
    %180 = tpu.concatenate %170, %173, %176, %179 in 1 : vector<8x1xf32>, vector<8x1xf32>, vector<8x1xf32>, vector<8x1xf32> -> vector<8x4xf32>
    %cst_29 = arith.constant 0.000000e+00 : f32
    %181 = vector.broadcast %cst_29 : f32 to vector<8x2xf32>
    %182 = vector.extract_strided_slice %126 {offsets = [0, 60], sizes = [8, 8], strides = [1, 1]} : vector<8x78xf32> to vector<8x8xf32>
    %183 = vector.extract_strided_slice %126 {offsets = [0, 70], sizes = [8, 8], strides = [1, 1]} : vector<8x78xf32> to vector<8x8xf32>
    %184 = arith.maximumf %182, %183 : vector<8x8xf32>
    %185 = vector.extract_strided_slice %184 {offsets = [0, 0], sizes = [8, 1], strides = [1, 1]} : vector<8x8xf32> to vector<8x1xf32>
    %186 = vector.extract_strided_slice %184 {offsets = [0, 1], sizes = [8, 1], strides = [1, 1]} : vector<8x8xf32> to vector<8x1xf32>
    %187 = arith.maximumf %185, %186 : vector<8x1xf32>
    %188 = vector.extract_strided_slice %184 {offsets = [0, 2], sizes = [8, 1], strides = [1, 1]} : vector<8x8xf32> to vector<8x1xf32>
    %189 = vector.extract_strided_slice %184 {offsets = [0, 3], sizes = [8, 1], strides = [1, 1]} : vector<8x8xf32> to vector<8x1xf32>
    %190 = arith.maximumf %188, %189 : vector<8x1xf32>
    %191 = vector.extract_strided_slice %184 {offsets = [0, 4], sizes = [8, 1], strides = [1, 1]} : vector<8x8xf32> to vector<8x1xf32>
    %192 = vector.extract_strided_slice %184 {offsets = [0, 5], sizes = [8, 1], strides = [1, 1]} : vector<8x8xf32> to vector<8x1xf32>
    %193 = arith.maximumf %191, %192 : vector<8x1xf32>
    %194 = vector.extract_strided_slice %184 {offsets = [0, 6], sizes = [8, 1], strides = [1, 1]} : vector<8x8xf32> to vector<8x1xf32>
    %195 = vector.extract_strided_slice %184 {offsets = [0, 7], sizes = [8, 1], strides = [1, 1]} : vector<8x8xf32> to vector<8x1xf32>
    %196 = arith.maximumf %194, %195 : vector<8x1xf32>
    %197 = tpu.concatenate %187, %190, %193, %196 in 1 : vector<8x1xf32>, vector<8x1xf32>, vector<8x1xf32>, vector<8x1xf32> -> vector<8x4xf32>
    %cst_30 = arith.constant 0.000000e+00 : f32
    %198 = vector.broadcast %cst_30 : f32 to vector<8x7xf32>
    %199 = tpu.concatenate %130, %146, %147, %163, %164, %180, %181, %197, %198 in 1 : vector<8x7xf32>, vector<8x4xf32>, vector<8x2xf32>, vector<8x4xf32>, vector<8x2xf32>, vector<8x4xf32>, vector<8x2xf32>, vector<8x4xf32>, vector<8x7xf32> -> vector<8x36xf32>
    %cst_31 = arith.constant 0.899999976 : f32
    %200 = vector.broadcast %cst_31 : f32 to vector<8x36xf32>
    %201 = arith.mulf %200, %3 : vector<8x36xf32>
    %cst_32 = arith.constant 1.000000e+01 : f32
    %202 = vector.broadcast %cst_32 : f32 to vector<8x36xf32>
    %203 = arith.mulf %202, %4 : vector<8x36xf32>
    %204 = arith.addf %201, %203 : vector<8x36xf32>
    %cst_33 = arith.constant 8.000000e-01 : f32
    %205 = vector.broadcast %cst_33 : f32 to vector<8x36xf32>
    %206 = arith.mulf %205, %4 : vector<8x36xf32>
    %cst_34 = arith.constant 5.000000e+00 : f32
    %207 = vector.broadcast %cst_34 : f32 to vector<8x36xf32>
    %208 = arith.mulf %207, %199 : vector<8x36xf32>
    %209 = arith.addf %206, %208 : vector<8x36xf32>
    %210 = vector.extract_strided_slice %204 {offsets = [0, 0], sizes = [2, 36], strides = [1, 1]} : vector<8x36xf32> to vector<2x36xf32>
    %211 = tpu.concatenate %210, %210, %210, %210 in 0 : vector<2x36xf32>, vector<2x36xf32>, vector<2x36xf32>, vector<2x36xf32> -> vector<8x36xf32>
    %212 = vector.extract_strided_slice %204 {offsets = [2, 0], sizes = [2, 36], strides = [1, 1]} : vector<8x36xf32> to vector<2x36xf32>
    %213 = tpu.concatenate %212, %212, %212, %212 in 0 : vector<2x36xf32>, vector<2x36xf32>, vector<2x36xf32>, vector<2x36xf32> -> vector<8x36xf32>
    %214 = vector.extract_strided_slice %204 {offsets = [4, 0], sizes = [2, 36], strides = [1, 1]} : vector<8x36xf32> to vector<2x36xf32>
    %215 = tpu.concatenate %214, %214, %214, %214 in 0 : vector<2x36xf32>, vector<2x36xf32>, vector<2x36xf32>, vector<2x36xf32> -> vector<8x36xf32>
    %216 = vector.extract_strided_slice %204 {offsets = [6, 0], sizes = [2, 36], strides = [1, 1]} : vector<8x36xf32> to vector<2x36xf32>
    %217 = tpu.concatenate %216, %216, %216, %216 in 0 : vector<2x36xf32>, vector<2x36xf32>, vector<2x36xf32>, vector<2x36xf32> -> vector<8x36xf32>
    %cst_35 = arith.constant 0.000000e+00 : f32
    %218 = vector.broadcast %cst_35 : f32 to vector<8x22xf32>
    %219 = vector.extract_strided_slice %211 {offsets = [0, 0], sizes = [8, 22], strides = [1, 1]} : vector<8x36xf32> to vector<8x22xf32>
    %220 = vector.extract_strided_slice %10 {offsets = [0, 0], sizes = [8, 1], strides = [1, 1]} : vector<8x36xf32> to vector<8x1xf32>
    %221 = vector.broadcast %220 : vector<8x1xf32> to vector<8x22xf32>
    %222 = arith.mulf %219, %221 : vector<8x22xf32>
    %223 = arith.addf %218, %222 : vector<8x22xf32>
    %224 = vector.extract_strided_slice %213 {offsets = [0, 0], sizes = [8, 22], strides = [1, 1]} : vector<8x36xf32> to vector<8x22xf32>
    %225 = vector.extract_strided_slice %10 {offsets = [0, 1], sizes = [8, 1], strides = [1, 1]} : vector<8x36xf32> to vector<8x1xf32>
    %226 = vector.broadcast %225 : vector<8x1xf32> to vector<8x22xf32>
    %227 = arith.mulf %224, %226 : vector<8x22xf32>
    %228 = arith.addf %223, %227 : vector<8x22xf32>
    %229 = vector.extract_strided_slice %215 {offsets = [0, 0], sizes = [8, 22], strides = [1, 1]} : vector<8x36xf32> to vector<8x22xf32>
    %230 = vector.extract_strided_slice %10 {offsets = [0, 2], sizes = [8, 1], strides = [1, 1]} : vector<8x36xf32> to vector<8x1xf32>
    %231 = vector.broadcast %230 : vector<8x1xf32> to vector<8x22xf32>
    %232 = arith.mulf %229, %231 : vector<8x22xf32>
    %233 = arith.addf %228, %232 : vector<8x22xf32>
    %234 = vector.extract_strided_slice %217 {offsets = [0, 0], sizes = [8, 22], strides = [1, 1]} : vector<8x36xf32> to vector<8x22xf32>
    %235 = vector.extract_strided_slice %10 {offsets = [0, 3], sizes = [8, 1], strides = [1, 1]} : vector<8x36xf32> to vector<8x1xf32>
    %236 = vector.broadcast %235 : vector<8x1xf32> to vector<8x22xf32>
    %237 = arith.mulf %234, %236 : vector<8x22xf32>
    %238 = arith.addf %233, %237 : vector<8x22xf32>
    %239 = vector.extract_strided_slice %211 {offsets = [0, 1], sizes = [8, 22], strides = [1, 1]} : vector<8x36xf32> to vector<8x22xf32>
    %240 = vector.extract_strided_slice %10 {offsets = [0, 4], sizes = [8, 1], strides = [1, 1]} : vector<8x36xf32> to vector<8x1xf32>
    %241 = vector.broadcast %240 : vector<8x1xf32> to vector<8x22xf32>
    %242 = arith.mulf %239, %241 : vector<8x22xf32>
    %243 = arith.addf %238, %242 : vector<8x22xf32>
    %244 = vector.extract_strided_slice %213 {offsets = [0, 1], sizes = [8, 22], strides = [1, 1]} : vector<8x36xf32> to vector<8x22xf32>
    %245 = vector.extract_strided_slice %10 {offsets = [0, 5], sizes = [8, 1], strides = [1, 1]} : vector<8x36xf32> to vector<8x1xf32>
    %246 = vector.broadcast %245 : vector<8x1xf32> to vector<8x22xf32>
    %247 = arith.mulf %244, %246 : vector<8x22xf32>
    %248 = arith.addf %243, %247 : vector<8x22xf32>
    %249 = vector.extract_strided_slice %215 {offsets = [0, 1], sizes = [8, 22], strides = [1, 1]} : vector<8x36xf32> to vector<8x22xf32>
    %250 = vector.extract_strided_slice %10 {offsets = [0, 6], sizes = [8, 1], strides = [1, 1]} : vector<8x36xf32> to vector<8x1xf32>
    %251 = vector.broadcast %250 : vector<8x1xf32> to vector<8x22xf32>
    %252 = arith.mulf %249, %251 : vector<8x22xf32>
    %253 = arith.addf %248, %252 : vector<8x22xf32>
    %254 = vector.extract_strided_slice %217 {offsets = [0, 1], sizes = [8, 22], strides = [1, 1]} : vector<8x36xf32> to vector<8x22xf32>
    %255 = vector.extract_strided_slice %10 {offsets = [0, 7], sizes = [8, 1], strides = [1, 1]} : vector<8x36xf32> to vector<8x1xf32>
    %256 = vector.broadcast %255 : vector<8x1xf32> to vector<8x22xf32>
    %257 = arith.mulf %254, %256 : vector<8x22xf32>
    %258 = arith.addf %253, %257 : vector<8x22xf32>
    %259 = vector.extract_strided_slice %211 {offsets = [0, 2], sizes = [8, 22], strides = [1, 1]} : vector<8x36xf32> to vector<8x22xf32>
    %260 = vector.extract_strided_slice %10 {offsets = [0, 8], sizes = [8, 1], strides = [1, 1]} : vector<8x36xf32> to vector<8x1xf32>
    %261 = vector.broadcast %260 : vector<8x1xf32> to vector<8x22xf32>
    %262 = arith.mulf %259, %261 : vector<8x22xf32>
    %263 = arith.addf %258, %262 : vector<8x22xf32>
    %264 = vector.extract_strided_slice %213 {offsets = [0, 2], sizes = [8, 22], strides = [1, 1]} : vector<8x36xf32> to vector<8x22xf32>
    %265 = vector.extract_strided_slice %10 {offsets = [0, 9], sizes = [8, 1], strides = [1, 1]} : vector<8x36xf32> to vector<8x1xf32>
    %266 = vector.broadcast %265 : vector<8x1xf32> to vector<8x22xf32>
    %267 = arith.mulf %264, %266 : vector<8x22xf32>
    %268 = arith.addf %263, %267 : vector<8x22xf32>
    %269 = vector.extract_strided_slice %215 {offsets = [0, 2], sizes = [8, 22], strides = [1, 1]} : vector<8x36xf32> to vector<8x22xf32>
    %270 = vector.extract_strided_slice %10 {offsets = [0, 10], sizes = [8, 1], strides = [1, 1]} : vector<8x36xf32> to vector<8x1xf32>
    %271 = vector.broadcast %270 : vector<8x1xf32> to vector<8x22xf32>
    %272 = arith.mulf %269, %271 : vector<8x22xf32>
    %273 = arith.addf %268, %272 : vector<8x22xf32>
    %274 = vector.extract_strided_slice %217 {offsets = [0, 2], sizes = [8, 22], strides = [1, 1]} : vector<8x36xf32> to vector<8x22xf32>
    %275 = vector.extract_strided_slice %10 {offsets = [0, 11], sizes = [8, 1], strides = [1, 1]} : vector<8x36xf32> to vector<8x1xf32>
    %276 = vector.broadcast %275 : vector<8x1xf32> to vector<8x22xf32>
    %277 = arith.mulf %274, %276 : vector<8x22xf32>
    %278 = arith.addf %273, %277 : vector<8x22xf32>
    %279 = vector.extract_strided_slice %211 {offsets = [0, 6], sizes = [8, 22], strides = [1, 1]} : vector<8x36xf32> to vector<8x22xf32>
    %280 = vector.extract_strided_slice %10 {offsets = [0, 12], sizes = [8, 1], strides = [1, 1]} : vector<8x36xf32> to vector<8x1xf32>
    %281 = vector.broadcast %280 : vector<8x1xf32> to vector<8x22xf32>
    %282 = arith.mulf %279, %281 : vector<8x22xf32>
    %283 = arith.addf %278, %282 : vector<8x22xf32>
    %284 = vector.extract_strided_slice %213 {offsets = [0, 6], sizes = [8, 22], strides = [1, 1]} : vector<8x36xf32> to vector<8x22xf32>
    %285 = vector.extract_strided_slice %10 {offsets = [0, 13], sizes = [8, 1], strides = [1, 1]} : vector<8x36xf32> to vector<8x1xf32>
    %286 = vector.broadcast %285 : vector<8x1xf32> to vector<8x22xf32>
    %287 = arith.mulf %284, %286 : vector<8x22xf32>
    %288 = arith.addf %283, %287 : vector<8x22xf32>
    %289 = vector.extract_strided_slice %215 {offsets = [0, 6], sizes = [8, 22], strides = [1, 1]} : vector<8x36xf32> to vector<8x22xf32>
    %290 = vector.extract_strided_slice %10 {offsets = [0, 14], sizes = [8, 1], strides = [1, 1]} : vector<8x36xf32> to vector<8x1xf32>
    %291 = vector.broadcast %290 : vector<8x1xf32> to vector<8x22xf32>
    %292 = arith.mulf %289, %291 : vector<8x22xf32>
    %293 = arith.addf %288, %292 : vector<8x22xf32>
    %294 = vector.extract_strided_slice %217 {offsets = [0, 6], sizes = [8, 22], strides = [1, 1]} : vector<8x36xf32> to vector<8x22xf32>
    %295 = vector.extract_strided_slice %10 {offsets = [0, 15], sizes = [8, 1], strides = [1, 1]} : vector<8x36xf32> to vector<8x1xf32>
    %296 = vector.broadcast %295 : vector<8x1xf32> to vector<8x22xf32>
    %297 = arith.mulf %294, %296 : vector<8x22xf32>
    %298 = arith.addf %293, %297 : vector<8x22xf32>
    %299 = vector.extract_strided_slice %211 {offsets = [0, 7], sizes = [8, 22], strides = [1, 1]} : vector<8x36xf32> to vector<8x22xf32>
    %300 = vector.extract_strided_slice %10 {offsets = [0, 16], sizes = [8, 1], strides = [1, 1]} : vector<8x36xf32> to vector<8x1xf32>
    %301 = vector.broadcast %300 : vector<8x1xf32> to vector<8x22xf32>
    %302 = arith.mulf %299, %301 : vector<8x22xf32>
    %303 = arith.addf %298, %302 : vector<8x22xf32>
    %304 = vector.extract_strided_slice %213 {offsets = [0, 7], sizes = [8, 22], strides = [1, 1]} : vector<8x36xf32> to vector<8x22xf32>
    %305 = vector.extract_strided_slice %10 {offsets = [0, 17], sizes = [8, 1], strides = [1, 1]} : vector<8x36xf32> to vector<8x1xf32>
    %306 = vector.broadcast %305 : vector<8x1xf32> to vector<8x22xf32>
    %307 = arith.mulf %304, %306 : vector<8x22xf32>
    %308 = arith.addf %303, %307 : vector<8x22xf32>
    %309 = vector.extract_strided_slice %215 {offsets = [0, 7], sizes = [8, 22], strides = [1, 1]} : vector<8x36xf32> to vector<8x22xf32>
    %310 = vector.extract_strided_slice %10 {offsets = [0, 18], sizes = [8, 1], strides = [1, 1]} : vector<8x36xf32> to vector<8x1xf32>
    %311 = vector.broadcast %310 : vector<8x1xf32> to vector<8x22xf32>
    %312 = arith.mulf %309, %311 : vector<8x22xf32>
    %313 = arith.addf %308, %312 : vector<8x22xf32>
    %314 = vector.extract_strided_slice %217 {offsets = [0, 7], sizes = [8, 22], strides = [1, 1]} : vector<8x36xf32> to vector<8x22xf32>
    %315 = vector.extract_strided_slice %10 {offsets = [0, 19], sizes = [8, 1], strides = [1, 1]} : vector<8x36xf32> to vector<8x1xf32>
    %316 = vector.broadcast %315 : vector<8x1xf32> to vector<8x22xf32>
    %317 = arith.mulf %314, %316 : vector<8x22xf32>
    %318 = arith.addf %313, %317 : vector<8x22xf32>
    %319 = vector.extract_strided_slice %211 {offsets = [0, 8], sizes = [8, 22], strides = [1, 1]} : vector<8x36xf32> to vector<8x22xf32>
    %320 = vector.extract_strided_slice %10 {offsets = [0, 20], sizes = [8, 1], strides = [1, 1]} : vector<8x36xf32> to vector<8x1xf32>
    %321 = vector.broadcast %320 : vector<8x1xf32> to vector<8x22xf32>
    %322 = arith.mulf %319, %321 : vector<8x22xf32>
    %323 = arith.addf %318, %322 : vector<8x22xf32>
    %324 = vector.extract_strided_slice %213 {offsets = [0, 8], sizes = [8, 22], strides = [1, 1]} : vector<8x36xf32> to vector<8x22xf32>
    %325 = vector.extract_strided_slice %10 {offsets = [0, 21], sizes = [8, 1], strides = [1, 1]} : vector<8x36xf32> to vector<8x1xf32>
    %326 = vector.broadcast %325 : vector<8x1xf32> to vector<8x22xf32>
    %327 = arith.mulf %324, %326 : vector<8x22xf32>
    %328 = arith.addf %323, %327 : vector<8x22xf32>
    %329 = vector.extract_strided_slice %215 {offsets = [0, 8], sizes = [8, 22], strides = [1, 1]} : vector<8x36xf32> to vector<8x22xf32>
    %330 = vector.extract_strided_slice %10 {offsets = [0, 22], sizes = [8, 1], strides = [1, 1]} : vector<8x36xf32> to vector<8x1xf32>
    %331 = vector.broadcast %330 : vector<8x1xf32> to vector<8x22xf32>
    %332 = arith.mulf %329, %331 : vector<8x22xf32>
    %333 = arith.addf %328, %332 : vector<8x22xf32>
    %334 = vector.extract_strided_slice %217 {offsets = [0, 8], sizes = [8, 22], strides = [1, 1]} : vector<8x36xf32> to vector<8x22xf32>
    %335 = vector.extract_strided_slice %10 {offsets = [0, 23], sizes = [8, 1], strides = [1, 1]} : vector<8x36xf32> to vector<8x1xf32>
    %336 = vector.broadcast %335 : vector<8x1xf32> to vector<8x22xf32>
    %337 = arith.mulf %334, %336 : vector<8x22xf32>
    %338 = arith.addf %333, %337 : vector<8x22xf32>
    %339 = vector.extract_strided_slice %211 {offsets = [0, 12], sizes = [8, 22], strides = [1, 1]} : vector<8x36xf32> to vector<8x22xf32>
    %340 = vector.extract_strided_slice %10 {offsets = [0, 24], sizes = [8, 1], strides = [1, 1]} : vector<8x36xf32> to vector<8x1xf32>
    %341 = vector.broadcast %340 : vector<8x1xf32> to vector<8x22xf32>
    %342 = arith.mulf %339, %341 : vector<8x22xf32>
    %343 = arith.addf %338, %342 : vector<8x22xf32>
    %344 = vector.extract_strided_slice %213 {offsets = [0, 12], sizes = [8, 22], strides = [1, 1]} : vector<8x36xf32> to vector<8x22xf32>
    %345 = vector.extract_strided_slice %10 {offsets = [0, 25], sizes = [8, 1], strides = [1, 1]} : vector<8x36xf32> to vector<8x1xf32>
    %346 = vector.broadcast %345 : vector<8x1xf32> to vector<8x22xf32>
    %347 = arith.mulf %344, %346 : vector<8x22xf32>
    %348 = arith.addf %343, %347 : vector<8x22xf32>
    %349 = vector.extract_strided_slice %215 {offsets = [0, 12], sizes = [8, 22], strides = [1, 1]} : vector<8x36xf32> to vector<8x22xf32>
    %350 = vector.extract_strided_slice %10 {offsets = [0, 26], sizes = [8, 1], strides = [1, 1]} : vector<8x36xf32> to vector<8x1xf32>
    %351 = vector.broadcast %350 : vector<8x1xf32> to vector<8x22xf32>
    %352 = arith.mulf %349, %351 : vector<8x22xf32>
    %353 = arith.addf %348, %352 : vector<8x22xf32>
    %354 = vector.extract_strided_slice %217 {offsets = [0, 12], sizes = [8, 22], strides = [1, 1]} : vector<8x36xf32> to vector<8x22xf32>
    %355 = vector.extract_strided_slice %10 {offsets = [0, 27], sizes = [8, 1], strides = [1, 1]} : vector<8x36xf32> to vector<8x1xf32>
    %356 = vector.broadcast %355 : vector<8x1xf32> to vector<8x22xf32>
    %357 = arith.mulf %354, %356 : vector<8x22xf32>
    %358 = arith.addf %353, %357 : vector<8x22xf32>
    %359 = vector.extract_strided_slice %211 {offsets = [0, 13], sizes = [8, 22], strides = [1, 1]} : vector<8x36xf32> to vector<8x22xf32>
    %360 = vector.extract_strided_slice %10 {offsets = [0, 28], sizes = [8, 1], strides = [1, 1]} : vector<8x36xf32> to vector<8x1xf32>
    %361 = vector.broadcast %360 : vector<8x1xf32> to vector<8x22xf32>
    %362 = arith.mulf %359, %361 : vector<8x22xf32>
    %363 = arith.addf %358, %362 : vector<8x22xf32>
    %364 = vector.extract_strided_slice %213 {offsets = [0, 13], sizes = [8, 22], strides = [1, 1]} : vector<8x36xf32> to vector<8x22xf32>
    %365 = vector.extract_strided_slice %10 {offsets = [0, 29], sizes = [8, 1], strides = [1, 1]} : vector<8x36xf32> to vector<8x1xf32>
    %366 = vector.broadcast %365 : vector<8x1xf32> to vector<8x22xf32>
    %367 = arith.mulf %364, %366 : vector<8x22xf32>
    %368 = arith.addf %363, %367 : vector<8x22xf32>
    %369 = vector.extract_strided_slice %215 {offsets = [0, 13], sizes = [8, 22], strides = [1, 1]} : vector<8x36xf32> to vector<8x22xf32>
    %370 = vector.extract_strided_slice %10 {offsets = [0, 30], sizes = [8, 1], strides = [1, 1]} : vector<8x36xf32> to vector<8x1xf32>
    %371 = vector.broadcast %370 : vector<8x1xf32> to vector<8x22xf32>
    %372 = arith.mulf %369, %371 : vector<8x22xf32>
    %373 = arith.addf %368, %372 : vector<8x22xf32>
    %374 = vector.extract_strided_slice %217 {offsets = [0, 13], sizes = [8, 22], strides = [1, 1]} : vector<8x36xf32> to vector<8x22xf32>
    %375 = vector.extract_strided_slice %10 {offsets = [0, 31], sizes = [8, 1], strides = [1, 1]} : vector<8x36xf32> to vector<8x1xf32>
    %376 = vector.broadcast %375 : vector<8x1xf32> to vector<8x22xf32>
    %377 = arith.mulf %374, %376 : vector<8x22xf32>
    %378 = arith.addf %373, %377 : vector<8x22xf32>
    %379 = vector.extract_strided_slice %211 {offsets = [0, 14], sizes = [8, 22], strides = [1, 1]} : vector<8x36xf32> to vector<8x22xf32>
    %380 = vector.extract_strided_slice %10 {offsets = [0, 32], sizes = [8, 1], strides = [1, 1]} : vector<8x36xf32> to vector<8x1xf32>
    %381 = vector.broadcast %380 : vector<8x1xf32> to vector<8x22xf32>
    %382 = arith.mulf %379, %381 : vector<8x22xf32>
    %383 = arith.addf %378, %382 : vector<8x22xf32>
    %384 = vector.extract_strided_slice %213 {offsets = [0, 14], sizes = [8, 22], strides = [1, 1]} : vector<8x36xf32> to vector<8x22xf32>
    %385 = vector.extract_strided_slice %10 {offsets = [0, 33], sizes = [8, 1], strides = [1, 1]} : vector<8x36xf32> to vector<8x1xf32>
    %386 = vector.broadcast %385 : vector<8x1xf32> to vector<8x22xf32>
    %387 = arith.mulf %384, %386 : vector<8x22xf32>
    %388 = arith.addf %383, %387 : vector<8x22xf32>
    %389 = vector.extract_strided_slice %215 {offsets = [0, 14], sizes = [8, 22], strides = [1, 1]} : vector<8x36xf32> to vector<8x22xf32>
    %390 = vector.extract_strided_slice %10 {offsets = [0, 34], sizes = [8, 1], strides = [1, 1]} : vector<8x36xf32> to vector<8x1xf32>
    %391 = vector.broadcast %390 : vector<8x1xf32> to vector<8x22xf32>
    %392 = arith.mulf %389, %391 : vector<8x22xf32>
    %393 = arith.addf %388, %392 : vector<8x22xf32>
    %394 = vector.extract_strided_slice %217 {offsets = [0, 14], sizes = [8, 22], strides = [1, 1]} : vector<8x36xf32> to vector<8x22xf32>
    %395 = vector.extract_strided_slice %10 {offsets = [0, 35], sizes = [8, 1], strides = [1, 1]} : vector<8x36xf32> to vector<8x1xf32>
    %396 = vector.broadcast %395 : vector<8x1xf32> to vector<8x22xf32>
    %397 = arith.mulf %394, %396 : vector<8x22xf32>
    %398 = arith.addf %393, %397 : vector<8x22xf32>
    %cst_36 = arith.constant 7.500000e-01 : f32
    %399 = vector.broadcast %cst_36 : f32 to vector<8x22xf32>
    %400 = arith.mulf %399, %5 : vector<8x22xf32>
    %401 = arith.subf %398, %400 : vector<8x22xf32>
    %cst_37 = arith.constant 1.000000e+00 : f32
    %402 = vector.broadcast %cst_37 : f32 to vector<8x22xf32>
    %403 = arith.cmpf oge, %401, %402 : vector<8x22xf32>
    %cst_38 = arith.constant 1.000000e+00 : f32
    %cst_39 = arith.constant 0.000000e+00 : f32
    %404 = vector.broadcast %cst_38 : f32 to vector<8x22xf32>
    %405 = vector.broadcast %cst_39 : f32 to vector<8x22xf32>
    %406 = arith.select %403, %404, %405 : vector<8x22xi1>, vector<8x22xf32>
    %cst_40 = arith.constant 4.000000e+00 : f32
    %407 = vector.broadcast %cst_40 : f32 to vector<8x22xf32>
    %408 = arith.mulf %407, %406 : vector<8x22xf32>
    %409 = arith.addf %400, %408 : vector<8x22xf32>
    %cst_41 = arith.constant 0.000000e+00 : f32
    %410 = vector.broadcast %cst_41 : f32 to vector<8x7xf32>
    %411 = vector.extract_strided_slice %406 {offsets = [0, 0], sizes = [8, 4], strides = [1, 1]} : vector<8x22xf32> to vector<8x4xf32>
    %cst_42 = arith.constant 0.000000e+00 : f32
    %412 = vector.broadcast %cst_42 : f32 to vector<8x2xf32>
    %413 = vector.extract_strided_slice %406 {offsets = [0, 6], sizes = [8, 4], strides = [1, 1]} : vector<8x22xf32> to vector<8x4xf32>
    %cst_43 = arith.constant 0.000000e+00 : f32
    %414 = vector.broadcast %cst_43 : f32 to vector<8x2xf32>
    %415 = vector.extract_strided_slice %406 {offsets = [0, 12], sizes = [8, 4], strides = [1, 1]} : vector<8x22xf32> to vector<8x4xf32>
    %cst_44 = arith.constant 0.000000e+00 : f32
    %416 = vector.broadcast %cst_44 : f32 to vector<8x2xf32>
    %417 = vector.extract_strided_slice %406 {offsets = [0, 18], sizes = [8, 4], strides = [1, 1]} : vector<8x22xf32> to vector<8x4xf32>
    %cst_45 = arith.constant 0.000000e+00 : f32
    %418 = vector.broadcast %cst_45 : f32 to vector<8x7xf32>
    %419 = tpu.concatenate %410, %411, %412, %413, %414, %415, %416, %417, %418 in 1 : vector<8x7xf32>, vector<8x4xf32>, vector<8x2xf32>, vector<8x4xf32>, vector<8x2xf32>, vector<8x4xf32>, vector<8x2xf32>, vector<8x4xf32>, vector<8x7xf32> -> vector<8x36xf32>
    %cst_46 = arith.constant 0.899999976 : f32
    %420 = vector.broadcast %cst_46 : f32 to vector<8x36xf32>
    %421 = arith.mulf %420, %6 : vector<8x36xf32>
    %cst_47 = arith.constant 1.000000e+01 : f32
    %422 = vector.broadcast %cst_47 : f32 to vector<8x36xf32>
    %423 = arith.mulf %422, %7 : vector<8x36xf32>
    %424 = arith.addf %421, %423 : vector<8x36xf32>
    %cst_48 = arith.constant 8.000000e-01 : f32
    %425 = vector.broadcast %cst_48 : f32 to vector<8x36xf32>
    %426 = arith.mulf %425, %7 : vector<8x36xf32>
    %cst_49 = arith.constant 5.000000e+00 : f32
    %427 = vector.broadcast %cst_49 : f32 to vector<8x36xf32>
    %428 = arith.mulf %427, %419 : vector<8x36xf32>
    %429 = arith.addf %426, %428 : vector<8x36xf32>
    %430 = vector.extract_strided_slice %424 {offsets = [0, 0], sizes = [2, 36], strides = [1, 1]} : vector<8x36xf32> to vector<2x36xf32>
    %431 = tpu.concatenate %430, %430, %430, %430 in 0 : vector<2x36xf32>, vector<2x36xf32>, vector<2x36xf32>, vector<2x36xf32> -> vector<8x36xf32>
    %432 = vector.extract_strided_slice %424 {offsets = [2, 0], sizes = [2, 36], strides = [1, 1]} : vector<8x36xf32> to vector<2x36xf32>
    %433 = tpu.concatenate %432, %432, %432, %432 in 0 : vector<2x36xf32>, vector<2x36xf32>, vector<2x36xf32>, vector<2x36xf32> -> vector<8x36xf32>
    %434 = vector.extract_strided_slice %424 {offsets = [4, 0], sizes = [2, 36], strides = [1, 1]} : vector<8x36xf32> to vector<2x36xf32>
    %435 = tpu.concatenate %434, %434, %434, %434 in 0 : vector<2x36xf32>, vector<2x36xf32>, vector<2x36xf32>, vector<2x36xf32> -> vector<8x36xf32>
    %436 = vector.extract_strided_slice %424 {offsets = [6, 0], sizes = [2, 36], strides = [1, 1]} : vector<8x36xf32> to vector<2x36xf32>
    %437 = tpu.concatenate %436, %436, %436, %436 in 0 : vector<2x36xf32>, vector<2x36xf32>, vector<2x36xf32>, vector<2x36xf32> -> vector<8x36xf32>
    %cst_50 = arith.constant 0.000000e+00 : f32
    %438 = vector.broadcast %cst_50 : f32 to vector<8x22xf32>
    %439 = vector.extract_strided_slice %431 {offsets = [0, 0], sizes = [8, 22], strides = [1, 1]} : vector<8x36xf32> to vector<8x22xf32>
    %440 = vector.extract_strided_slice %11 {offsets = [0, 0], sizes = [8, 1], strides = [1, 1]} : vector<8x36xf32> to vector<8x1xf32>
    %441 = vector.broadcast %440 : vector<8x1xf32> to vector<8x22xf32>
    %442 = arith.mulf %439, %441 : vector<8x22xf32>
    %443 = arith.addf %438, %442 : vector<8x22xf32>
    %444 = vector.extract_strided_slice %433 {offsets = [0, 0], sizes = [8, 22], strides = [1, 1]} : vector<8x36xf32> to vector<8x22xf32>
    %445 = vector.extract_strided_slice %11 {offsets = [0, 1], sizes = [8, 1], strides = [1, 1]} : vector<8x36xf32> to vector<8x1xf32>
    %446 = vector.broadcast %445 : vector<8x1xf32> to vector<8x22xf32>
    %447 = arith.mulf %444, %446 : vector<8x22xf32>
    %448 = arith.addf %443, %447 : vector<8x22xf32>
    %449 = vector.extract_strided_slice %435 {offsets = [0, 0], sizes = [8, 22], strides = [1, 1]} : vector<8x36xf32> to vector<8x22xf32>
    %450 = vector.extract_strided_slice %11 {offsets = [0, 2], sizes = [8, 1], strides = [1, 1]} : vector<8x36xf32> to vector<8x1xf32>
    %451 = vector.broadcast %450 : vector<8x1xf32> to vector<8x22xf32>
    %452 = arith.mulf %449, %451 : vector<8x22xf32>
    %453 = arith.addf %448, %452 : vector<8x22xf32>
    %454 = vector.extract_strided_slice %437 {offsets = [0, 0], sizes = [8, 22], strides = [1, 1]} : vector<8x36xf32> to vector<8x22xf32>
    %455 = vector.extract_strided_slice %11 {offsets = [0, 3], sizes = [8, 1], strides = [1, 1]} : vector<8x36xf32> to vector<8x1xf32>
    %456 = vector.broadcast %455 : vector<8x1xf32> to vector<8x22xf32>
    %457 = arith.mulf %454, %456 : vector<8x22xf32>
    %458 = arith.addf %453, %457 : vector<8x22xf32>
    %459 = vector.extract_strided_slice %431 {offsets = [0, 1], sizes = [8, 22], strides = [1, 1]} : vector<8x36xf32> to vector<8x22xf32>
    %460 = vector.extract_strided_slice %11 {offsets = [0, 4], sizes = [8, 1], strides = [1, 1]} : vector<8x36xf32> to vector<8x1xf32>
    %461 = vector.broadcast %460 : vector<8x1xf32> to vector<8x22xf32>
    %462 = arith.mulf %459, %461 : vector<8x22xf32>
    %463 = arith.addf %458, %462 : vector<8x22xf32>
    %464 = vector.extract_strided_slice %433 {offsets = [0, 1], sizes = [8, 22], strides = [1, 1]} : vector<8x36xf32> to vector<8x22xf32>
    %465 = vector.extract_strided_slice %11 {offsets = [0, 5], sizes = [8, 1], strides = [1, 1]} : vector<8x36xf32> to vector<8x1xf32>
    %466 = vector.broadcast %465 : vector<8x1xf32> to vector<8x22xf32>
    %467 = arith.mulf %464, %466 : vector<8x22xf32>
    %468 = arith.addf %463, %467 : vector<8x22xf32>
    %469 = vector.extract_strided_slice %435 {offsets = [0, 1], sizes = [8, 22], strides = [1, 1]} : vector<8x36xf32> to vector<8x22xf32>
    %470 = vector.extract_strided_slice %11 {offsets = [0, 6], sizes = [8, 1], strides = [1, 1]} : vector<8x36xf32> to vector<8x1xf32>
    %471 = vector.broadcast %470 : vector<8x1xf32> to vector<8x22xf32>
    %472 = arith.mulf %469, %471 : vector<8x22xf32>
    %473 = arith.addf %468, %472 : vector<8x22xf32>
    %474 = vector.extract_strided_slice %437 {offsets = [0, 1], sizes = [8, 22], strides = [1, 1]} : vector<8x36xf32> to vector<8x22xf32>
    %475 = vector.extract_strided_slice %11 {offsets = [0, 7], sizes = [8, 1], strides = [1, 1]} : vector<8x36xf32> to vector<8x1xf32>
    %476 = vector.broadcast %475 : vector<8x1xf32> to vector<8x22xf32>
    %477 = arith.mulf %474, %476 : vector<8x22xf32>
    %478 = arith.addf %473, %477 : vector<8x22xf32>
    %479 = vector.extract_strided_slice %431 {offsets = [0, 2], sizes = [8, 22], strides = [1, 1]} : vector<8x36xf32> to vector<8x22xf32>
    %480 = vector.extract_strided_slice %11 {offsets = [0, 8], sizes = [8, 1], strides = [1, 1]} : vector<8x36xf32> to vector<8x1xf32>
    %481 = vector.broadcast %480 : vector<8x1xf32> to vector<8x22xf32>
    %482 = arith.mulf %479, %481 : vector<8x22xf32>
    %483 = arith.addf %478, %482 : vector<8x22xf32>
    %484 = vector.extract_strided_slice %433 {offsets = [0, 2], sizes = [8, 22], strides = [1, 1]} : vector<8x36xf32> to vector<8x22xf32>
    %485 = vector.extract_strided_slice %11 {offsets = [0, 9], sizes = [8, 1], strides = [1, 1]} : vector<8x36xf32> to vector<8x1xf32>
    %486 = vector.broadcast %485 : vector<8x1xf32> to vector<8x22xf32>
    %487 = arith.mulf %484, %486 : vector<8x22xf32>
    %488 = arith.addf %483, %487 : vector<8x22xf32>
    %489 = vector.extract_strided_slice %435 {offsets = [0, 2], sizes = [8, 22], strides = [1, 1]} : vector<8x36xf32> to vector<8x22xf32>
    %490 = vector.extract_strided_slice %11 {offsets = [0, 10], sizes = [8, 1], strides = [1, 1]} : vector<8x36xf32> to vector<8x1xf32>
    %491 = vector.broadcast %490 : vector<8x1xf32> to vector<8x22xf32>
    %492 = arith.mulf %489, %491 : vector<8x22xf32>
    %493 = arith.addf %488, %492 : vector<8x22xf32>
    %494 = vector.extract_strided_slice %437 {offsets = [0, 2], sizes = [8, 22], strides = [1, 1]} : vector<8x36xf32> to vector<8x22xf32>
    %495 = vector.extract_strided_slice %11 {offsets = [0, 11], sizes = [8, 1], strides = [1, 1]} : vector<8x36xf32> to vector<8x1xf32>
    %496 = vector.broadcast %495 : vector<8x1xf32> to vector<8x22xf32>
    %497 = arith.mulf %494, %496 : vector<8x22xf32>
    %498 = arith.addf %493, %497 : vector<8x22xf32>
    %499 = vector.extract_strided_slice %431 {offsets = [0, 6], sizes = [8, 22], strides = [1, 1]} : vector<8x36xf32> to vector<8x22xf32>
    %500 = vector.extract_strided_slice %11 {offsets = [0, 12], sizes = [8, 1], strides = [1, 1]} : vector<8x36xf32> to vector<8x1xf32>
    %501 = vector.broadcast %500 : vector<8x1xf32> to vector<8x22xf32>
    %502 = arith.mulf %499, %501 : vector<8x22xf32>
    %503 = arith.addf %498, %502 : vector<8x22xf32>
    %504 = vector.extract_strided_slice %433 {offsets = [0, 6], sizes = [8, 22], strides = [1, 1]} : vector<8x36xf32> to vector<8x22xf32>
    %505 = vector.extract_strided_slice %11 {offsets = [0, 13], sizes = [8, 1], strides = [1, 1]} : vector<8x36xf32> to vector<8x1xf32>
    %506 = vector.broadcast %505 : vector<8x1xf32> to vector<8x22xf32>
    %507 = arith.mulf %504, %506 : vector<8x22xf32>
    %508 = arith.addf %503, %507 : vector<8x22xf32>
    %509 = vector.extract_strided_slice %435 {offsets = [0, 6], sizes = [8, 22], strides = [1, 1]} : vector<8x36xf32> to vector<8x22xf32>
    %510 = vector.extract_strided_slice %11 {offsets = [0, 14], sizes = [8, 1], strides = [1, 1]} : vector<8x36xf32> to vector<8x1xf32>
    %511 = vector.broadcast %510 : vector<8x1xf32> to vector<8x22xf32>
    %512 = arith.mulf %509, %511 : vector<8x22xf32>
    %513 = arith.addf %508, %512 : vector<8x22xf32>
    %514 = vector.extract_strided_slice %437 {offsets = [0, 6], sizes = [8, 22], strides = [1, 1]} : vector<8x36xf32> to vector<8x22xf32>
    %515 = vector.extract_strided_slice %11 {offsets = [0, 15], sizes = [8, 1], strides = [1, 1]} : vector<8x36xf32> to vector<8x1xf32>
    %516 = vector.broadcast %515 : vector<8x1xf32> to vector<8x22xf32>
    %517 = arith.mulf %514, %516 : vector<8x22xf32>
    %518 = arith.addf %513, %517 : vector<8x22xf32>
    %519 = vector.extract_strided_slice %431 {offsets = [0, 7], sizes = [8, 22], strides = [1, 1]} : vector<8x36xf32> to vector<8x22xf32>
    %520 = vector.extract_strided_slice %11 {offsets = [0, 16], sizes = [8, 1], strides = [1, 1]} : vector<8x36xf32> to vector<8x1xf32>
    %521 = vector.broadcast %520 : vector<8x1xf32> to vector<8x22xf32>
    %522 = arith.mulf %519, %521 : vector<8x22xf32>
    %523 = arith.addf %518, %522 : vector<8x22xf32>
    %524 = vector.extract_strided_slice %433 {offsets = [0, 7], sizes = [8, 22], strides = [1, 1]} : vector<8x36xf32> to vector<8x22xf32>
    %525 = vector.extract_strided_slice %11 {offsets = [0, 17], sizes = [8, 1], strides = [1, 1]} : vector<8x36xf32> to vector<8x1xf32>
    %526 = vector.broadcast %525 : vector<8x1xf32> to vector<8x22xf32>
    %527 = arith.mulf %524, %526 : vector<8x22xf32>
    %528 = arith.addf %523, %527 : vector<8x22xf32>
    %529 = vector.extract_strided_slice %435 {offsets = [0, 7], sizes = [8, 22], strides = [1, 1]} : vector<8x36xf32> to vector<8x22xf32>
    %530 = vector.extract_strided_slice %11 {offsets = [0, 18], sizes = [8, 1], strides = [1, 1]} : vector<8x36xf32> to vector<8x1xf32>
    %531 = vector.broadcast %530 : vector<8x1xf32> to vector<8x22xf32>
    %532 = arith.mulf %529, %531 : vector<8x22xf32>
    %533 = arith.addf %528, %532 : vector<8x22xf32>
    %534 = vector.extract_strided_slice %437 {offsets = [0, 7], sizes = [8, 22], strides = [1, 1]} : vector<8x36xf32> to vector<8x22xf32>
    %535 = vector.extract_strided_slice %11 {offsets = [0, 19], sizes = [8, 1], strides = [1, 1]} : vector<8x36xf32> to vector<8x1xf32>
    %536 = vector.broadcast %535 : vector<8x1xf32> to vector<8x22xf32>
    %537 = arith.mulf %534, %536 : vector<8x22xf32>
    %538 = arith.addf %533, %537 : vector<8x22xf32>
    %539 = vector.extract_strided_slice %431 {offsets = [0, 8], sizes = [8, 22], strides = [1, 1]} : vector<8x36xf32> to vector<8x22xf32>
    %540 = vector.extract_strided_slice %11 {offsets = [0, 20], sizes = [8, 1], strides = [1, 1]} : vector<8x36xf32> to vector<8x1xf32>
    %541 = vector.broadcast %540 : vector<8x1xf32> to vector<8x22xf32>
    %542 = arith.mulf %539, %541 : vector<8x22xf32>
    %543 = arith.addf %538, %542 : vector<8x22xf32>
    %544 = vector.extract_strided_slice %433 {offsets = [0, 8], sizes = [8, 22], strides = [1, 1]} : vector<8x36xf32> to vector<8x22xf32>
    %545 = vector.extract_strided_slice %11 {offsets = [0, 21], sizes = [8, 1], strides = [1, 1]} : vector<8x36xf32> to vector<8x1xf32>
    %546 = vector.broadcast %545 : vector<8x1xf32> to vector<8x22xf32>
    %547 = arith.mulf %544, %546 : vector<8x22xf32>
    %548 = arith.addf %543, %547 : vector<8x22xf32>
    %549 = vector.extract_strided_slice %435 {offsets = [0, 8], sizes = [8, 22], strides = [1, 1]} : vector<8x36xf32> to vector<8x22xf32>
    %550 = vector.extract_strided_slice %11 {offsets = [0, 22], sizes = [8, 1], strides = [1, 1]} : vector<8x36xf32> to vector<8x1xf32>
    %551 = vector.broadcast %550 : vector<8x1xf32> to vector<8x22xf32>
    %552 = arith.mulf %549, %551 : vector<8x22xf32>
    %553 = arith.addf %548, %552 : vector<8x22xf32>
    %554 = vector.extract_strided_slice %437 {offsets = [0, 8], sizes = [8, 22], strides = [1, 1]} : vector<8x36xf32> to vector<8x22xf32>
    %555 = vector.extract_strided_slice %11 {offsets = [0, 23], sizes = [8, 1], strides = [1, 1]} : vector<8x36xf32> to vector<8x1xf32>
    %556 = vector.broadcast %555 : vector<8x1xf32> to vector<8x22xf32>
    %557 = arith.mulf %554, %556 : vector<8x22xf32>
    %558 = arith.addf %553, %557 : vector<8x22xf32>
    %559 = vector.extract_strided_slice %431 {offsets = [0, 12], sizes = [8, 22], strides = [1, 1]} : vector<8x36xf32> to vector<8x22xf32>
    %560 = vector.extract_strided_slice %11 {offsets = [0, 24], sizes = [8, 1], strides = [1, 1]} : vector<8x36xf32> to vector<8x1xf32>
    %561 = vector.broadcast %560 : vector<8x1xf32> to vector<8x22xf32>
    %562 = arith.mulf %559, %561 : vector<8x22xf32>
    %563 = arith.addf %558, %562 : vector<8x22xf32>
    %564 = vector.extract_strided_slice %433 {offsets = [0, 12], sizes = [8, 22], strides = [1, 1]} : vector<8x36xf32> to vector<8x22xf32>
    %565 = vector.extract_strided_slice %11 {offsets = [0, 25], sizes = [8, 1], strides = [1, 1]} : vector<8x36xf32> to vector<8x1xf32>
    %566 = vector.broadcast %565 : vector<8x1xf32> to vector<8x22xf32>
    %567 = arith.mulf %564, %566 : vector<8x22xf32>
    %568 = arith.addf %563, %567 : vector<8x22xf32>
    %569 = vector.extract_strided_slice %435 {offsets = [0, 12], sizes = [8, 22], strides = [1, 1]} : vector<8x36xf32> to vector<8x22xf32>
    %570 = vector.extract_strided_slice %11 {offsets = [0, 26], sizes = [8, 1], strides = [1, 1]} : vector<8x36xf32> to vector<8x1xf32>
    %571 = vector.broadcast %570 : vector<8x1xf32> to vector<8x22xf32>
    %572 = arith.mulf %569, %571 : vector<8x22xf32>
    %573 = arith.addf %568, %572 : vector<8x22xf32>
    %574 = vector.extract_strided_slice %437 {offsets = [0, 12], sizes = [8, 22], strides = [1, 1]} : vector<8x36xf32> to vector<8x22xf32>
    %575 = vector.extract_strided_slice %11 {offsets = [0, 27], sizes = [8, 1], strides = [1, 1]} : vector<8x36xf32> to vector<8x1xf32>
    %576 = vector.broadcast %575 : vector<8x1xf32> to vector<8x22xf32>
    %577 = arith.mulf %574, %576 : vector<8x22xf32>
    %578 = arith.addf %573, %577 : vector<8x22xf32>
    %579 = vector.extract_strided_slice %431 {offsets = [0, 13], sizes = [8, 22], strides = [1, 1]} : vector<8x36xf32> to vector<8x22xf32>
    %580 = vector.extract_strided_slice %11 {offsets = [0, 28], sizes = [8, 1], strides = [1, 1]} : vector<8x36xf32> to vector<8x1xf32>
    %581 = vector.broadcast %580 : vector<8x1xf32> to vector<8x22xf32>
    %582 = arith.mulf %579, %581 : vector<8x22xf32>
    %583 = arith.addf %578, %582 : vector<8x22xf32>
    %584 = vector.extract_strided_slice %433 {offsets = [0, 13], sizes = [8, 22], strides = [1, 1]} : vector<8x36xf32> to vector<8x22xf32>
    %585 = vector.extract_strided_slice %11 {offsets = [0, 29], sizes = [8, 1], strides = [1, 1]} : vector<8x36xf32> to vector<8x1xf32>
    %586 = vector.broadcast %585 : vector<8x1xf32> to vector<8x22xf32>
    %587 = arith.mulf %584, %586 : vector<8x22xf32>
    %588 = arith.addf %583, %587 : vector<8x22xf32>
    %589 = vector.extract_strided_slice %435 {offsets = [0, 13], sizes = [8, 22], strides = [1, 1]} : vector<8x36xf32> to vector<8x22xf32>
    %590 = vector.extract_strided_slice %11 {offsets = [0, 30], sizes = [8, 1], strides = [1, 1]} : vector<8x36xf32> to vector<8x1xf32>
    %591 = vector.broadcast %590 : vector<8x1xf32> to vector<8x22xf32>
    %592 = arith.mulf %589, %591 : vector<8x22xf32>
    %593 = arith.addf %588, %592 : vector<8x22xf32>
    %594 = vector.extract_strided_slice %437 {offsets = [0, 13], sizes = [8, 22], strides = [1, 1]} : vector<8x36xf32> to vector<8x22xf32>
    %595 = vector.extract_strided_slice %11 {offsets = [0, 31], sizes = [8, 1], strides = [1, 1]} : vector<8x36xf32> to vector<8x1xf32>
    %596 = vector.broadcast %595 : vector<8x1xf32> to vector<8x22xf32>
    %597 = arith.mulf %594, %596 : vector<8x22xf32>
    %598 = arith.addf %593, %597 : vector<8x22xf32>
    %599 = vector.extract_strided_slice %431 {offsets = [0, 14], sizes = [8, 22], strides = [1, 1]} : vector<8x36xf32> to vector<8x22xf32>
    %600 = vector.extract_strided_slice %11 {offsets = [0, 32], sizes = [8, 1], strides = [1, 1]} : vector<8x36xf32> to vector<8x1xf32>
    %601 = vector.broadcast %600 : vector<8x1xf32> to vector<8x22xf32>
    %602 = arith.mulf %599, %601 : vector<8x22xf32>
    %603 = arith.addf %598, %602 : vector<8x22xf32>
    %604 = vector.extract_strided_slice %433 {offsets = [0, 14], sizes = [8, 22], strides = [1, 1]} : vector<8x36xf32> to vector<8x22xf32>
    %605 = vector.extract_strided_slice %11 {offsets = [0, 33], sizes = [8, 1], strides = [1, 1]} : vector<8x36xf32> to vector<8x1xf32>
    %606 = vector.broadcast %605 : vector<8x1xf32> to vector<8x22xf32>
    %607 = arith.mulf %604, %606 : vector<8x22xf32>
    %608 = arith.addf %603, %607 : vector<8x22xf32>
    %609 = vector.extract_strided_slice %435 {offsets = [0, 14], sizes = [8, 22], strides = [1, 1]} : vector<8x36xf32> to vector<8x22xf32>
    %610 = vector.extract_strided_slice %11 {offsets = [0, 34], sizes = [8, 1], strides = [1, 1]} : vector<8x36xf32> to vector<8x1xf32>
    %611 = vector.broadcast %610 : vector<8x1xf32> to vector<8x22xf32>
    %612 = arith.mulf %609, %611 : vector<8x22xf32>
    %613 = arith.addf %608, %612 : vector<8x22xf32>
    %614 = vector.extract_strided_slice %437 {offsets = [0, 14], sizes = [8, 22], strides = [1, 1]} : vector<8x36xf32> to vector<8x22xf32>
    %615 = vector.extract_strided_slice %11 {offsets = [0, 35], sizes = [8, 1], strides = [1, 1]} : vector<8x36xf32> to vector<8x1xf32>
    %616 = vector.broadcast %615 : vector<8x1xf32> to vector<8x22xf32>
    %617 = arith.mulf %614, %616 : vector<8x22xf32>
    %618 = arith.addf %613, %617 : vector<8x22xf32>
    %cst_51 = arith.constant 7.500000e-01 : f32
    %619 = vector.broadcast %cst_51 : f32 to vector<8x22xf32>
    %620 = arith.mulf %619, %8 : vector<8x22xf32>
    %621 = arith.subf %618, %620 : vector<8x22xf32>
    %cst_52 = arith.constant 1.000000e+00 : f32
    %622 = vector.broadcast %cst_52 : f32 to vector<8x22xf32>
    %623 = arith.cmpf oge, %621, %622 : vector<8x22xf32>
    %cst_53 = arith.constant 1.000000e+00 : f32
    %cst_54 = arith.constant 0.000000e+00 : f32
    %624 = vector.broadcast %cst_53 : f32 to vector<8x22xf32>
    %625 = vector.broadcast %cst_54 : f32 to vector<8x22xf32>
    %626 = arith.select %623, %624, %625 : vector<8x22xi1>, vector<8x22xf32>
    %cst_55 = arith.constant 4.000000e+00 : f32
    %627 = vector.broadcast %cst_55 : f32 to vector<8x22xf32>
    %628 = arith.mulf %627, %626 : vector<8x22xf32>
    %629 = arith.addf %620, %628 : vector<8x22xf32>
    %630 = vector.extract_strided_slice %626 {offsets = [0, 0], sizes = [8, 4], strides = [1, 1]} : vector<8x22xf32> to vector<8x4xf32>
    %631 = vector.extract_strided_slice %626 {offsets = [0, 6], sizes = [8, 4], strides = [1, 1]} : vector<8x22xf32> to vector<8x4xf32>
    %632 = arith.maximumf %630, %631 : vector<8x4xf32>
    %633 = vector.extract_strided_slice %632 {offsets = [0, 0], sizes = [8, 1], strides = [1, 1]} : vector<8x4xf32> to vector<8x1xf32>
    %634 = vector.extract_strided_slice %632 {offsets = [0, 1], sizes = [8, 1], strides = [1, 1]} : vector<8x4xf32> to vector<8x1xf32>
    %635 = arith.maximumf %633, %634 : vector<8x1xf32>
    %636 = vector.extract_strided_slice %632 {offsets = [0, 2], sizes = [8, 1], strides = [1, 1]} : vector<8x4xf32> to vector<8x1xf32>
    %637 = vector.extract_strided_slice %632 {offsets = [0, 3], sizes = [8, 1], strides = [1, 1]} : vector<8x4xf32> to vector<8x1xf32>
    %638 = arith.maximumf %636, %637 : vector<8x1xf32>
    %639 = vector.extract_strided_slice %626 {offsets = [0, 12], sizes = [8, 4], strides = [1, 1]} : vector<8x22xf32> to vector<8x4xf32>
    %640 = vector.extract_strided_slice %626 {offsets = [0, 18], sizes = [8, 4], strides = [1, 1]} : vector<8x22xf32> to vector<8x4xf32>
    %641 = arith.maximumf %639, %640 : vector<8x4xf32>
    %642 = vector.extract_strided_slice %641 {offsets = [0, 0], sizes = [8, 1], strides = [1, 1]} : vector<8x4xf32> to vector<8x1xf32>
    %643 = vector.extract_strided_slice %641 {offsets = [0, 1], sizes = [8, 1], strides = [1, 1]} : vector<8x4xf32> to vector<8x1xf32>
    %644 = arith.maximumf %642, %643 : vector<8x1xf32>
    %645 = vector.extract_strided_slice %641 {offsets = [0, 2], sizes = [8, 1], strides = [1, 1]} : vector<8x4xf32> to vector<8x1xf32>
    %646 = vector.extract_strided_slice %641 {offsets = [0, 3], sizes = [8, 1], strides = [1, 1]} : vector<8x4xf32> to vector<8x1xf32>
    %647 = arith.maximumf %645, %646 : vector<8x1xf32>
    %648 = tpu.concatenate %635, %638, %644, %647 in 1 : vector<8x1xf32>, vector<8x1xf32>, vector<8x1xf32>, vector<8x1xf32> -> vector<8x4xf32>
    %c0_56 = arith.constant 0 : index
    %c0_57 = arith.constant 0 : index
    %649 = vector.load %arg1[%c0_56, %c0_57] : memref<8x18xf32, #tpu.memory_space<vmem>>, vector<8x18xf32>
    %c0_58 = arith.constant 0 : index
    %c0_59 = arith.constant 0 : index
    %650 = vector.load %arg2[%c0_58, %c0_59] : memref<8x36xf32, #tpu.memory_space<vmem>>, vector<8x36xf32>
    %c0_60 = arith.constant 0 : index
    %c0_61 = arith.constant 0 : index
    %651 = vector.load %arg3[%c0_60, %c0_61] : memref<8x36xf32, #tpu.memory_space<vmem>>, vector<8x36xf32>
    %cst_62 = arith.constant 0.899999976 : f32
    %652 = vector.broadcast %cst_62 : f32 to vector<4x100xf32>
    %653 = arith.mulf %652, %18 : vector<4x100xf32>
    %cst_63 = arith.constant 1.000000e+01 : f32
    %654 = vector.broadcast %cst_63 : f32 to vector<4x100xf32>
    %655 = arith.mulf %654, %23 : vector<4x100xf32>
    %656 = arith.addf %653, %655 : vector<4x100xf32>
    %657 = vector.extract_strided_slice %656 {offsets = [0, 0], sizes = [2, 100], strides = [1, 1]} : vector<4x100xf32> to vector<2x100xf32>
    %658 = tpu.concatenate %657, %657, %657, %657 in 0 : vector<2x100xf32>, vector<2x100xf32>, vector<2x100xf32>, vector<2x100xf32> -> vector<8x100xf32>
    %659 = vector.extract_strided_slice %656 {offsets = [2, 0], sizes = [2, 100], strides = [1, 1]} : vector<4x100xf32> to vector<2x100xf32>
    %660 = tpu.concatenate %659, %659, %659, %659 in 0 : vector<2x100xf32>, vector<2x100xf32>, vector<2x100xf32>, vector<2x100xf32> -> vector<8x100xf32>
    %cst_64 = arith.constant 0.000000e+00 : f32
    %661 = vector.broadcast %cst_64 : f32 to vector<8x78xf32>
    %662 = vector.extract_strided_slice %658 {offsets = [0, 0], sizes = [8, 78], strides = [1, 1]} : vector<8x100xf32> to vector<8x78xf32>
    %663 = vector.extract_strided_slice %649 {offsets = [0, 0], sizes = [8, 1], strides = [1, 1]} : vector<8x18xf32> to vector<8x1xf32>
    %664 = vector.broadcast %663 : vector<8x1xf32> to vector<8x78xf32>
    %665 = arith.mulf %662, %664 : vector<8x78xf32>
    %666 = arith.addf %661, %665 : vector<8x78xf32>
    %667 = vector.extract_strided_slice %660 {offsets = [0, 0], sizes = [8, 78], strides = [1, 1]} : vector<8x100xf32> to vector<8x78xf32>
    %668 = vector.extract_strided_slice %649 {offsets = [0, 1], sizes = [8, 1], strides = [1, 1]} : vector<8x18xf32> to vector<8x1xf32>
    %669 = vector.broadcast %668 : vector<8x1xf32> to vector<8x78xf32>
    %670 = arith.mulf %667, %669 : vector<8x78xf32>
    %671 = arith.addf %666, %670 : vector<8x78xf32>
    %672 = vector.extract_strided_slice %658 {offsets = [0, 1], sizes = [8, 78], strides = [1, 1]} : vector<8x100xf32> to vector<8x78xf32>
    %673 = vector.extract_strided_slice %649 {offsets = [0, 2], sizes = [8, 1], strides = [1, 1]} : vector<8x18xf32> to vector<8x1xf32>
    %674 = vector.broadcast %673 : vector<8x1xf32> to vector<8x78xf32>
    %675 = arith.mulf %672, %674 : vector<8x78xf32>
    %676 = arith.addf %671, %675 : vector<8x78xf32>
    %677 = vector.extract_strided_slice %660 {offsets = [0, 1], sizes = [8, 78], strides = [1, 1]} : vector<8x100xf32> to vector<8x78xf32>
    %678 = vector.extract_strided_slice %649 {offsets = [0, 3], sizes = [8, 1], strides = [1, 1]} : vector<8x18xf32> to vector<8x1xf32>
    %679 = vector.broadcast %678 : vector<8x1xf32> to vector<8x78xf32>
    %680 = arith.mulf %677, %679 : vector<8x78xf32>
    %681 = arith.addf %676, %680 : vector<8x78xf32>
    %682 = vector.extract_strided_slice %658 {offsets = [0, 2], sizes = [8, 78], strides = [1, 1]} : vector<8x100xf32> to vector<8x78xf32>
    %683 = vector.extract_strided_slice %649 {offsets = [0, 4], sizes = [8, 1], strides = [1, 1]} : vector<8x18xf32> to vector<8x1xf32>
    %684 = vector.broadcast %683 : vector<8x1xf32> to vector<8x78xf32>
    %685 = arith.mulf %682, %684 : vector<8x78xf32>
    %686 = arith.addf %681, %685 : vector<8x78xf32>
    %687 = vector.extract_strided_slice %660 {offsets = [0, 2], sizes = [8, 78], strides = [1, 1]} : vector<8x100xf32> to vector<8x78xf32>
    %688 = vector.extract_strided_slice %649 {offsets = [0, 5], sizes = [8, 1], strides = [1, 1]} : vector<8x18xf32> to vector<8x1xf32>
    %689 = vector.broadcast %688 : vector<8x1xf32> to vector<8x78xf32>
    %690 = arith.mulf %687, %689 : vector<8x78xf32>
    %691 = arith.addf %686, %690 : vector<8x78xf32>
    %692 = vector.extract_strided_slice %658 {offsets = [0, 10], sizes = [8, 78], strides = [1, 1]} : vector<8x100xf32> to vector<8x78xf32>
    %693 = vector.extract_strided_slice %649 {offsets = [0, 6], sizes = [8, 1], strides = [1, 1]} : vector<8x18xf32> to vector<8x1xf32>
    %694 = vector.broadcast %693 : vector<8x1xf32> to vector<8x78xf32>
    %695 = arith.mulf %692, %694 : vector<8x78xf32>
    %696 = arith.addf %691, %695 : vector<8x78xf32>
    %697 = vector.extract_strided_slice %660 {offsets = [0, 10], sizes = [8, 78], strides = [1, 1]} : vector<8x100xf32> to vector<8x78xf32>
    %698 = vector.extract_strided_slice %649 {offsets = [0, 7], sizes = [8, 1], strides = [1, 1]} : vector<8x18xf32> to vector<8x1xf32>
    %699 = vector.broadcast %698 : vector<8x1xf32> to vector<8x78xf32>
    %700 = arith.mulf %697, %699 : vector<8x78xf32>
    %701 = arith.addf %696, %700 : vector<8x78xf32>
    %702 = vector.extract_strided_slice %658 {offsets = [0, 11], sizes = [8, 78], strides = [1, 1]} : vector<8x100xf32> to vector<8x78xf32>
    %703 = vector.extract_strided_slice %649 {offsets = [0, 8], sizes = [8, 1], strides = [1, 1]} : vector<8x18xf32> to vector<8x1xf32>
    %704 = vector.broadcast %703 : vector<8x1xf32> to vector<8x78xf32>
    %705 = arith.mulf %702, %704 : vector<8x78xf32>
    %706 = arith.addf %701, %705 : vector<8x78xf32>
    %707 = vector.extract_strided_slice %660 {offsets = [0, 11], sizes = [8, 78], strides = [1, 1]} : vector<8x100xf32> to vector<8x78xf32>
    %708 = vector.extract_strided_slice %649 {offsets = [0, 9], sizes = [8, 1], strides = [1, 1]} : vector<8x18xf32> to vector<8x1xf32>
    %709 = vector.broadcast %708 : vector<8x1xf32> to vector<8x78xf32>
    %710 = arith.mulf %707, %709 : vector<8x78xf32>
    %711 = arith.addf %706, %710 : vector<8x78xf32>
    %712 = vector.extract_strided_slice %658 {offsets = [0, 12], sizes = [8, 78], strides = [1, 1]} : vector<8x100xf32> to vector<8x78xf32>
    %713 = vector.extract_strided_slice %649 {offsets = [0, 10], sizes = [8, 1], strides = [1, 1]} : vector<8x18xf32> to vector<8x1xf32>
    %714 = vector.broadcast %713 : vector<8x1xf32> to vector<8x78xf32>
    %715 = arith.mulf %712, %714 : vector<8x78xf32>
    %716 = arith.addf %711, %715 : vector<8x78xf32>
    %717 = vector.extract_strided_slice %660 {offsets = [0, 12], sizes = [8, 78], strides = [1, 1]} : vector<8x100xf32> to vector<8x78xf32>
    %718 = vector.extract_strided_slice %649 {offsets = [0, 11], sizes = [8, 1], strides = [1, 1]} : vector<8x18xf32> to vector<8x1xf32>
    %719 = vector.broadcast %718 : vector<8x1xf32> to vector<8x78xf32>
    %720 = arith.mulf %717, %719 : vector<8x78xf32>
    %721 = arith.addf %716, %720 : vector<8x78xf32>
    %722 = vector.extract_strided_slice %658 {offsets = [0, 20], sizes = [8, 78], strides = [1, 1]} : vector<8x100xf32> to vector<8x78xf32>
    %723 = vector.extract_strided_slice %649 {offsets = [0, 12], sizes = [8, 1], strides = [1, 1]} : vector<8x18xf32> to vector<8x1xf32>
    %724 = vector.broadcast %723 : vector<8x1xf32> to vector<8x78xf32>
    %725 = arith.mulf %722, %724 : vector<8x78xf32>
    %726 = arith.addf %721, %725 : vector<8x78xf32>
    %727 = vector.extract_strided_slice %660 {offsets = [0, 20], sizes = [8, 78], strides = [1, 1]} : vector<8x100xf32> to vector<8x78xf32>
    %728 = vector.extract_strided_slice %649 {offsets = [0, 13], sizes = [8, 1], strides = [1, 1]} : vector<8x18xf32> to vector<8x1xf32>
    %729 = vector.broadcast %728 : vector<8x1xf32> to vector<8x78xf32>
    %730 = arith.mulf %727, %729 : vector<8x78xf32>
    %731 = arith.addf %726, %730 : vector<8x78xf32>
    %732 = vector.extract_strided_slice %658 {offsets = [0, 21], sizes = [8, 78], strides = [1, 1]} : vector<8x100xf32> to vector<8x78xf32>
    %733 = vector.extract_strided_slice %649 {offsets = [0, 14], sizes = [8, 1], strides = [1, 1]} : vector<8x18xf32> to vector<8x1xf32>
    %734 = vector.broadcast %733 : vector<8x1xf32> to vector<8x78xf32>
    %735 = arith.mulf %732, %734 : vector<8x78xf32>
    %736 = arith.addf %731, %735 : vector<8x78xf32>
    %737 = vector.extract_strided_slice %660 {offsets = [0, 21], sizes = [8, 78], strides = [1, 1]} : vector<8x100xf32> to vector<8x78xf32>
    %738 = vector.extract_strided_slice %649 {offsets = [0, 15], sizes = [8, 1], strides = [1, 1]} : vector<8x18xf32> to vector<8x1xf32>
    %739 = vector.broadcast %738 : vector<8x1xf32> to vector<8x78xf32>
    %740 = arith.mulf %737, %739 : vector<8x78xf32>
    %741 = arith.addf %736, %740 : vector<8x78xf32>
    %742 = vector.extract_strided_slice %658 {offsets = [0, 22], sizes = [8, 78], strides = [1, 1]} : vector<8x100xf32> to vector<8x78xf32>
    %743 = vector.extract_strided_slice %649 {offsets = [0, 16], sizes = [8, 1], strides = [1, 1]} : vector<8x18xf32> to vector<8x1xf32>
    %744 = vector.broadcast %743 : vector<8x1xf32> to vector<8x78xf32>
    %745 = arith.mulf %742, %744 : vector<8x78xf32>
    %746 = arith.addf %741, %745 : vector<8x78xf32>
    %747 = vector.extract_strided_slice %660 {offsets = [0, 22], sizes = [8, 78], strides = [1, 1]} : vector<8x100xf32> to vector<8x78xf32>
    %748 = vector.extract_strided_slice %649 {offsets = [0, 17], sizes = [8, 1], strides = [1, 1]} : vector<8x18xf32> to vector<8x1xf32>
    %749 = vector.broadcast %748 : vector<8x1xf32> to vector<8x78xf32>
    %750 = arith.mulf %747, %749 : vector<8x78xf32>
    %751 = arith.addf %746, %750 : vector<8x78xf32>
    %cst_65 = arith.constant 7.500000e-01 : f32
    %752 = vector.broadcast %cst_65 : f32 to vector<8x78xf32>
    %753 = arith.mulf %752, %129 : vector<8x78xf32>
    %754 = arith.subf %751, %753 : vector<8x78xf32>
    %cst_66 = arith.constant 1.000000e+00 : f32
    %755 = vector.broadcast %cst_66 : f32 to vector<8x78xf32>
    %756 = arith.cmpf oge, %754, %755 : vector<8x78xf32>
    %cst_67 = arith.constant 1.000000e+00 : f32
    %cst_68 = arith.constant 0.000000e+00 : f32
    %757 = vector.broadcast %cst_67 : f32 to vector<8x78xf32>
    %758 = vector.broadcast %cst_68 : f32 to vector<8x78xf32>
    %759 = arith.select %756, %757, %758 : vector<8x78xi1>, vector<8x78xf32>
    %cst_69 = arith.constant 0.000000e+00 : f32
    %760 = vector.broadcast %cst_69 : f32 to vector<8x7xf32>
    %761 = vector.extract_strided_slice %759 {offsets = [0, 0], sizes = [8, 8], strides = [1, 1]} : vector<8x78xf32> to vector<8x8xf32>
    %762 = vector.extract_strided_slice %759 {offsets = [0, 10], sizes = [8, 8], strides = [1, 1]} : vector<8x78xf32> to vector<8x8xf32>
    %763 = arith.maximumf %761, %762 : vector<8x8xf32>
    %764 = vector.extract_strided_slice %763 {offsets = [0, 0], sizes = [8, 1], strides = [1, 1]} : vector<8x8xf32> to vector<8x1xf32>
    %765 = vector.extract_strided_slice %763 {offsets = [0, 1], sizes = [8, 1], strides = [1, 1]} : vector<8x8xf32> to vector<8x1xf32>
    %766 = arith.maximumf %764, %765 : vector<8x1xf32>
    %767 = vector.extract_strided_slice %763 {offsets = [0, 2], sizes = [8, 1], strides = [1, 1]} : vector<8x8xf32> to vector<8x1xf32>
    %768 = vector.extract_strided_slice %763 {offsets = [0, 3], sizes = [8, 1], strides = [1, 1]} : vector<8x8xf32> to vector<8x1xf32>
    %769 = arith.maximumf %767, %768 : vector<8x1xf32>
    %770 = vector.extract_strided_slice %763 {offsets = [0, 4], sizes = [8, 1], strides = [1, 1]} : vector<8x8xf32> to vector<8x1xf32>
    %771 = vector.extract_strided_slice %763 {offsets = [0, 5], sizes = [8, 1], strides = [1, 1]} : vector<8x8xf32> to vector<8x1xf32>
    %772 = arith.maximumf %770, %771 : vector<8x1xf32>
    %773 = vector.extract_strided_slice %763 {offsets = [0, 6], sizes = [8, 1], strides = [1, 1]} : vector<8x8xf32> to vector<8x1xf32>
    %774 = vector.extract_strided_slice %763 {offsets = [0, 7], sizes = [8, 1], strides = [1, 1]} : vector<8x8xf32> to vector<8x1xf32>
    %775 = arith.maximumf %773, %774 : vector<8x1xf32>
    %776 = tpu.concatenate %766, %769, %772, %775 in 1 : vector<8x1xf32>, vector<8x1xf32>, vector<8x1xf32>, vector<8x1xf32> -> vector<8x4xf32>
    %cst_70 = arith.constant 0.000000e+00 : f32
    %777 = vector.broadcast %cst_70 : f32 to vector<8x2xf32>
    %778 = vector.extract_strided_slice %759 {offsets = [0, 20], sizes = [8, 8], strides = [1, 1]} : vector<8x78xf32> to vector<8x8xf32>
    %779 = vector.extract_strided_slice %759 {offsets = [0, 30], sizes = [8, 8], strides = [1, 1]} : vector<8x78xf32> to vector<8x8xf32>
    %780 = arith.maximumf %778, %779 : vector<8x8xf32>
    %781 = vector.extract_strided_slice %780 {offsets = [0, 0], sizes = [8, 1], strides = [1, 1]} : vector<8x8xf32> to vector<8x1xf32>
    %782 = vector.extract_strided_slice %780 {offsets = [0, 1], sizes = [8, 1], strides = [1, 1]} : vector<8x8xf32> to vector<8x1xf32>
    %783 = arith.maximumf %781, %782 : vector<8x1xf32>
    %784 = vector.extract_strided_slice %780 {offsets = [0, 2], sizes = [8, 1], strides = [1, 1]} : vector<8x8xf32> to vector<8x1xf32>
    %785 = vector.extract_strided_slice %780 {offsets = [0, 3], sizes = [8, 1], strides = [1, 1]} : vector<8x8xf32> to vector<8x1xf32>
    %786 = arith.maximumf %784, %785 : vector<8x1xf32>
    %787 = vector.extract_strided_slice %780 {offsets = [0, 4], sizes = [8, 1], strides = [1, 1]} : vector<8x8xf32> to vector<8x1xf32>
    %788 = vector.extract_strided_slice %780 {offsets = [0, 5], sizes = [8, 1], strides = [1, 1]} : vector<8x8xf32> to vector<8x1xf32>
    %789 = arith.maximumf %787, %788 : vector<8x1xf32>
    %790 = vector.extract_strided_slice %780 {offsets = [0, 6], sizes = [8, 1], strides = [1, 1]} : vector<8x8xf32> to vector<8x1xf32>
    %791 = vector.extract_strided_slice %780 {offsets = [0, 7], sizes = [8, 1], strides = [1, 1]} : vector<8x8xf32> to vector<8x1xf32>
    %792 = arith.maximumf %790, %791 : vector<8x1xf32>
    %793 = tpu.concatenate %783, %786, %789, %792 in 1 : vector<8x1xf32>, vector<8x1xf32>, vector<8x1xf32>, vector<8x1xf32> -> vector<8x4xf32>
    %cst_71 = arith.constant 0.000000e+00 : f32
    %794 = vector.broadcast %cst_71 : f32 to vector<8x2xf32>
    %795 = vector.extract_strided_slice %759 {offsets = [0, 40], sizes = [8, 8], strides = [1, 1]} : vector<8x78xf32> to vector<8x8xf32>
    %796 = vector.extract_strided_slice %759 {offsets = [0, 50], sizes = [8, 8], strides = [1, 1]} : vector<8x78xf32> to vector<8x8xf32>
    %797 = arith.maximumf %795, %796 : vector<8x8xf32>
    %798 = vector.extract_strided_slice %797 {offsets = [0, 0], sizes = [8, 1], strides = [1, 1]} : vector<8x8xf32> to vector<8x1xf32>
    %799 = vector.extract_strided_slice %797 {offsets = [0, 1], sizes = [8, 1], strides = [1, 1]} : vector<8x8xf32> to vector<8x1xf32>
    %800 = arith.maximumf %798, %799 : vector<8x1xf32>
    %801 = vector.extract_strided_slice %797 {offsets = [0, 2], sizes = [8, 1], strides = [1, 1]} : vector<8x8xf32> to vector<8x1xf32>
    %802 = vector.extract_strided_slice %797 {offsets = [0, 3], sizes = [8, 1], strides = [1, 1]} : vector<8x8xf32> to vector<8x1xf32>
    %803 = arith.maximumf %801, %802 : vector<8x1xf32>
    %804 = vector.extract_strided_slice %797 {offsets = [0, 4], sizes = [8, 1], strides = [1, 1]} : vector<8x8xf32> to vector<8x1xf32>
    %805 = vector.extract_strided_slice %797 {offsets = [0, 5], sizes = [8, 1], strides = [1, 1]} : vector<8x8xf32> to vector<8x1xf32>
    %806 = arith.maximumf %804, %805 : vector<8x1xf32>
    %807 = vector.extract_strided_slice %797 {offsets = [0, 6], sizes = [8, 1], strides = [1, 1]} : vector<8x8xf32> to vector<8x1xf32>
    %808 = vector.extract_strided_slice %797 {offsets = [0, 7], sizes = [8, 1], strides = [1, 1]} : vector<8x8xf32> to vector<8x1xf32>
    %809 = arith.maximumf %807, %808 : vector<8x1xf32>
    %810 = tpu.concatenate %800, %803, %806, %809 in 1 : vector<8x1xf32>, vector<8x1xf32>, vector<8x1xf32>, vector<8x1xf32> -> vector<8x4xf32>
    %cst_72 = arith.constant 0.000000e+00 : f32
    %811 = vector.broadcast %cst_72 : f32 to vector<8x2xf32>
    %812 = vector.extract_strided_slice %759 {offsets = [0, 60], sizes = [8, 8], strides = [1, 1]} : vector<8x78xf32> to vector<8x8xf32>
    %813 = vector.extract_strided_slice %759 {offsets = [0, 70], sizes = [8, 8], strides = [1, 1]} : vector<8x78xf32> to vector<8x8xf32>
    %814 = arith.maximumf %812, %813 : vector<8x8xf32>
    %815 = vector.extract_strided_slice %814 {offsets = [0, 0], sizes = [8, 1], strides = [1, 1]} : vector<8x8xf32> to vector<8x1xf32>
    %816 = vector.extract_strided_slice %814 {offsets = [0, 1], sizes = [8, 1], strides = [1, 1]} : vector<8x8xf32> to vector<8x1xf32>
    %817 = arith.maximumf %815, %816 : vector<8x1xf32>
    %818 = vector.extract_strided_slice %814 {offsets = [0, 2], sizes = [8, 1], strides = [1, 1]} : vector<8x8xf32> to vector<8x1xf32>
    %819 = vector.extract_strided_slice %814 {offsets = [0, 3], sizes = [8, 1], strides = [1, 1]} : vector<8x8xf32> to vector<8x1xf32>
    %820 = arith.maximumf %818, %819 : vector<8x1xf32>
    %821 = vector.extract_strided_slice %814 {offsets = [0, 4], sizes = [8, 1], strides = [1, 1]} : vector<8x8xf32> to vector<8x1xf32>
    %822 = vector.extract_strided_slice %814 {offsets = [0, 5], sizes = [8, 1], strides = [1, 1]} : vector<8x8xf32> to vector<8x1xf32>
    %823 = arith.maximumf %821, %822 : vector<8x1xf32>
    %824 = vector.extract_strided_slice %814 {offsets = [0, 6], sizes = [8, 1], strides = [1, 1]} : vector<8x8xf32> to vector<8x1xf32>
    %825 = vector.extract_strided_slice %814 {offsets = [0, 7], sizes = [8, 1], strides = [1, 1]} : vector<8x8xf32> to vector<8x1xf32>
    %826 = arith.maximumf %824, %825 : vector<8x1xf32>
    %827 = tpu.concatenate %817, %820, %823, %826 in 1 : vector<8x1xf32>, vector<8x1xf32>, vector<8x1xf32>, vector<8x1xf32> -> vector<8x4xf32>
    %cst_73 = arith.constant 0.000000e+00 : f32
    %828 = vector.broadcast %cst_73 : f32 to vector<8x7xf32>
    %829 = tpu.concatenate %760, %776, %777, %793, %794, %810, %811, %827, %828 in 1 : vector<8x7xf32>, vector<8x4xf32>, vector<8x2xf32>, vector<8x4xf32>, vector<8x2xf32>, vector<8x4xf32>, vector<8x2xf32>, vector<8x4xf32>, vector<8x7xf32> -> vector<8x36xf32>
    %cst_74 = arith.constant 0.899999976 : f32
    %830 = vector.broadcast %cst_74 : f32 to vector<8x36xf32>
    %831 = arith.mulf %830, %204 : vector<8x36xf32>
    %cst_75 = arith.constant 1.000000e+01 : f32
    %832 = vector.broadcast %cst_75 : f32 to vector<8x36xf32>
    %833 = arith.mulf %832, %209 : vector<8x36xf32>
    %834 = arith.addf %831, %833 : vector<8x36xf32>
    %cst_76 = arith.constant 8.000000e-01 : f32
    %835 = vector.broadcast %cst_76 : f32 to vector<8x36xf32>
    %836 = arith.mulf %835, %209 : vector<8x36xf32>
    %cst_77 = arith.constant 5.000000e+00 : f32
    %837 = vector.broadcast %cst_77 : f32 to vector<8x36xf32>
    %838 = arith.mulf %837, %829 : vector<8x36xf32>
    %839 = arith.addf %836, %838 : vector<8x36xf32>
    %840 = vector.extract_strided_slice %834 {offsets = [0, 0], sizes = [2, 36], strides = [1, 1]} : vector<8x36xf32> to vector<2x36xf32>
    %841 = tpu.concatenate %840, %840, %840, %840 in 0 : vector<2x36xf32>, vector<2x36xf32>, vector<2x36xf32>, vector<2x36xf32> -> vector<8x36xf32>
    %842 = vector.extract_strided_slice %834 {offsets = [2, 0], sizes = [2, 36], strides = [1, 1]} : vector<8x36xf32> to vector<2x36xf32>
    %843 = tpu.concatenate %842, %842, %842, %842 in 0 : vector<2x36xf32>, vector<2x36xf32>, vector<2x36xf32>, vector<2x36xf32> -> vector<8x36xf32>
    %844 = vector.extract_strided_slice %834 {offsets = [4, 0], sizes = [2, 36], strides = [1, 1]} : vector<8x36xf32> to vector<2x36xf32>
    %845 = tpu.concatenate %844, %844, %844, %844 in 0 : vector<2x36xf32>, vector<2x36xf32>, vector<2x36xf32>, vector<2x36xf32> -> vector<8x36xf32>
    %846 = vector.extract_strided_slice %834 {offsets = [6, 0], sizes = [2, 36], strides = [1, 1]} : vector<8x36xf32> to vector<2x36xf32>
    %847 = tpu.concatenate %846, %846, %846, %846 in 0 : vector<2x36xf32>, vector<2x36xf32>, vector<2x36xf32>, vector<2x36xf32> -> vector<8x36xf32>
    %cst_78 = arith.constant 0.000000e+00 : f32
    %848 = vector.broadcast %cst_78 : f32 to vector<8x22xf32>
    %849 = vector.extract_strided_slice %841 {offsets = [0, 0], sizes = [8, 22], strides = [1, 1]} : vector<8x36xf32> to vector<8x22xf32>
    %850 = vector.extract_strided_slice %650 {offsets = [0, 0], sizes = [8, 1], strides = [1, 1]} : vector<8x36xf32> to vector<8x1xf32>
    %851 = vector.broadcast %850 : vector<8x1xf32> to vector<8x22xf32>
    %852 = arith.mulf %849, %851 : vector<8x22xf32>
    %853 = arith.addf %848, %852 : vector<8x22xf32>
    %854 = vector.extract_strided_slice %843 {offsets = [0, 0], sizes = [8, 22], strides = [1, 1]} : vector<8x36xf32> to vector<8x22xf32>
    %855 = vector.extract_strided_slice %650 {offsets = [0, 1], sizes = [8, 1], strides = [1, 1]} : vector<8x36xf32> to vector<8x1xf32>
    %856 = vector.broadcast %855 : vector<8x1xf32> to vector<8x22xf32>
    %857 = arith.mulf %854, %856 : vector<8x22xf32>
    %858 = arith.addf %853, %857 : vector<8x22xf32>
    %859 = vector.extract_strided_slice %845 {offsets = [0, 0], sizes = [8, 22], strides = [1, 1]} : vector<8x36xf32> to vector<8x22xf32>
    %860 = vector.extract_strided_slice %650 {offsets = [0, 2], sizes = [8, 1], strides = [1, 1]} : vector<8x36xf32> to vector<8x1xf32>
    %861 = vector.broadcast %860 : vector<8x1xf32> to vector<8x22xf32>
    %862 = arith.mulf %859, %861 : vector<8x22xf32>
    %863 = arith.addf %858, %862 : vector<8x22xf32>
    %864 = vector.extract_strided_slice %847 {offsets = [0, 0], sizes = [8, 22], strides = [1, 1]} : vector<8x36xf32> to vector<8x22xf32>
    %865 = vector.extract_strided_slice %650 {offsets = [0, 3], sizes = [8, 1], strides = [1, 1]} : vector<8x36xf32> to vector<8x1xf32>
    %866 = vector.broadcast %865 : vector<8x1xf32> to vector<8x22xf32>
    %867 = arith.mulf %864, %866 : vector<8x22xf32>
    %868 = arith.addf %863, %867 : vector<8x22xf32>
    %869 = vector.extract_strided_slice %841 {offsets = [0, 1], sizes = [8, 22], strides = [1, 1]} : vector<8x36xf32> to vector<8x22xf32>
    %870 = vector.extract_strided_slice %650 {offsets = [0, 4], sizes = [8, 1], strides = [1, 1]} : vector<8x36xf32> to vector<8x1xf32>
    %871 = vector.broadcast %870 : vector<8x1xf32> to vector<8x22xf32>
    %872 = arith.mulf %869, %871 : vector<8x22xf32>
    %873 = arith.addf %868, %872 : vector<8x22xf32>
    %874 = vector.extract_strided_slice %843 {offsets = [0, 1], sizes = [8, 22], strides = [1, 1]} : vector<8x36xf32> to vector<8x22xf32>
    %875 = vector.extract_strided_slice %650 {offsets = [0, 5], sizes = [8, 1], strides = [1, 1]} : vector<8x36xf32> to vector<8x1xf32>
    %876 = vector.broadcast %875 : vector<8x1xf32> to vector<8x22xf32>
    %877 = arith.mulf %874, %876 : vector<8x22xf32>
    %878 = arith.addf %873, %877 : vector<8x22xf32>
    %879 = vector.extract_strided_slice %845 {offsets = [0, 1], sizes = [8, 22], strides = [1, 1]} : vector<8x36xf32> to vector<8x22xf32>
    %880 = vector.extract_strided_slice %650 {offsets = [0, 6], sizes = [8, 1], strides = [1, 1]} : vector<8x36xf32> to vector<8x1xf32>
    %881 = vector.broadcast %880 : vector<8x1xf32> to vector<8x22xf32>
    %882 = arith.mulf %879, %881 : vector<8x22xf32>
    %883 = arith.addf %878, %882 : vector<8x22xf32>
    %884 = vector.extract_strided_slice %847 {offsets = [0, 1], sizes = [8, 22], strides = [1, 1]} : vector<8x36xf32> to vector<8x22xf32>
    %885 = vector.extract_strided_slice %650 {offsets = [0, 7], sizes = [8, 1], strides = [1, 1]} : vector<8x36xf32> to vector<8x1xf32>
    %886 = vector.broadcast %885 : vector<8x1xf32> to vector<8x22xf32>
    %887 = arith.mulf %884, %886 : vector<8x22xf32>
    %888 = arith.addf %883, %887 : vector<8x22xf32>
    %889 = vector.extract_strided_slice %841 {offsets = [0, 2], sizes = [8, 22], strides = [1, 1]} : vector<8x36xf32> to vector<8x22xf32>
    %890 = vector.extract_strided_slice %650 {offsets = [0, 8], sizes = [8, 1], strides = [1, 1]} : vector<8x36xf32> to vector<8x1xf32>
    %891 = vector.broadcast %890 : vector<8x1xf32> to vector<8x22xf32>
    %892 = arith.mulf %889, %891 : vector<8x22xf32>
    %893 = arith.addf %888, %892 : vector<8x22xf32>
    %894 = vector.extract_strided_slice %843 {offsets = [0, 2], sizes = [8, 22], strides = [1, 1]} : vector<8x36xf32> to vector<8x22xf32>
    %895 = vector.extract_strided_slice %650 {offsets = [0, 9], sizes = [8, 1], strides = [1, 1]} : vector<8x36xf32> to vector<8x1xf32>
    %896 = vector.broadcast %895 : vector<8x1xf32> to vector<8x22xf32>
    %897 = arith.mulf %894, %896 : vector<8x22xf32>
    %898 = arith.addf %893, %897 : vector<8x22xf32>
    %899 = vector.extract_strided_slice %845 {offsets = [0, 2], sizes = [8, 22], strides = [1, 1]} : vector<8x36xf32> to vector<8x22xf32>
    %900 = vector.extract_strided_slice %650 {offsets = [0, 10], sizes = [8, 1], strides = [1, 1]} : vector<8x36xf32> to vector<8x1xf32>
    %901 = vector.broadcast %900 : vector<8x1xf32> to vector<8x22xf32>
    %902 = arith.mulf %899, %901 : vector<8x22xf32>
    %903 = arith.addf %898, %902 : vector<8x22xf32>
    %904 = vector.extract_strided_slice %847 {offsets = [0, 2], sizes = [8, 22], strides = [1, 1]} : vector<8x36xf32> to vector<8x22xf32>
    %905 = vector.extract_strided_slice %650 {offsets = [0, 11], sizes = [8, 1], strides = [1, 1]} : vector<8x36xf32> to vector<8x1xf32>
    %906 = vector.broadcast %905 : vector<8x1xf32> to vector<8x22xf32>
    %907 = arith.mulf %904, %906 : vector<8x22xf32>
    %908 = arith.addf %903, %907 : vector<8x22xf32>
    %909 = vector.extract_strided_slice %841 {offsets = [0, 6], sizes = [8, 22], strides = [1, 1]} : vector<8x36xf32> to vector<8x22xf32>
    %910 = vector.extract_strided_slice %650 {offsets = [0, 12], sizes = [8, 1], strides = [1, 1]} : vector<8x36xf32> to vector<8x1xf32>
    %911 = vector.broadcast %910 : vector<8x1xf32> to vector<8x22xf32>
    %912 = arith.mulf %909, %911 : vector<8x22xf32>
    %913 = arith.addf %908, %912 : vector<8x22xf32>
    %914 = vector.extract_strided_slice %843 {offsets = [0, 6], sizes = [8, 22], strides = [1, 1]} : vector<8x36xf32> to vector<8x22xf32>
    %915 = vector.extract_strided_slice %650 {offsets = [0, 13], sizes = [8, 1], strides = [1, 1]} : vector<8x36xf32> to vector<8x1xf32>
    %916 = vector.broadcast %915 : vector<8x1xf32> to vector<8x22xf32>
    %917 = arith.mulf %914, %916 : vector<8x22xf32>
    %918 = arith.addf %913, %917 : vector<8x22xf32>
    %919 = vector.extract_strided_slice %845 {offsets = [0, 6], sizes = [8, 22], strides = [1, 1]} : vector<8x36xf32> to vector<8x22xf32>
    %920 = vector.extract_strided_slice %650 {offsets = [0, 14], sizes = [8, 1], strides = [1, 1]} : vector<8x36xf32> to vector<8x1xf32>
    %921 = vector.broadcast %920 : vector<8x1xf32> to vector<8x22xf32>
    %922 = arith.mulf %919, %921 : vector<8x22xf32>
    %923 = arith.addf %918, %922 : vector<8x22xf32>
    %924 = vector.extract_strided_slice %847 {offsets = [0, 6], sizes = [8, 22], strides = [1, 1]} : vector<8x36xf32> to vector<8x22xf32>
    %925 = vector.extract_strided_slice %650 {offsets = [0, 15], sizes = [8, 1], strides = [1, 1]} : vector<8x36xf32> to vector<8x1xf32>
    %926 = vector.broadcast %925 : vector<8x1xf32> to vector<8x22xf32>
    %927 = arith.mulf %924, %926 : vector<8x22xf32>
    %928 = arith.addf %923, %927 : vector<8x22xf32>
    %929 = vector.extract_strided_slice %841 {offsets = [0, 7], sizes = [8, 22], strides = [1, 1]} : vector<8x36xf32> to vector<8x22xf32>
    %930 = vector.extract_strided_slice %650 {offsets = [0, 16], sizes = [8, 1], strides = [1, 1]} : vector<8x36xf32> to vector<8x1xf32>
    %931 = vector.broadcast %930 : vector<8x1xf32> to vector<8x22xf32>
    %932 = arith.mulf %929, %931 : vector<8x22xf32>
    %933 = arith.addf %928, %932 : vector<8x22xf32>
    %934 = vector.extract_strided_slice %843 {offsets = [0, 7], sizes = [8, 22], strides = [1, 1]} : vector<8x36xf32> to vector<8x22xf32>
    %935 = vector.extract_strided_slice %650 {offsets = [0, 17], sizes = [8, 1], strides = [1, 1]} : vector<8x36xf32> to vector<8x1xf32>
    %936 = vector.broadcast %935 : vector<8x1xf32> to vector<8x22xf32>
    %937 = arith.mulf %934, %936 : vector<8x22xf32>
    %938 = arith.addf %933, %937 : vector<8x22xf32>
    %939 = vector.extract_strided_slice %845 {offsets = [0, 7], sizes = [8, 22], strides = [1, 1]} : vector<8x36xf32> to vector<8x22xf32>
    %940 = vector.extract_strided_slice %650 {offsets = [0, 18], sizes = [8, 1], strides = [1, 1]} : vector<8x36xf32> to vector<8x1xf32>
    %941 = vector.broadcast %940 : vector<8x1xf32> to vector<8x22xf32>
    %942 = arith.mulf %939, %941 : vector<8x22xf32>
    %943 = arith.addf %938, %942 : vector<8x22xf32>
    %944 = vector.extract_strided_slice %847 {offsets = [0, 7], sizes = [8, 22], strides = [1, 1]} : vector<8x36xf32> to vector<8x22xf32>
    %945 = vector.extract_strided_slice %650 {offsets = [0, 19], sizes = [8, 1], strides = [1, 1]} : vector<8x36xf32> to vector<8x1xf32>
    %946 = vector.broadcast %945 : vector<8x1xf32> to vector<8x22xf32>
    %947 = arith.mulf %944, %946 : vector<8x22xf32>
    %948 = arith.addf %943, %947 : vector<8x22xf32>
    %949 = vector.extract_strided_slice %841 {offsets = [0, 8], sizes = [8, 22], strides = [1, 1]} : vector<8x36xf32> to vector<8x22xf32>
    %950 = vector.extract_strided_slice %650 {offsets = [0, 20], sizes = [8, 1], strides = [1, 1]} : vector<8x36xf32> to vector<8x1xf32>
    %951 = vector.broadcast %950 : vector<8x1xf32> to vector<8x22xf32>
    %952 = arith.mulf %949, %951 : vector<8x22xf32>
    %953 = arith.addf %948, %952 : vector<8x22xf32>
    %954 = vector.extract_strided_slice %843 {offsets = [0, 8], sizes = [8, 22], strides = [1, 1]} : vector<8x36xf32> to vector<8x22xf32>
    %955 = vector.extract_strided_slice %650 {offsets = [0, 21], sizes = [8, 1], strides = [1, 1]} : vector<8x36xf32> to vector<8x1xf32>
    %956 = vector.broadcast %955 : vector<8x1xf32> to vector<8x22xf32>
    %957 = arith.mulf %954, %956 : vector<8x22xf32>
    %958 = arith.addf %953, %957 : vector<8x22xf32>
    %959 = vector.extract_strided_slice %845 {offsets = [0, 8], sizes = [8, 22], strides = [1, 1]} : vector<8x36xf32> to vector<8x22xf32>
    %960 = vector.extract_strided_slice %650 {offsets = [0, 22], sizes = [8, 1], strides = [1, 1]} : vector<8x36xf32> to vector<8x1xf32>
    %961 = vector.broadcast %960 : vector<8x1xf32> to vector<8x22xf32>
    %962 = arith.mulf %959, %961 : vector<8x22xf32>
    %963 = arith.addf %958, %962 : vector<8x22xf32>
    %964 = vector.extract_strided_slice %847 {offsets = [0, 8], sizes = [8, 22], strides = [1, 1]} : vector<8x36xf32> to vector<8x22xf32>
    %965 = vector.extract_strided_slice %650 {offsets = [0, 23], sizes = [8, 1], strides = [1, 1]} : vector<8x36xf32> to vector<8x1xf32>
    %966 = vector.broadcast %965 : vector<8x1xf32> to vector<8x22xf32>
    %967 = arith.mulf %964, %966 : vector<8x22xf32>
    %968 = arith.addf %963, %967 : vector<8x22xf32>
    %969 = vector.extract_strided_slice %841 {offsets = [0, 12], sizes = [8, 22], strides = [1, 1]} : vector<8x36xf32> to vector<8x22xf32>
    %970 = vector.extract_strided_slice %650 {offsets = [0, 24], sizes = [8, 1], strides = [1, 1]} : vector<8x36xf32> to vector<8x1xf32>
    %971 = vector.broadcast %970 : vector<8x1xf32> to vector<8x22xf32>
    %972 = arith.mulf %969, %971 : vector<8x22xf32>
    %973 = arith.addf %968, %972 : vector<8x22xf32>
    %974 = vector.extract_strided_slice %843 {offsets = [0, 12], sizes = [8, 22], strides = [1, 1]} : vector<8x36xf32> to vector<8x22xf32>
    %975 = vector.extract_strided_slice %650 {offsets = [0, 25], sizes = [8, 1], strides = [1, 1]} : vector<8x36xf32> to vector<8x1xf32>
    %976 = vector.broadcast %975 : vector<8x1xf32> to vector<8x22xf32>
    %977 = arith.mulf %974, %976 : vector<8x22xf32>
    %978 = arith.addf %973, %977 : vector<8x22xf32>
    %979 = vector.extract_strided_slice %845 {offsets = [0, 12], sizes = [8, 22], strides = [1, 1]} : vector<8x36xf32> to vector<8x22xf32>
    %980 = vector.extract_strided_slice %650 {offsets = [0, 26], sizes = [8, 1], strides = [1, 1]} : vector<8x36xf32> to vector<8x1xf32>
    %981 = vector.broadcast %980 : vector<8x1xf32> to vector<8x22xf32>
    %982 = arith.mulf %979, %981 : vector<8x22xf32>
    %983 = arith.addf %978, %982 : vector<8x22xf32>
    %984 = vector.extract_strided_slice %847 {offsets = [0, 12], sizes = [8, 22], strides = [1, 1]} : vector<8x36xf32> to vector<8x22xf32>
    %985 = vector.extract_strided_slice %650 {offsets = [0, 27], sizes = [8, 1], strides = [1, 1]} : vector<8x36xf32> to vector<8x1xf32>
    %986 = vector.broadcast %985 : vector<8x1xf32> to vector<8x22xf32>
    %987 = arith.mulf %984, %986 : vector<8x22xf32>
    %988 = arith.addf %983, %987 : vector<8x22xf32>
    %989 = vector.extract_strided_slice %841 {offsets = [0, 13], sizes = [8, 22], strides = [1, 1]} : vector<8x36xf32> to vector<8x22xf32>
    %990 = vector.extract_strided_slice %650 {offsets = [0, 28], sizes = [8, 1], strides = [1, 1]} : vector<8x36xf32> to vector<8x1xf32>
    %991 = vector.broadcast %990 : vector<8x1xf32> to vector<8x22xf32>
    %992 = arith.mulf %989, %991 : vector<8x22xf32>
    %993 = arith.addf %988, %992 : vector<8x22xf32>
    %994 = vector.extract_strided_slice %843 {offsets = [0, 13], sizes = [8, 22], strides = [1, 1]} : vector<8x36xf32> to vector<8x22xf32>
    %995 = vector.extract_strided_slice %650 {offsets = [0, 29], sizes = [8, 1], strides = [1, 1]} : vector<8x36xf32> to vector<8x1xf32>
    %996 = vector.broadcast %995 : vector<8x1xf32> to vector<8x22xf32>
    %997 = arith.mulf %994, %996 : vector<8x22xf32>
    %998 = arith.addf %993, %997 : vector<8x22xf32>
    %999 = vector.extract_strided_slice %845 {offsets = [0, 13], sizes = [8, 22], strides = [1, 1]} : vector<8x36xf32> to vector<8x22xf32>
    %1000 = vector.extract_strided_slice %650 {offsets = [0, 30], sizes = [8, 1], strides = [1, 1]} : vector<8x36xf32> to vector<8x1xf32>
    %1001 = vector.broadcast %1000 : vector<8x1xf32> to vector<8x22xf32>
    %1002 = arith.mulf %999, %1001 : vector<8x22xf32>
    %1003 = arith.addf %998, %1002 : vector<8x22xf32>
    %1004 = vector.extract_strided_slice %847 {offsets = [0, 13], sizes = [8, 22], strides = [1, 1]} : vector<8x36xf32> to vector<8x22xf32>
    %1005 = vector.extract_strided_slice %650 {offsets = [0, 31], sizes = [8, 1], strides = [1, 1]} : vector<8x36xf32> to vector<8x1xf32>
    %1006 = vector.broadcast %1005 : vector<8x1xf32> to vector<8x22xf32>
    %1007 = arith.mulf %1004, %1006 : vector<8x22xf32>
    %1008 = arith.addf %1003, %1007 : vector<8x22xf32>
    %1009 = vector.extract_strided_slice %841 {offsets = [0, 14], sizes = [8, 22], strides = [1, 1]} : vector<8x36xf32> to vector<8x22xf32>
    %1010 = vector.extract_strided_slice %650 {offsets = [0, 32], sizes = [8, 1], strides = [1, 1]} : vector<8x36xf32> to vector<8x1xf32>
    %1011 = vector.broadcast %1010 : vector<8x1xf32> to vector<8x22xf32>
    %1012 = arith.mulf %1009, %1011 : vector<8x22xf32>
    %1013 = arith.addf %1008, %1012 : vector<8x22xf32>
    %1014 = vector.extract_strided_slice %843 {offsets = [0, 14], sizes = [8, 22], strides = [1, 1]} : vector<8x36xf32> to vector<8x22xf32>
    %1015 = vector.extract_strided_slice %650 {offsets = [0, 33], sizes = [8, 1], strides = [1, 1]} : vector<8x36xf32> to vector<8x1xf32>
    %1016 = vector.broadcast %1015 : vector<8x1xf32> to vector<8x22xf32>
    %1017 = arith.mulf %1014, %1016 : vector<8x22xf32>
    %1018 = arith.addf %1013, %1017 : vector<8x22xf32>
    %1019 = vector.extract_strided_slice %845 {offsets = [0, 14], sizes = [8, 22], strides = [1, 1]} : vector<8x36xf32> to vector<8x22xf32>
    %1020 = vector.extract_strided_slice %650 {offsets = [0, 34], sizes = [8, 1], strides = [1, 1]} : vector<8x36xf32> to vector<8x1xf32>
    %1021 = vector.broadcast %1020 : vector<8x1xf32> to vector<8x22xf32>
    %1022 = arith.mulf %1019, %1021 : vector<8x22xf32>
    %1023 = arith.addf %1018, %1022 : vector<8x22xf32>
    %1024 = vector.extract_strided_slice %847 {offsets = [0, 14], sizes = [8, 22], strides = [1, 1]} : vector<8x36xf32> to vector<8x22xf32>
    %1025 = vector.extract_strided_slice %650 {offsets = [0, 35], sizes = [8, 1], strides = [1, 1]} : vector<8x36xf32> to vector<8x1xf32>
    %1026 = vector.broadcast %1025 : vector<8x1xf32> to vector<8x22xf32>
    %1027 = arith.mulf %1024, %1026 : vector<8x22xf32>
    %1028 = arith.addf %1023, %1027 : vector<8x22xf32>
    %cst_79 = arith.constant 7.500000e-01 : f32
    %1029 = vector.broadcast %cst_79 : f32 to vector<8x22xf32>
    %1030 = arith.mulf %1029, %409 : vector<8x22xf32>
    %1031 = arith.subf %1028, %1030 : vector<8x22xf32>
    %cst_80 = arith.constant 1.000000e+00 : f32
    %1032 = vector.broadcast %cst_80 : f32 to vector<8x22xf32>
    %1033 = arith.cmpf oge, %1031, %1032 : vector<8x22xf32>
    %cst_81 = arith.constant 1.000000e+00 : f32
    %cst_82 = arith.constant 0.000000e+00 : f32
    %1034 = vector.broadcast %cst_81 : f32 to vector<8x22xf32>
    %1035 = vector.broadcast %cst_82 : f32 to vector<8x22xf32>
    %1036 = arith.select %1033, %1034, %1035 : vector<8x22xi1>, vector<8x22xf32>
    %cst_83 = arith.constant 4.000000e+00 : f32
    %1037 = vector.broadcast %cst_83 : f32 to vector<8x22xf32>
    %1038 = arith.mulf %1037, %1036 : vector<8x22xf32>
    %1039 = arith.addf %1030, %1038 : vector<8x22xf32>
    %cst_84 = arith.constant 0.000000e+00 : f32
    %1040 = vector.broadcast %cst_84 : f32 to vector<8x7xf32>
    %1041 = vector.extract_strided_slice %1036 {offsets = [0, 0], sizes = [8, 4], strides = [1, 1]} : vector<8x22xf32> to vector<8x4xf32>
    %cst_85 = arith.constant 0.000000e+00 : f32
    %1042 = vector.broadcast %cst_85 : f32 to vector<8x2xf32>
    %1043 = vector.extract_strided_slice %1036 {offsets = [0, 6], sizes = [8, 4], strides = [1, 1]} : vector<8x22xf32> to vector<8x4xf32>
    %cst_86 = arith.constant 0.000000e+00 : f32
    %1044 = vector.broadcast %cst_86 : f32 to vector<8x2xf32>
    %1045 = vector.extract_strided_slice %1036 {offsets = [0, 12], sizes = [8, 4], strides = [1, 1]} : vector<8x22xf32> to vector<8x4xf32>
    %cst_87 = arith.constant 0.000000e+00 : f32
    %1046 = vector.broadcast %cst_87 : f32 to vector<8x2xf32>
    %1047 = vector.extract_strided_slice %1036 {offsets = [0, 18], sizes = [8, 4], strides = [1, 1]} : vector<8x22xf32> to vector<8x4xf32>
    %cst_88 = arith.constant 0.000000e+00 : f32
    %1048 = vector.broadcast %cst_88 : f32 to vector<8x7xf32>
    %1049 = tpu.concatenate %1040, %1041, %1042, %1043, %1044, %1045, %1046, %1047, %1048 in 1 : vector<8x7xf32>, vector<8x4xf32>, vector<8x2xf32>, vector<8x4xf32>, vector<8x2xf32>, vector<8x4xf32>, vector<8x2xf32>, vector<8x4xf32>, vector<8x7xf32> -> vector<8x36xf32>
    %cst_89 = arith.constant 0.899999976 : f32
    %1050 = vector.broadcast %cst_89 : f32 to vector<8x36xf32>
    %1051 = arith.mulf %1050, %424 : vector<8x36xf32>
    %cst_90 = arith.constant 1.000000e+01 : f32
    %1052 = vector.broadcast %cst_90 : f32 to vector<8x36xf32>
    %1053 = arith.mulf %1052, %429 : vector<8x36xf32>
    %1054 = arith.addf %1051, %1053 : vector<8x36xf32>
    %cst_91 = arith.constant 8.000000e-01 : f32
    %1055 = vector.broadcast %cst_91 : f32 to vector<8x36xf32>
    %1056 = arith.mulf %1055, %429 : vector<8x36xf32>
    %cst_92 = arith.constant 5.000000e+00 : f32
    %1057 = vector.broadcast %cst_92 : f32 to vector<8x36xf32>
    %1058 = arith.mulf %1057, %1049 : vector<8x36xf32>
    %1059 = arith.addf %1056, %1058 : vector<8x36xf32>
    %1060 = vector.extract_strided_slice %1054 {offsets = [0, 0], sizes = [2, 36], strides = [1, 1]} : vector<8x36xf32> to vector<2x36xf32>
    %1061 = tpu.concatenate %1060, %1060, %1060, %1060 in 0 : vector<2x36xf32>, vector<2x36xf32>, vector<2x36xf32>, vector<2x36xf32> -> vector<8x36xf32>
    %1062 = vector.extract_strided_slice %1054 {offsets = [2, 0], sizes = [2, 36], strides = [1, 1]} : vector<8x36xf32> to vector<2x36xf32>
    %1063 = tpu.concatenate %1062, %1062, %1062, %1062 in 0 : vector<2x36xf32>, vector<2x36xf32>, vector<2x36xf32>, vector<2x36xf32> -> vector<8x36xf32>
    %1064 = vector.extract_strided_slice %1054 {offsets = [4, 0], sizes = [2, 36], strides = [1, 1]} : vector<8x36xf32> to vector<2x36xf32>
    %1065 = tpu.concatenate %1064, %1064, %1064, %1064 in 0 : vector<2x36xf32>, vector<2x36xf32>, vector<2x36xf32>, vector<2x36xf32> -> vector<8x36xf32>
    %1066 = vector.extract_strided_slice %1054 {offsets = [6, 0], sizes = [2, 36], strides = [1, 1]} : vector<8x36xf32> to vector<2x36xf32>
    %1067 = tpu.concatenate %1066, %1066, %1066, %1066 in 0 : vector<2x36xf32>, vector<2x36xf32>, vector<2x36xf32>, vector<2x36xf32> -> vector<8x36xf32>
    %cst_93 = arith.constant 0.000000e+00 : f32
    %1068 = vector.broadcast %cst_93 : f32 to vector<8x22xf32>
    %1069 = vector.extract_strided_slice %1061 {offsets = [0, 0], sizes = [8, 22], strides = [1, 1]} : vector<8x36xf32> to vector<8x22xf32>
    %1070 = vector.extract_strided_slice %651 {offsets = [0, 0], sizes = [8, 1], strides = [1, 1]} : vector<8x36xf32> to vector<8x1xf32>
    %1071 = vector.broadcast %1070 : vector<8x1xf32> to vector<8x22xf32>
    %1072 = arith.mulf %1069, %1071 : vector<8x22xf32>
    %1073 = arith.addf %1068, %1072 : vector<8x22xf32>
    %1074 = vector.extract_strided_slice %1063 {offsets = [0, 0], sizes = [8, 22], strides = [1, 1]} : vector<8x36xf32> to vector<8x22xf32>
    %1075 = vector.extract_strided_slice %651 {offsets = [0, 1], sizes = [8, 1], strides = [1, 1]} : vector<8x36xf32> to vector<8x1xf32>
    %1076 = vector.broadcast %1075 : vector<8x1xf32> to vector<8x22xf32>
    %1077 = arith.mulf %1074, %1076 : vector<8x22xf32>
    %1078 = arith.addf %1073, %1077 : vector<8x22xf32>
    %1079 = vector.extract_strided_slice %1065 {offsets = [0, 0], sizes = [8, 22], strides = [1, 1]} : vector<8x36xf32> to vector<8x22xf32>
    %1080 = vector.extract_strided_slice %651 {offsets = [0, 2], sizes = [8, 1], strides = [1, 1]} : vector<8x36xf32> to vector<8x1xf32>
    %1081 = vector.broadcast %1080 : vector<8x1xf32> to vector<8x22xf32>
    %1082 = arith.mulf %1079, %1081 : vector<8x22xf32>
    %1083 = arith.addf %1078, %1082 : vector<8x22xf32>
    %1084 = vector.extract_strided_slice %1067 {offsets = [0, 0], sizes = [8, 22], strides = [1, 1]} : vector<8x36xf32> to vector<8x22xf32>
    %1085 = vector.extract_strided_slice %651 {offsets = [0, 3], sizes = [8, 1], strides = [1, 1]} : vector<8x36xf32> to vector<8x1xf32>
    %1086 = vector.broadcast %1085 : vector<8x1xf32> to vector<8x22xf32>
    %1087 = arith.mulf %1084, %1086 : vector<8x22xf32>
    %1088 = arith.addf %1083, %1087 : vector<8x22xf32>
    %1089 = vector.extract_strided_slice %1061 {offsets = [0, 1], sizes = [8, 22], strides = [1, 1]} : vector<8x36xf32> to vector<8x22xf32>
    %1090 = vector.extract_strided_slice %651 {offsets = [0, 4], sizes = [8, 1], strides = [1, 1]} : vector<8x36xf32> to vector<8x1xf32>
    %1091 = vector.broadcast %1090 : vector<8x1xf32> to vector<8x22xf32>
    %1092 = arith.mulf %1089, %1091 : vector<8x22xf32>
    %1093 = arith.addf %1088, %1092 : vector<8x22xf32>
    %1094 = vector.extract_strided_slice %1063 {offsets = [0, 1], sizes = [8, 22], strides = [1, 1]} : vector<8x36xf32> to vector<8x22xf32>
    %1095 = vector.extract_strided_slice %651 {offsets = [0, 5], sizes = [8, 1], strides = [1, 1]} : vector<8x36xf32> to vector<8x1xf32>
    %1096 = vector.broadcast %1095 : vector<8x1xf32> to vector<8x22xf32>
    %1097 = arith.mulf %1094, %1096 : vector<8x22xf32>
    %1098 = arith.addf %1093, %1097 : vector<8x22xf32>
    %1099 = vector.extract_strided_slice %1065 {offsets = [0, 1], sizes = [8, 22], strides = [1, 1]} : vector<8x36xf32> to vector<8x22xf32>
    %1100 = vector.extract_strided_slice %651 {offsets = [0, 6], sizes = [8, 1], strides = [1, 1]} : vector<8x36xf32> to vector<8x1xf32>
    %1101 = vector.broadcast %1100 : vector<8x1xf32> to vector<8x22xf32>
    %1102 = arith.mulf %1099, %1101 : vector<8x22xf32>
    %1103 = arith.addf %1098, %1102 : vector<8x22xf32>
    %1104 = vector.extract_strided_slice %1067 {offsets = [0, 1], sizes = [8, 22], strides = [1, 1]} : vector<8x36xf32> to vector<8x22xf32>
    %1105 = vector.extract_strided_slice %651 {offsets = [0, 7], sizes = [8, 1], strides = [1, 1]} : vector<8x36xf32> to vector<8x1xf32>
    %1106 = vector.broadcast %1105 : vector<8x1xf32> to vector<8x22xf32>
    %1107 = arith.mulf %1104, %1106 : vector<8x22xf32>
    %1108 = arith.addf %1103, %1107 : vector<8x22xf32>
    %1109 = vector.extract_strided_slice %1061 {offsets = [0, 2], sizes = [8, 22], strides = [1, 1]} : vector<8x36xf32> to vector<8x22xf32>
    %1110 = vector.extract_strided_slice %651 {offsets = [0, 8], sizes = [8, 1], strides = [1, 1]} : vector<8x36xf32> to vector<8x1xf32>
    %1111 = vector.broadcast %1110 : vector<8x1xf32> to vector<8x22xf32>
    %1112 = arith.mulf %1109, %1111 : vector<8x22xf32>
    %1113 = arith.addf %1108, %1112 : vector<8x22xf32>
    %1114 = vector.extract_strided_slice %1063 {offsets = [0, 2], sizes = [8, 22], strides = [1, 1]} : vector<8x36xf32> to vector<8x22xf32>
    %1115 = vector.extract_strided_slice %651 {offsets = [0, 9], sizes = [8, 1], strides = [1, 1]} : vector<8x36xf32> to vector<8x1xf32>
    %1116 = vector.broadcast %1115 : vector<8x1xf32> to vector<8x22xf32>
    %1117 = arith.mulf %1114, %1116 : vector<8x22xf32>
    %1118 = arith.addf %1113, %1117 : vector<8x22xf32>
    %1119 = vector.extract_strided_slice %1065 {offsets = [0, 2], sizes = [8, 22], strides = [1, 1]} : vector<8x36xf32> to vector<8x22xf32>
    %1120 = vector.extract_strided_slice %651 {offsets = [0, 10], sizes = [8, 1], strides = [1, 1]} : vector<8x36xf32> to vector<8x1xf32>
    %1121 = vector.broadcast %1120 : vector<8x1xf32> to vector<8x22xf32>
    %1122 = arith.mulf %1119, %1121 : vector<8x22xf32>
    %1123 = arith.addf %1118, %1122 : vector<8x22xf32>
    %1124 = vector.extract_strided_slice %1067 {offsets = [0, 2], sizes = [8, 22], strides = [1, 1]} : vector<8x36xf32> to vector<8x22xf32>
    %1125 = vector.extract_strided_slice %651 {offsets = [0, 11], sizes = [8, 1], strides = [1, 1]} : vector<8x36xf32> to vector<8x1xf32>
    %1126 = vector.broadcast %1125 : vector<8x1xf32> to vector<8x22xf32>
    %1127 = arith.mulf %1124, %1126 : vector<8x22xf32>
    %1128 = arith.addf %1123, %1127 : vector<8x22xf32>
    %1129 = vector.extract_strided_slice %1061 {offsets = [0, 6], sizes = [8, 22], strides = [1, 1]} : vector<8x36xf32> to vector<8x22xf32>
    %1130 = vector.extract_strided_slice %651 {offsets = [0, 12], sizes = [8, 1], strides = [1, 1]} : vector<8x36xf32> to vector<8x1xf32>
    %1131 = vector.broadcast %1130 : vector<8x1xf32> to vector<8x22xf32>
    %1132 = arith.mulf %1129, %1131 : vector<8x22xf32>
    %1133 = arith.addf %1128, %1132 : vector<8x22xf32>
    %1134 = vector.extract_strided_slice %1063 {offsets = [0, 6], sizes = [8, 22], strides = [1, 1]} : vector<8x36xf32> to vector<8x22xf32>
    %1135 = vector.extract_strided_slice %651 {offsets = [0, 13], sizes = [8, 1], strides = [1, 1]} : vector<8x36xf32> to vector<8x1xf32>
    %1136 = vector.broadcast %1135 : vector<8x1xf32> to vector<8x22xf32>
    %1137 = arith.mulf %1134, %1136 : vector<8x22xf32>
    %1138 = arith.addf %1133, %1137 : vector<8x22xf32>
    %1139 = vector.extract_strided_slice %1065 {offsets = [0, 6], sizes = [8, 22], strides = [1, 1]} : vector<8x36xf32> to vector<8x22xf32>
    %1140 = vector.extract_strided_slice %651 {offsets = [0, 14], sizes = [8, 1], strides = [1, 1]} : vector<8x36xf32> to vector<8x1xf32>
    %1141 = vector.broadcast %1140 : vector<8x1xf32> to vector<8x22xf32>
    %1142 = arith.mulf %1139, %1141 : vector<8x22xf32>
    %1143 = arith.addf %1138, %1142 : vector<8x22xf32>
    %1144 = vector.extract_strided_slice %1067 {offsets = [0, 6], sizes = [8, 22], strides = [1, 1]} : vector<8x36xf32> to vector<8x22xf32>
    %1145 = vector.extract_strided_slice %651 {offsets = [0, 15], sizes = [8, 1], strides = [1, 1]} : vector<8x36xf32> to vector<8x1xf32>
    %1146 = vector.broadcast %1145 : vector<8x1xf32> to vector<8x22xf32>
    %1147 = arith.mulf %1144, %1146 : vector<8x22xf32>
    %1148 = arith.addf %1143, %1147 : vector<8x22xf32>
    %1149 = vector.extract_strided_slice %1061 {offsets = [0, 7], sizes = [8, 22], strides = [1, 1]} : vector<8x36xf32> to vector<8x22xf32>
    %1150 = vector.extract_strided_slice %651 {offsets = [0, 16], sizes = [8, 1], strides = [1, 1]} : vector<8x36xf32> to vector<8x1xf32>
    %1151 = vector.broadcast %1150 : vector<8x1xf32> to vector<8x22xf32>
    %1152 = arith.mulf %1149, %1151 : vector<8x22xf32>
    %1153 = arith.addf %1148, %1152 : vector<8x22xf32>
    %1154 = vector.extract_strided_slice %1063 {offsets = [0, 7], sizes = [8, 22], strides = [1, 1]} : vector<8x36xf32> to vector<8x22xf32>
    %1155 = vector.extract_strided_slice %651 {offsets = [0, 17], sizes = [8, 1], strides = [1, 1]} : vector<8x36xf32> to vector<8x1xf32>
    %1156 = vector.broadcast %1155 : vector<8x1xf32> to vector<8x22xf32>
    %1157 = arith.mulf %1154, %1156 : vector<8x22xf32>
    %1158 = arith.addf %1153, %1157 : vector<8x22xf32>
    %1159 = vector.extract_strided_slice %1065 {offsets = [0, 7], sizes = [8, 22], strides = [1, 1]} : vector<8x36xf32> to vector<8x22xf32>
    %1160 = vector.extract_strided_slice %651 {offsets = [0, 18], sizes = [8, 1], strides = [1, 1]} : vector<8x36xf32> to vector<8x1xf32>
    %1161 = vector.broadcast %1160 : vector<8x1xf32> to vector<8x22xf32>
    %1162 = arith.mulf %1159, %1161 : vector<8x22xf32>
    %1163 = arith.addf %1158, %1162 : vector<8x22xf32>
    %1164 = vector.extract_strided_slice %1067 {offsets = [0, 7], sizes = [8, 22], strides = [1, 1]} : vector<8x36xf32> to vector<8x22xf32>
    %1165 = vector.extract_strided_slice %651 {offsets = [0, 19], sizes = [8, 1], strides = [1, 1]} : vector<8x36xf32> to vector<8x1xf32>
    %1166 = vector.broadcast %1165 : vector<8x1xf32> to vector<8x22xf32>
    %1167 = arith.mulf %1164, %1166 : vector<8x22xf32>
    %1168 = arith.addf %1163, %1167 : vector<8x22xf32>
    %1169 = vector.extract_strided_slice %1061 {offsets = [0, 8], sizes = [8, 22], strides = [1, 1]} : vector<8x36xf32> to vector<8x22xf32>
    %1170 = vector.extract_strided_slice %651 {offsets = [0, 20], sizes = [8, 1], strides = [1, 1]} : vector<8x36xf32> to vector<8x1xf32>
    %1171 = vector.broadcast %1170 : vector<8x1xf32> to vector<8x22xf32>
    %1172 = arith.mulf %1169, %1171 : vector<8x22xf32>
    %1173 = arith.addf %1168, %1172 : vector<8x22xf32>
    %1174 = vector.extract_strided_slice %1063 {offsets = [0, 8], sizes = [8, 22], strides = [1, 1]} : vector<8x36xf32> to vector<8x22xf32>
    %1175 = vector.extract_strided_slice %651 {offsets = [0, 21], sizes = [8, 1], strides = [1, 1]} : vector<8x36xf32> to vector<8x1xf32>
    %1176 = vector.broadcast %1175 : vector<8x1xf32> to vector<8x22xf32>
    %1177 = arith.mulf %1174, %1176 : vector<8x22xf32>
    %1178 = arith.addf %1173, %1177 : vector<8x22xf32>
    %1179 = vector.extract_strided_slice %1065 {offsets = [0, 8], sizes = [8, 22], strides = [1, 1]} : vector<8x36xf32> to vector<8x22xf32>
    %1180 = vector.extract_strided_slice %651 {offsets = [0, 22], sizes = [8, 1], strides = [1, 1]} : vector<8x36xf32> to vector<8x1xf32>
    %1181 = vector.broadcast %1180 : vector<8x1xf32> to vector<8x22xf32>
    %1182 = arith.mulf %1179, %1181 : vector<8x22xf32>
    %1183 = arith.addf %1178, %1182 : vector<8x22xf32>
    %1184 = vector.extract_strided_slice %1067 {offsets = [0, 8], sizes = [8, 22], strides = [1, 1]} : vector<8x36xf32> to vector<8x22xf32>
    %1185 = vector.extract_strided_slice %651 {offsets = [0, 23], sizes = [8, 1], strides = [1, 1]} : vector<8x36xf32> to vector<8x1xf32>
    %1186 = vector.broadcast %1185 : vector<8x1xf32> to vector<8x22xf32>
    %1187 = arith.mulf %1184, %1186 : vector<8x22xf32>
    %1188 = arith.addf %1183, %1187 : vector<8x22xf32>
    %1189 = vector.extract_strided_slice %1061 {offsets = [0, 12], sizes = [8, 22], strides = [1, 1]} : vector<8x36xf32> to vector<8x22xf32>
    %1190 = vector.extract_strided_slice %651 {offsets = [0, 24], sizes = [8, 1], strides = [1, 1]} : vector<8x36xf32> to vector<8x1xf32>
    %1191 = vector.broadcast %1190 : vector<8x1xf32> to vector<8x22xf32>
    %1192 = arith.mulf %1189, %1191 : vector<8x22xf32>
    %1193 = arith.addf %1188, %1192 : vector<8x22xf32>
    %1194 = vector.extract_strided_slice %1063 {offsets = [0, 12], sizes = [8, 22], strides = [1, 1]} : vector<8x36xf32> to vector<8x22xf32>
    %1195 = vector.extract_strided_slice %651 {offsets = [0, 25], sizes = [8, 1], strides = [1, 1]} : vector<8x36xf32> to vector<8x1xf32>
    %1196 = vector.broadcast %1195 : vector<8x1xf32> to vector<8x22xf32>
    %1197 = arith.mulf %1194, %1196 : vector<8x22xf32>
    %1198 = arith.addf %1193, %1197 : vector<8x22xf32>
    %1199 = vector.extract_strided_slice %1065 {offsets = [0, 12], sizes = [8, 22], strides = [1, 1]} : vector<8x36xf32> to vector<8x22xf32>
    %1200 = vector.extract_strided_slice %651 {offsets = [0, 26], sizes = [8, 1], strides = [1, 1]} : vector<8x36xf32> to vector<8x1xf32>
    %1201 = vector.broadcast %1200 : vector<8x1xf32> to vector<8x22xf32>
    %1202 = arith.mulf %1199, %1201 : vector<8x22xf32>
    %1203 = arith.addf %1198, %1202 : vector<8x22xf32>
    %1204 = vector.extract_strided_slice %1067 {offsets = [0, 12], sizes = [8, 22], strides = [1, 1]} : vector<8x36xf32> to vector<8x22xf32>
    %1205 = vector.extract_strided_slice %651 {offsets = [0, 27], sizes = [8, 1], strides = [1, 1]} : vector<8x36xf32> to vector<8x1xf32>
    %1206 = vector.broadcast %1205 : vector<8x1xf32> to vector<8x22xf32>
    %1207 = arith.mulf %1204, %1206 : vector<8x22xf32>
    %1208 = arith.addf %1203, %1207 : vector<8x22xf32>
    %1209 = vector.extract_strided_slice %1061 {offsets = [0, 13], sizes = [8, 22], strides = [1, 1]} : vector<8x36xf32> to vector<8x22xf32>
    %1210 = vector.extract_strided_slice %651 {offsets = [0, 28], sizes = [8, 1], strides = [1, 1]} : vector<8x36xf32> to vector<8x1xf32>
    %1211 = vector.broadcast %1210 : vector<8x1xf32> to vector<8x22xf32>
    %1212 = arith.mulf %1209, %1211 : vector<8x22xf32>
    %1213 = arith.addf %1208, %1212 : vector<8x22xf32>
    %1214 = vector.extract_strided_slice %1063 {offsets = [0, 13], sizes = [8, 22], strides = [1, 1]} : vector<8x36xf32> to vector<8x22xf32>
    %1215 = vector.extract_strided_slice %651 {offsets = [0, 29], sizes = [8, 1], strides = [1, 1]} : vector<8x36xf32> to vector<8x1xf32>
    %1216 = vector.broadcast %1215 : vector<8x1xf32> to vector<8x22xf32>
    %1217 = arith.mulf %1214, %1216 : vector<8x22xf32>
    %1218 = arith.addf %1213, %1217 : vector<8x22xf32>
    %1219 = vector.extract_strided_slice %1065 {offsets = [0, 13], sizes = [8, 22], strides = [1, 1]} : vector<8x36xf32> to vector<8x22xf32>
    %1220 = vector.extract_strided_slice %651 {offsets = [0, 30], sizes = [8, 1], strides = [1, 1]} : vector<8x36xf32> to vector<8x1xf32>
    %1221 = vector.broadcast %1220 : vector<8x1xf32> to vector<8x22xf32>
    %1222 = arith.mulf %1219, %1221 : vector<8x22xf32>
    %1223 = arith.addf %1218, %1222 : vector<8x22xf32>
    %1224 = vector.extract_strided_slice %1067 {offsets = [0, 13], sizes = [8, 22], strides = [1, 1]} : vector<8x36xf32> to vector<8x22xf32>
    %1225 = vector.extract_strided_slice %651 {offsets = [0, 31], sizes = [8, 1], strides = [1, 1]} : vector<8x36xf32> to vector<8x1xf32>
    %1226 = vector.broadcast %1225 : vector<8x1xf32> to vector<8x22xf32>
    %1227 = arith.mulf %1224, %1226 : vector<8x22xf32>
    %1228 = arith.addf %1223, %1227 : vector<8x22xf32>
    %1229 = vector.extract_strided_slice %1061 {offsets = [0, 14], sizes = [8, 22], strides = [1, 1]} : vector<8x36xf32> to vector<8x22xf32>
    %1230 = vector.extract_strided_slice %651 {offsets = [0, 32], sizes = [8, 1], strides = [1, 1]} : vector<8x36xf32> to vector<8x1xf32>
    %1231 = vector.broadcast %1230 : vector<8x1xf32> to vector<8x22xf32>
    %1232 = arith.mulf %1229, %1231 : vector<8x22xf32>
    %1233 = arith.addf %1228, %1232 : vector<8x22xf32>
    %1234 = vector.extract_strided_slice %1063 {offsets = [0, 14], sizes = [8, 22], strides = [1, 1]} : vector<8x36xf32> to vector<8x22xf32>
    %1235 = vector.extract_strided_slice %651 {offsets = [0, 33], sizes = [8, 1], strides = [1, 1]} : vector<8x36xf32> to vector<8x1xf32>
    %1236 = vector.broadcast %1235 : vector<8x1xf32> to vector<8x22xf32>
    %1237 = arith.mulf %1234, %1236 : vector<8x22xf32>
    %1238 = arith.addf %1233, %1237 : vector<8x22xf32>
    %1239 = vector.extract_strided_slice %1065 {offsets = [0, 14], sizes = [8, 22], strides = [1, 1]} : vector<8x36xf32> to vector<8x22xf32>
    %1240 = vector.extract_strided_slice %651 {offsets = [0, 34], sizes = [8, 1], strides = [1, 1]} : vector<8x36xf32> to vector<8x1xf32>
    %1241 = vector.broadcast %1240 : vector<8x1xf32> to vector<8x22xf32>
    %1242 = arith.mulf %1239, %1241 : vector<8x22xf32>
    %1243 = arith.addf %1238, %1242 : vector<8x22xf32>
    %1244 = vector.extract_strided_slice %1067 {offsets = [0, 14], sizes = [8, 22], strides = [1, 1]} : vector<8x36xf32> to vector<8x22xf32>
    %1245 = vector.extract_strided_slice %651 {offsets = [0, 35], sizes = [8, 1], strides = [1, 1]} : vector<8x36xf32> to vector<8x1xf32>
    %1246 = vector.broadcast %1245 : vector<8x1xf32> to vector<8x22xf32>
    %1247 = arith.mulf %1244, %1246 : vector<8x22xf32>
    %1248 = arith.addf %1243, %1247 : vector<8x22xf32>
    %cst_94 = arith.constant 7.500000e-01 : f32
    %1249 = vector.broadcast %cst_94 : f32 to vector<8x22xf32>
    %1250 = arith.mulf %1249, %629 : vector<8x22xf32>
    %1251 = arith.subf %1248, %1250 : vector<8x22xf32>
    %cst_95 = arith.constant 1.000000e+00 : f32
    %1252 = vector.broadcast %cst_95 : f32 to vector<8x22xf32>
    %1253 = arith.cmpf oge, %1251, %1252 : vector<8x22xf32>
    %cst_96 = arith.constant 1.000000e+00 : f32
    %cst_97 = arith.constant 0.000000e+00 : f32
    %1254 = vector.broadcast %cst_96 : f32 to vector<8x22xf32>
    %1255 = vector.broadcast %cst_97 : f32 to vector<8x22xf32>
    %1256 = arith.select %1253, %1254, %1255 : vector<8x22xi1>, vector<8x22xf32>
    %cst_98 = arith.constant 4.000000e+00 : f32
    %1257 = vector.broadcast %cst_98 : f32 to vector<8x22xf32>
    %1258 = arith.mulf %1257, %1256 : vector<8x22xf32>
    %1259 = arith.addf %1250, %1258 : vector<8x22xf32>
    %1260 = vector.extract_strided_slice %1256 {offsets = [0, 0], sizes = [8, 4], strides = [1, 1]} : vector<8x22xf32> to vector<8x4xf32>
    %1261 = vector.extract_strided_slice %1256 {offsets = [0, 6], sizes = [8, 4], strides = [1, 1]} : vector<8x22xf32> to vector<8x4xf32>
    %1262 = arith.maximumf %1260, %1261 : vector<8x4xf32>
    %1263 = vector.extract_strided_slice %1262 {offsets = [0, 0], sizes = [8, 1], strides = [1, 1]} : vector<8x4xf32> to vector<8x1xf32>
    %1264 = vector.extract_strided_slice %1262 {offsets = [0, 1], sizes = [8, 1], strides = [1, 1]} : vector<8x4xf32> to vector<8x1xf32>
    %1265 = arith.maximumf %1263, %1264 : vector<8x1xf32>
    %1266 = vector.extract_strided_slice %1262 {offsets = [0, 2], sizes = [8, 1], strides = [1, 1]} : vector<8x4xf32> to vector<8x1xf32>
    %1267 = vector.extract_strided_slice %1262 {offsets = [0, 3], sizes = [8, 1], strides = [1, 1]} : vector<8x4xf32> to vector<8x1xf32>
    %1268 = arith.maximumf %1266, %1267 : vector<8x1xf32>
    %1269 = vector.extract_strided_slice %1256 {offsets = [0, 12], sizes = [8, 4], strides = [1, 1]} : vector<8x22xf32> to vector<8x4xf32>
    %1270 = vector.extract_strided_slice %1256 {offsets = [0, 18], sizes = [8, 4], strides = [1, 1]} : vector<8x22xf32> to vector<8x4xf32>
    %1271 = arith.maximumf %1269, %1270 : vector<8x4xf32>
    %1272 = vector.extract_strided_slice %1271 {offsets = [0, 0], sizes = [8, 1], strides = [1, 1]} : vector<8x4xf32> to vector<8x1xf32>
    %1273 = vector.extract_strided_slice %1271 {offsets = [0, 1], sizes = [8, 1], strides = [1, 1]} : vector<8x4xf32> to vector<8x1xf32>
    %1274 = arith.maximumf %1272, %1273 : vector<8x1xf32>
    %1275 = vector.extract_strided_slice %1271 {offsets = [0, 2], sizes = [8, 1], strides = [1, 1]} : vector<8x4xf32> to vector<8x1xf32>
    %1276 = vector.extract_strided_slice %1271 {offsets = [0, 3], sizes = [8, 1], strides = [1, 1]} : vector<8x4xf32> to vector<8x1xf32>
    %1277 = arith.maximumf %1275, %1276 : vector<8x1xf32>
    %1278 = tpu.concatenate %1265, %1268, %1274, %1277 in 1 : vector<8x1xf32>, vector<8x1xf32>, vector<8x1xf32>, vector<8x1xf32> -> vector<8x4xf32>
    %c0_99 = arith.constant 0 : index
    %c0_100 = arith.constant 0 : index
    %1279 = vector.load %arg2[%c0_99, %c0_100] : memref<8x36xf32, #tpu.memory_space<vmem>>, vector<8x36xf32>
    %c0_101 = arith.constant 0 : index
    %c0_102 = arith.constant 0 : index
    %1280 = vector.load %arg3[%c0_101, %c0_102] : memref<8x36xf32, #tpu.memory_space<vmem>>, vector<8x36xf32>
    %cst_103 = arith.constant 0.899999976 : f32
    %1281 = vector.broadcast %cst_103 : f32 to vector<8x36xf32>
    %1282 = arith.mulf %1281, %834 : vector<8x36xf32>
    %cst_104 = arith.constant 1.000000e+01 : f32
    %1283 = vector.broadcast %cst_104 : f32 to vector<8x36xf32>
    %1284 = arith.mulf %1283, %839 : vector<8x36xf32>
    %1285 = arith.addf %1282, %1284 : vector<8x36xf32>
    %1286 = vector.extract_strided_slice %1285 {offsets = [0, 0], sizes = [2, 36], strides = [1, 1]} : vector<8x36xf32> to vector<2x36xf32>
    %1287 = tpu.concatenate %1286, %1286, %1286, %1286 in 0 : vector<2x36xf32>, vector<2x36xf32>, vector<2x36xf32>, vector<2x36xf32> -> vector<8x36xf32>
    %1288 = vector.extract_strided_slice %1285 {offsets = [2, 0], sizes = [2, 36], strides = [1, 1]} : vector<8x36xf32> to vector<2x36xf32>
    %1289 = tpu.concatenate %1288, %1288, %1288, %1288 in 0 : vector<2x36xf32>, vector<2x36xf32>, vector<2x36xf32>, vector<2x36xf32> -> vector<8x36xf32>
    %1290 = vector.extract_strided_slice %1285 {offsets = [4, 0], sizes = [2, 36], strides = [1, 1]} : vector<8x36xf32> to vector<2x36xf32>
    %1291 = tpu.concatenate %1290, %1290, %1290, %1290 in 0 : vector<2x36xf32>, vector<2x36xf32>, vector<2x36xf32>, vector<2x36xf32> -> vector<8x36xf32>
    %1292 = vector.extract_strided_slice %1285 {offsets = [6, 0], sizes = [2, 36], strides = [1, 1]} : vector<8x36xf32> to vector<2x36xf32>
    %1293 = tpu.concatenate %1292, %1292, %1292, %1292 in 0 : vector<2x36xf32>, vector<2x36xf32>, vector<2x36xf32>, vector<2x36xf32> -> vector<8x36xf32>
    %cst_105 = arith.constant 0.000000e+00 : f32
    %1294 = vector.broadcast %cst_105 : f32 to vector<8x22xf32>
    %1295 = vector.extract_strided_slice %1287 {offsets = [0, 0], sizes = [8, 22], strides = [1, 1]} : vector<8x36xf32> to vector<8x22xf32>
    %1296 = vector.extract_strided_slice %1279 {offsets = [0, 0], sizes = [8, 1], strides = [1, 1]} : vector<8x36xf32> to vector<8x1xf32>
    %1297 = vector.broadcast %1296 : vector<8x1xf32> to vector<8x22xf32>
    %1298 = arith.mulf %1295, %1297 : vector<8x22xf32>
    %1299 = arith.addf %1294, %1298 : vector<8x22xf32>
    %1300 = vector.extract_strided_slice %1289 {offsets = [0, 0], sizes = [8, 22], strides = [1, 1]} : vector<8x36xf32> to vector<8x22xf32>
    %1301 = vector.extract_strided_slice %1279 {offsets = [0, 1], sizes = [8, 1], strides = [1, 1]} : vector<8x36xf32> to vector<8x1xf32>
    %1302 = vector.broadcast %1301 : vector<8x1xf32> to vector<8x22xf32>
    %1303 = arith.mulf %1300, %1302 : vector<8x22xf32>
    %1304 = arith.addf %1299, %1303 : vector<8x22xf32>
    %1305 = vector.extract_strided_slice %1291 {offsets = [0, 0], sizes = [8, 22], strides = [1, 1]} : vector<8x36xf32> to vector<8x22xf32>
    %1306 = vector.extract_strided_slice %1279 {offsets = [0, 2], sizes = [8, 1], strides = [1, 1]} : vector<8x36xf32> to vector<8x1xf32>
    %1307 = vector.broadcast %1306 : vector<8x1xf32> to vector<8x22xf32>
    %1308 = arith.mulf %1305, %1307 : vector<8x22xf32>
    %1309 = arith.addf %1304, %1308 : vector<8x22xf32>
    %1310 = vector.extract_strided_slice %1293 {offsets = [0, 0], sizes = [8, 22], strides = [1, 1]} : vector<8x36xf32> to vector<8x22xf32>
    %1311 = vector.extract_strided_slice %1279 {offsets = [0, 3], sizes = [8, 1], strides = [1, 1]} : vector<8x36xf32> to vector<8x1xf32>
    %1312 = vector.broadcast %1311 : vector<8x1xf32> to vector<8x22xf32>
    %1313 = arith.mulf %1310, %1312 : vector<8x22xf32>
    %1314 = arith.addf %1309, %1313 : vector<8x22xf32>
    %1315 = vector.extract_strided_slice %1287 {offsets = [0, 1], sizes = [8, 22], strides = [1, 1]} : vector<8x36xf32> to vector<8x22xf32>
    %1316 = vector.extract_strided_slice %1279 {offsets = [0, 4], sizes = [8, 1], strides = [1, 1]} : vector<8x36xf32> to vector<8x1xf32>
    %1317 = vector.broadcast %1316 : vector<8x1xf32> to vector<8x22xf32>
    %1318 = arith.mulf %1315, %1317 : vector<8x22xf32>
    %1319 = arith.addf %1314, %1318 : vector<8x22xf32>
    %1320 = vector.extract_strided_slice %1289 {offsets = [0, 1], sizes = [8, 22], strides = [1, 1]} : vector<8x36xf32> to vector<8x22xf32>
    %1321 = vector.extract_strided_slice %1279 {offsets = [0, 5], sizes = [8, 1], strides = [1, 1]} : vector<8x36xf32> to vector<8x1xf32>
    %1322 = vector.broadcast %1321 : vector<8x1xf32> to vector<8x22xf32>
    %1323 = arith.mulf %1320, %1322 : vector<8x22xf32>
    %1324 = arith.addf %1319, %1323 : vector<8x22xf32>
    %1325 = vector.extract_strided_slice %1291 {offsets = [0, 1], sizes = [8, 22], strides = [1, 1]} : vector<8x36xf32> to vector<8x22xf32>
    %1326 = vector.extract_strided_slice %1279 {offsets = [0, 6], sizes = [8, 1], strides = [1, 1]} : vector<8x36xf32> to vector<8x1xf32>
    %1327 = vector.broadcast %1326 : vector<8x1xf32> to vector<8x22xf32>
    %1328 = arith.mulf %1325, %1327 : vector<8x22xf32>
    %1329 = arith.addf %1324, %1328 : vector<8x22xf32>
    %1330 = vector.extract_strided_slice %1293 {offsets = [0, 1], sizes = [8, 22], strides = [1, 1]} : vector<8x36xf32> to vector<8x22xf32>
    %1331 = vector.extract_strided_slice %1279 {offsets = [0, 7], sizes = [8, 1], strides = [1, 1]} : vector<8x36xf32> to vector<8x1xf32>
    %1332 = vector.broadcast %1331 : vector<8x1xf32> to vector<8x22xf32>
    %1333 = arith.mulf %1330, %1332 : vector<8x22xf32>
    %1334 = arith.addf %1329, %1333 : vector<8x22xf32>
    %1335 = vector.extract_strided_slice %1287 {offsets = [0, 2], sizes = [8, 22], strides = [1, 1]} : vector<8x36xf32> to vector<8x22xf32>
    %1336 = vector.extract_strided_slice %1279 {offsets = [0, 8], sizes = [8, 1], strides = [1, 1]} : vector<8x36xf32> to vector<8x1xf32>
    %1337 = vector.broadcast %1336 : vector<8x1xf32> to vector<8x22xf32>
    %1338 = arith.mulf %1335, %1337 : vector<8x22xf32>
    %1339 = arith.addf %1334, %1338 : vector<8x22xf32>
    %1340 = vector.extract_strided_slice %1289 {offsets = [0, 2], sizes = [8, 22], strides = [1, 1]} : vector<8x36xf32> to vector<8x22xf32>
    %1341 = vector.extract_strided_slice %1279 {offsets = [0, 9], sizes = [8, 1], strides = [1, 1]} : vector<8x36xf32> to vector<8x1xf32>
    %1342 = vector.broadcast %1341 : vector<8x1xf32> to vector<8x22xf32>
    %1343 = arith.mulf %1340, %1342 : vector<8x22xf32>
    %1344 = arith.addf %1339, %1343 : vector<8x22xf32>
    %1345 = vector.extract_strided_slice %1291 {offsets = [0, 2], sizes = [8, 22], strides = [1, 1]} : vector<8x36xf32> to vector<8x22xf32>
    %1346 = vector.extract_strided_slice %1279 {offsets = [0, 10], sizes = [8, 1], strides = [1, 1]} : vector<8x36xf32> to vector<8x1xf32>
    %1347 = vector.broadcast %1346 : vector<8x1xf32> to vector<8x22xf32>
    %1348 = arith.mulf %1345, %1347 : vector<8x22xf32>
    %1349 = arith.addf %1344, %1348 : vector<8x22xf32>
    %1350 = vector.extract_strided_slice %1293 {offsets = [0, 2], sizes = [8, 22], strides = [1, 1]} : vector<8x36xf32> to vector<8x22xf32>
    %1351 = vector.extract_strided_slice %1279 {offsets = [0, 11], sizes = [8, 1], strides = [1, 1]} : vector<8x36xf32> to vector<8x1xf32>
    %1352 = vector.broadcast %1351 : vector<8x1xf32> to vector<8x22xf32>
    %1353 = arith.mulf %1350, %1352 : vector<8x22xf32>
    %1354 = arith.addf %1349, %1353 : vector<8x22xf32>
    %1355 = vector.extract_strided_slice %1287 {offsets = [0, 6], sizes = [8, 22], strides = [1, 1]} : vector<8x36xf32> to vector<8x22xf32>
    %1356 = vector.extract_strided_slice %1279 {offsets = [0, 12], sizes = [8, 1], strides = [1, 1]} : vector<8x36xf32> to vector<8x1xf32>
    %1357 = vector.broadcast %1356 : vector<8x1xf32> to vector<8x22xf32>
    %1358 = arith.mulf %1355, %1357 : vector<8x22xf32>
    %1359 = arith.addf %1354, %1358 : vector<8x22xf32>
    %1360 = vector.extract_strided_slice %1289 {offsets = [0, 6], sizes = [8, 22], strides = [1, 1]} : vector<8x36xf32> to vector<8x22xf32>
    %1361 = vector.extract_strided_slice %1279 {offsets = [0, 13], sizes = [8, 1], strides = [1, 1]} : vector<8x36xf32> to vector<8x1xf32>
    %1362 = vector.broadcast %1361 : vector<8x1xf32> to vector<8x22xf32>
    %1363 = arith.mulf %1360, %1362 : vector<8x22xf32>
    %1364 = arith.addf %1359, %1363 : vector<8x22xf32>
    %1365 = vector.extract_strided_slice %1291 {offsets = [0, 6], sizes = [8, 22], strides = [1, 1]} : vector<8x36xf32> to vector<8x22xf32>
    %1366 = vector.extract_strided_slice %1279 {offsets = [0, 14], sizes = [8, 1], strides = [1, 1]} : vector<8x36xf32> to vector<8x1xf32>
    %1367 = vector.broadcast %1366 : vector<8x1xf32> to vector<8x22xf32>
    %1368 = arith.mulf %1365, %1367 : vector<8x22xf32>
    %1369 = arith.addf %1364, %1368 : vector<8x22xf32>
    %1370 = vector.extract_strided_slice %1293 {offsets = [0, 6], sizes = [8, 22], strides = [1, 1]} : vector<8x36xf32> to vector<8x22xf32>
    %1371 = vector.extract_strided_slice %1279 {offsets = [0, 15], sizes = [8, 1], strides = [1, 1]} : vector<8x36xf32> to vector<8x1xf32>
    %1372 = vector.broadcast %1371 : vector<8x1xf32> to vector<8x22xf32>
    %1373 = arith.mulf %1370, %1372 : vector<8x22xf32>
    %1374 = arith.addf %1369, %1373 : vector<8x22xf32>
    %1375 = vector.extract_strided_slice %1287 {offsets = [0, 7], sizes = [8, 22], strides = [1, 1]} : vector<8x36xf32> to vector<8x22xf32>
    %1376 = vector.extract_strided_slice %1279 {offsets = [0, 16], sizes = [8, 1], strides = [1, 1]} : vector<8x36xf32> to vector<8x1xf32>
    %1377 = vector.broadcast %1376 : vector<8x1xf32> to vector<8x22xf32>
    %1378 = arith.mulf %1375, %1377 : vector<8x22xf32>
    %1379 = arith.addf %1374, %1378 : vector<8x22xf32>
    %1380 = vector.extract_strided_slice %1289 {offsets = [0, 7], sizes = [8, 22], strides = [1, 1]} : vector<8x36xf32> to vector<8x22xf32>
    %1381 = vector.extract_strided_slice %1279 {offsets = [0, 17], sizes = [8, 1], strides = [1, 1]} : vector<8x36xf32> to vector<8x1xf32>
    %1382 = vector.broadcast %1381 : vector<8x1xf32> to vector<8x22xf32>
    %1383 = arith.mulf %1380, %1382 : vector<8x22xf32>
    %1384 = arith.addf %1379, %1383 : vector<8x22xf32>
    %1385 = vector.extract_strided_slice %1291 {offsets = [0, 7], sizes = [8, 22], strides = [1, 1]} : vector<8x36xf32> to vector<8x22xf32>
    %1386 = vector.extract_strided_slice %1279 {offsets = [0, 18], sizes = [8, 1], strides = [1, 1]} : vector<8x36xf32> to vector<8x1xf32>
    %1387 = vector.broadcast %1386 : vector<8x1xf32> to vector<8x22xf32>
    %1388 = arith.mulf %1385, %1387 : vector<8x22xf32>
    %1389 = arith.addf %1384, %1388 : vector<8x22xf32>
    %1390 = vector.extract_strided_slice %1293 {offsets = [0, 7], sizes = [8, 22], strides = [1, 1]} : vector<8x36xf32> to vector<8x22xf32>
    %1391 = vector.extract_strided_slice %1279 {offsets = [0, 19], sizes = [8, 1], strides = [1, 1]} : vector<8x36xf32> to vector<8x1xf32>
    %1392 = vector.broadcast %1391 : vector<8x1xf32> to vector<8x22xf32>
    %1393 = arith.mulf %1390, %1392 : vector<8x22xf32>
    %1394 = arith.addf %1389, %1393 : vector<8x22xf32>
    %1395 = vector.extract_strided_slice %1287 {offsets = [0, 8], sizes = [8, 22], strides = [1, 1]} : vector<8x36xf32> to vector<8x22xf32>
    %1396 = vector.extract_strided_slice %1279 {offsets = [0, 20], sizes = [8, 1], strides = [1, 1]} : vector<8x36xf32> to vector<8x1xf32>
    %1397 = vector.broadcast %1396 : vector<8x1xf32> to vector<8x22xf32>
    %1398 = arith.mulf %1395, %1397 : vector<8x22xf32>
    %1399 = arith.addf %1394, %1398 : vector<8x22xf32>
    %1400 = vector.extract_strided_slice %1289 {offsets = [0, 8], sizes = [8, 22], strides = [1, 1]} : vector<8x36xf32> to vector<8x22xf32>
    %1401 = vector.extract_strided_slice %1279 {offsets = [0, 21], sizes = [8, 1], strides = [1, 1]} : vector<8x36xf32> to vector<8x1xf32>
    %1402 = vector.broadcast %1401 : vector<8x1xf32> to vector<8x22xf32>
    %1403 = arith.mulf %1400, %1402 : vector<8x22xf32>
    %1404 = arith.addf %1399, %1403 : vector<8x22xf32>
    %1405 = vector.extract_strided_slice %1291 {offsets = [0, 8], sizes = [8, 22], strides = [1, 1]} : vector<8x36xf32> to vector<8x22xf32>
    %1406 = vector.extract_strided_slice %1279 {offsets = [0, 22], sizes = [8, 1], strides = [1, 1]} : vector<8x36xf32> to vector<8x1xf32>
    %1407 = vector.broadcast %1406 : vector<8x1xf32> to vector<8x22xf32>
    %1408 = arith.mulf %1405, %1407 : vector<8x22xf32>
    %1409 = arith.addf %1404, %1408 : vector<8x22xf32>
    %1410 = vector.extract_strided_slice %1293 {offsets = [0, 8], sizes = [8, 22], strides = [1, 1]} : vector<8x36xf32> to vector<8x22xf32>
    %1411 = vector.extract_strided_slice %1279 {offsets = [0, 23], sizes = [8, 1], strides = [1, 1]} : vector<8x36xf32> to vector<8x1xf32>
    %1412 = vector.broadcast %1411 : vector<8x1xf32> to vector<8x22xf32>
    %1413 = arith.mulf %1410, %1412 : vector<8x22xf32>
    %1414 = arith.addf %1409, %1413 : vector<8x22xf32>
    %1415 = vector.extract_strided_slice %1287 {offsets = [0, 12], sizes = [8, 22], strides = [1, 1]} : vector<8x36xf32> to vector<8x22xf32>
    %1416 = vector.extract_strided_slice %1279 {offsets = [0, 24], sizes = [8, 1], strides = [1, 1]} : vector<8x36xf32> to vector<8x1xf32>
    %1417 = vector.broadcast %1416 : vector<8x1xf32> to vector<8x22xf32>
    %1418 = arith.mulf %1415, %1417 : vector<8x22xf32>
    %1419 = arith.addf %1414, %1418 : vector<8x22xf32>
    %1420 = vector.extract_strided_slice %1289 {offsets = [0, 12], sizes = [8, 22], strides = [1, 1]} : vector<8x36xf32> to vector<8x22xf32>
    %1421 = vector.extract_strided_slice %1279 {offsets = [0, 25], sizes = [8, 1], strides = [1, 1]} : vector<8x36xf32> to vector<8x1xf32>
    %1422 = vector.broadcast %1421 : vector<8x1xf32> to vector<8x22xf32>
    %1423 = arith.mulf %1420, %1422 : vector<8x22xf32>
    %1424 = arith.addf %1419, %1423 : vector<8x22xf32>
    %1425 = vector.extract_strided_slice %1291 {offsets = [0, 12], sizes = [8, 22], strides = [1, 1]} : vector<8x36xf32> to vector<8x22xf32>
    %1426 = vector.extract_strided_slice %1279 {offsets = [0, 26], sizes = [8, 1], strides = [1, 1]} : vector<8x36xf32> to vector<8x1xf32>
    %1427 = vector.broadcast %1426 : vector<8x1xf32> to vector<8x22xf32>
    %1428 = arith.mulf %1425, %1427 : vector<8x22xf32>
    %1429 = arith.addf %1424, %1428 : vector<8x22xf32>
    %1430 = vector.extract_strided_slice %1293 {offsets = [0, 12], sizes = [8, 22], strides = [1, 1]} : vector<8x36xf32> to vector<8x22xf32>
    %1431 = vector.extract_strided_slice %1279 {offsets = [0, 27], sizes = [8, 1], strides = [1, 1]} : vector<8x36xf32> to vector<8x1xf32>
    %1432 = vector.broadcast %1431 : vector<8x1xf32> to vector<8x22xf32>
    %1433 = arith.mulf %1430, %1432 : vector<8x22xf32>
    %1434 = arith.addf %1429, %1433 : vector<8x22xf32>
    %1435 = vector.extract_strided_slice %1287 {offsets = [0, 13], sizes = [8, 22], strides = [1, 1]} : vector<8x36xf32> to vector<8x22xf32>
    %1436 = vector.extract_strided_slice %1279 {offsets = [0, 28], sizes = [8, 1], strides = [1, 1]} : vector<8x36xf32> to vector<8x1xf32>
    %1437 = vector.broadcast %1436 : vector<8x1xf32> to vector<8x22xf32>
    %1438 = arith.mulf %1435, %1437 : vector<8x22xf32>
    %1439 = arith.addf %1434, %1438 : vector<8x22xf32>
    %1440 = vector.extract_strided_slice %1289 {offsets = [0, 13], sizes = [8, 22], strides = [1, 1]} : vector<8x36xf32> to vector<8x22xf32>
    %1441 = vector.extract_strided_slice %1279 {offsets = [0, 29], sizes = [8, 1], strides = [1, 1]} : vector<8x36xf32> to vector<8x1xf32>
    %1442 = vector.broadcast %1441 : vector<8x1xf32> to vector<8x22xf32>
    %1443 = arith.mulf %1440, %1442 : vector<8x22xf32>
    %1444 = arith.addf %1439, %1443 : vector<8x22xf32>
    %1445 = vector.extract_strided_slice %1291 {offsets = [0, 13], sizes = [8, 22], strides = [1, 1]} : vector<8x36xf32> to vector<8x22xf32>
    %1446 = vector.extract_strided_slice %1279 {offsets = [0, 30], sizes = [8, 1], strides = [1, 1]} : vector<8x36xf32> to vector<8x1xf32>
    %1447 = vector.broadcast %1446 : vector<8x1xf32> to vector<8x22xf32>
    %1448 = arith.mulf %1445, %1447 : vector<8x22xf32>
    %1449 = arith.addf %1444, %1448 : vector<8x22xf32>
    %1450 = vector.extract_strided_slice %1293 {offsets = [0, 13], sizes = [8, 22], strides = [1, 1]} : vector<8x36xf32> to vector<8x22xf32>
    %1451 = vector.extract_strided_slice %1279 {offsets = [0, 31], sizes = [8, 1], strides = [1, 1]} : vector<8x36xf32> to vector<8x1xf32>
    %1452 = vector.broadcast %1451 : vector<8x1xf32> to vector<8x22xf32>
    %1453 = arith.mulf %1450, %1452 : vector<8x22xf32>
    %1454 = arith.addf %1449, %1453 : vector<8x22xf32>
    %1455 = vector.extract_strided_slice %1287 {offsets = [0, 14], sizes = [8, 22], strides = [1, 1]} : vector<8x36xf32> to vector<8x22xf32>
    %1456 = vector.extract_strided_slice %1279 {offsets = [0, 32], sizes = [8, 1], strides = [1, 1]} : vector<8x36xf32> to vector<8x1xf32>
    %1457 = vector.broadcast %1456 : vector<8x1xf32> to vector<8x22xf32>
    %1458 = arith.mulf %1455, %1457 : vector<8x22xf32>
    %1459 = arith.addf %1454, %1458 : vector<8x22xf32>
    %1460 = vector.extract_strided_slice %1289 {offsets = [0, 14], sizes = [8, 22], strides = [1, 1]} : vector<8x36xf32> to vector<8x22xf32>
    %1461 = vector.extract_strided_slice %1279 {offsets = [0, 33], sizes = [8, 1], strides = [1, 1]} : vector<8x36xf32> to vector<8x1xf32>
    %1462 = vector.broadcast %1461 : vector<8x1xf32> to vector<8x22xf32>
    %1463 = arith.mulf %1460, %1462 : vector<8x22xf32>
    %1464 = arith.addf %1459, %1463 : vector<8x22xf32>
    %1465 = vector.extract_strided_slice %1291 {offsets = [0, 14], sizes = [8, 22], strides = [1, 1]} : vector<8x36xf32> to vector<8x22xf32>
    %1466 = vector.extract_strided_slice %1279 {offsets = [0, 34], sizes = [8, 1], strides = [1, 1]} : vector<8x36xf32> to vector<8x1xf32>
    %1467 = vector.broadcast %1466 : vector<8x1xf32> to vector<8x22xf32>
    %1468 = arith.mulf %1465, %1467 : vector<8x22xf32>
    %1469 = arith.addf %1464, %1468 : vector<8x22xf32>
    %1470 = vector.extract_strided_slice %1293 {offsets = [0, 14], sizes = [8, 22], strides = [1, 1]} : vector<8x36xf32> to vector<8x22xf32>
    %1471 = vector.extract_strided_slice %1279 {offsets = [0, 35], sizes = [8, 1], strides = [1, 1]} : vector<8x36xf32> to vector<8x1xf32>
    %1472 = vector.broadcast %1471 : vector<8x1xf32> to vector<8x22xf32>
    %1473 = arith.mulf %1470, %1472 : vector<8x22xf32>
    %1474 = arith.addf %1469, %1473 : vector<8x22xf32>
    %cst_106 = arith.constant 7.500000e-01 : f32
    %1475 = vector.broadcast %cst_106 : f32 to vector<8x22xf32>
    %1476 = arith.mulf %1475, %1039 : vector<8x22xf32>
    %1477 = arith.subf %1474, %1476 : vector<8x22xf32>
    %cst_107 = arith.constant 1.000000e+00 : f32
    %1478 = vector.broadcast %cst_107 : f32 to vector<8x22xf32>
    %1479 = arith.cmpf oge, %1477, %1478 : vector<8x22xf32>
    %cst_108 = arith.constant 1.000000e+00 : f32
    %cst_109 = arith.constant 0.000000e+00 : f32
    %1480 = vector.broadcast %cst_108 : f32 to vector<8x22xf32>
    %1481 = vector.broadcast %cst_109 : f32 to vector<8x22xf32>
    %1482 = arith.select %1479, %1480, %1481 : vector<8x22xi1>, vector<8x22xf32>
    %cst_110 = arith.constant 0.000000e+00 : f32
    %1483 = vector.broadcast %cst_110 : f32 to vector<8x7xf32>
    %1484 = vector.extract_strided_slice %1482 {offsets = [0, 0], sizes = [8, 4], strides = [1, 1]} : vector<8x22xf32> to vector<8x4xf32>
    %cst_111 = arith.constant 0.000000e+00 : f32
    %1485 = vector.broadcast %cst_111 : f32 to vector<8x2xf32>
    %1486 = vector.extract_strided_slice %1482 {offsets = [0, 6], sizes = [8, 4], strides = [1, 1]} : vector<8x22xf32> to vector<8x4xf32>
    %cst_112 = arith.constant 0.000000e+00 : f32
    %1487 = vector.broadcast %cst_112 : f32 to vector<8x2xf32>
    %1488 = vector.extract_strided_slice %1482 {offsets = [0, 12], sizes = [8, 4], strides = [1, 1]} : vector<8x22xf32> to vector<8x4xf32>
    %cst_113 = arith.constant 0.000000e+00 : f32
    %1489 = vector.broadcast %cst_113 : f32 to vector<8x2xf32>
    %1490 = vector.extract_strided_slice %1482 {offsets = [0, 18], sizes = [8, 4], strides = [1, 1]} : vector<8x22xf32> to vector<8x4xf32>
    %cst_114 = arith.constant 0.000000e+00 : f32
    %1491 = vector.broadcast %cst_114 : f32 to vector<8x7xf32>
    %1492 = tpu.concatenate %1483, %1484, %1485, %1486, %1487, %1488, %1489, %1490, %1491 in 1 : vector<8x7xf32>, vector<8x4xf32>, vector<8x2xf32>, vector<8x4xf32>, vector<8x2xf32>, vector<8x4xf32>, vector<8x2xf32>, vector<8x4xf32>, vector<8x7xf32> -> vector<8x36xf32>
    %cst_115 = arith.constant 0.899999976 : f32
    %1493 = vector.broadcast %cst_115 : f32 to vector<8x36xf32>
    %1494 = arith.mulf %1493, %1054 : vector<8x36xf32>
    %cst_116 = arith.constant 1.000000e+01 : f32
    %1495 = vector.broadcast %cst_116 : f32 to vector<8x36xf32>
    %1496 = arith.mulf %1495, %1059 : vector<8x36xf32>
    %1497 = arith.addf %1494, %1496 : vector<8x36xf32>
    %cst_117 = arith.constant 8.000000e-01 : f32
    %1498 = vector.broadcast %cst_117 : f32 to vector<8x36xf32>
    %1499 = arith.mulf %1498, %1059 : vector<8x36xf32>
    %cst_118 = arith.constant 5.000000e+00 : f32
    %1500 = vector.broadcast %cst_118 : f32 to vector<8x36xf32>
    %1501 = arith.mulf %1500, %1492 : vector<8x36xf32>
    %1502 = arith.addf %1499, %1501 : vector<8x36xf32>
    %1503 = vector.extract_strided_slice %1497 {offsets = [0, 0], sizes = [2, 36], strides = [1, 1]} : vector<8x36xf32> to vector<2x36xf32>
    %1504 = tpu.concatenate %1503, %1503, %1503, %1503 in 0 : vector<2x36xf32>, vector<2x36xf32>, vector<2x36xf32>, vector<2x36xf32> -> vector<8x36xf32>
    %1505 = vector.extract_strided_slice %1497 {offsets = [2, 0], sizes = [2, 36], strides = [1, 1]} : vector<8x36xf32> to vector<2x36xf32>
    %1506 = tpu.concatenate %1505, %1505, %1505, %1505 in 0 : vector<2x36xf32>, vector<2x36xf32>, vector<2x36xf32>, vector<2x36xf32> -> vector<8x36xf32>
    %1507 = vector.extract_strided_slice %1497 {offsets = [4, 0], sizes = [2, 36], strides = [1, 1]} : vector<8x36xf32> to vector<2x36xf32>
    %1508 = tpu.concatenate %1507, %1507, %1507, %1507 in 0 : vector<2x36xf32>, vector<2x36xf32>, vector<2x36xf32>, vector<2x36xf32> -> vector<8x36xf32>
    %1509 = vector.extract_strided_slice %1497 {offsets = [6, 0], sizes = [2, 36], strides = [1, 1]} : vector<8x36xf32> to vector<2x36xf32>
    %1510 = tpu.concatenate %1509, %1509, %1509, %1509 in 0 : vector<2x36xf32>, vector<2x36xf32>, vector<2x36xf32>, vector<2x36xf32> -> vector<8x36xf32>
    %cst_119 = arith.constant 0.000000e+00 : f32
    %1511 = vector.broadcast %cst_119 : f32 to vector<8x22xf32>
    %1512 = vector.extract_strided_slice %1504 {offsets = [0, 0], sizes = [8, 22], strides = [1, 1]} : vector<8x36xf32> to vector<8x22xf32>
    %1513 = vector.extract_strided_slice %1280 {offsets = [0, 0], sizes = [8, 1], strides = [1, 1]} : vector<8x36xf32> to vector<8x1xf32>
    %1514 = vector.broadcast %1513 : vector<8x1xf32> to vector<8x22xf32>
    %1515 = arith.mulf %1512, %1514 : vector<8x22xf32>
    %1516 = arith.addf %1511, %1515 : vector<8x22xf32>
    %1517 = vector.extract_strided_slice %1506 {offsets = [0, 0], sizes = [8, 22], strides = [1, 1]} : vector<8x36xf32> to vector<8x22xf32>
    %1518 = vector.extract_strided_slice %1280 {offsets = [0, 1], sizes = [8, 1], strides = [1, 1]} : vector<8x36xf32> to vector<8x1xf32>
    %1519 = vector.broadcast %1518 : vector<8x1xf32> to vector<8x22xf32>
    %1520 = arith.mulf %1517, %1519 : vector<8x22xf32>
    %1521 = arith.addf %1516, %1520 : vector<8x22xf32>
    %1522 = vector.extract_strided_slice %1508 {offsets = [0, 0], sizes = [8, 22], strides = [1, 1]} : vector<8x36xf32> to vector<8x22xf32>
    %1523 = vector.extract_strided_slice %1280 {offsets = [0, 2], sizes = [8, 1], strides = [1, 1]} : vector<8x36xf32> to vector<8x1xf32>
    %1524 = vector.broadcast %1523 : vector<8x1xf32> to vector<8x22xf32>
    %1525 = arith.mulf %1522, %1524 : vector<8x22xf32>
    %1526 = arith.addf %1521, %1525 : vector<8x22xf32>
    %1527 = vector.extract_strided_slice %1510 {offsets = [0, 0], sizes = [8, 22], strides = [1, 1]} : vector<8x36xf32> to vector<8x22xf32>
    %1528 = vector.extract_strided_slice %1280 {offsets = [0, 3], sizes = [8, 1], strides = [1, 1]} : vector<8x36xf32> to vector<8x1xf32>
    %1529 = vector.broadcast %1528 : vector<8x1xf32> to vector<8x22xf32>
    %1530 = arith.mulf %1527, %1529 : vector<8x22xf32>
    %1531 = arith.addf %1526, %1530 : vector<8x22xf32>
    %1532 = vector.extract_strided_slice %1504 {offsets = [0, 1], sizes = [8, 22], strides = [1, 1]} : vector<8x36xf32> to vector<8x22xf32>
    %1533 = vector.extract_strided_slice %1280 {offsets = [0, 4], sizes = [8, 1], strides = [1, 1]} : vector<8x36xf32> to vector<8x1xf32>
    %1534 = vector.broadcast %1533 : vector<8x1xf32> to vector<8x22xf32>
    %1535 = arith.mulf %1532, %1534 : vector<8x22xf32>
    %1536 = arith.addf %1531, %1535 : vector<8x22xf32>
    %1537 = vector.extract_strided_slice %1506 {offsets = [0, 1], sizes = [8, 22], strides = [1, 1]} : vector<8x36xf32> to vector<8x22xf32>
    %1538 = vector.extract_strided_slice %1280 {offsets = [0, 5], sizes = [8, 1], strides = [1, 1]} : vector<8x36xf32> to vector<8x1xf32>
    %1539 = vector.broadcast %1538 : vector<8x1xf32> to vector<8x22xf32>
    %1540 = arith.mulf %1537, %1539 : vector<8x22xf32>
    %1541 = arith.addf %1536, %1540 : vector<8x22xf32>
    %1542 = vector.extract_strided_slice %1508 {offsets = [0, 1], sizes = [8, 22], strides = [1, 1]} : vector<8x36xf32> to vector<8x22xf32>
    %1543 = vector.extract_strided_slice %1280 {offsets = [0, 6], sizes = [8, 1], strides = [1, 1]} : vector<8x36xf32> to vector<8x1xf32>
    %1544 = vector.broadcast %1543 : vector<8x1xf32> to vector<8x22xf32>
    %1545 = arith.mulf %1542, %1544 : vector<8x22xf32>
    %1546 = arith.addf %1541, %1545 : vector<8x22xf32>
    %1547 = vector.extract_strided_slice %1510 {offsets = [0, 1], sizes = [8, 22], strides = [1, 1]} : vector<8x36xf32> to vector<8x22xf32>
    %1548 = vector.extract_strided_slice %1280 {offsets = [0, 7], sizes = [8, 1], strides = [1, 1]} : vector<8x36xf32> to vector<8x1xf32>
    %1549 = vector.broadcast %1548 : vector<8x1xf32> to vector<8x22xf32>
    %1550 = arith.mulf %1547, %1549 : vector<8x22xf32>
    %1551 = arith.addf %1546, %1550 : vector<8x22xf32>
    %1552 = vector.extract_strided_slice %1504 {offsets = [0, 2], sizes = [8, 22], strides = [1, 1]} : vector<8x36xf32> to vector<8x22xf32>
    %1553 = vector.extract_strided_slice %1280 {offsets = [0, 8], sizes = [8, 1], strides = [1, 1]} : vector<8x36xf32> to vector<8x1xf32>
    %1554 = vector.broadcast %1553 : vector<8x1xf32> to vector<8x22xf32>
    %1555 = arith.mulf %1552, %1554 : vector<8x22xf32>
    %1556 = arith.addf %1551, %1555 : vector<8x22xf32>
    %1557 = vector.extract_strided_slice %1506 {offsets = [0, 2], sizes = [8, 22], strides = [1, 1]} : vector<8x36xf32> to vector<8x22xf32>
    %1558 = vector.extract_strided_slice %1280 {offsets = [0, 9], sizes = [8, 1], strides = [1, 1]} : vector<8x36xf32> to vector<8x1xf32>
    %1559 = vector.broadcast %1558 : vector<8x1xf32> to vector<8x22xf32>
    %1560 = arith.mulf %1557, %1559 : vector<8x22xf32>
    %1561 = arith.addf %1556, %1560 : vector<8x22xf32>
    %1562 = vector.extract_strided_slice %1508 {offsets = [0, 2], sizes = [8, 22], strides = [1, 1]} : vector<8x36xf32> to vector<8x22xf32>
    %1563 = vector.extract_strided_slice %1280 {offsets = [0, 10], sizes = [8, 1], strides = [1, 1]} : vector<8x36xf32> to vector<8x1xf32>
    %1564 = vector.broadcast %1563 : vector<8x1xf32> to vector<8x22xf32>
    %1565 = arith.mulf %1562, %1564 : vector<8x22xf32>
    %1566 = arith.addf %1561, %1565 : vector<8x22xf32>
    %1567 = vector.extract_strided_slice %1510 {offsets = [0, 2], sizes = [8, 22], strides = [1, 1]} : vector<8x36xf32> to vector<8x22xf32>
    %1568 = vector.extract_strided_slice %1280 {offsets = [0, 11], sizes = [8, 1], strides = [1, 1]} : vector<8x36xf32> to vector<8x1xf32>
    %1569 = vector.broadcast %1568 : vector<8x1xf32> to vector<8x22xf32>
    %1570 = arith.mulf %1567, %1569 : vector<8x22xf32>
    %1571 = arith.addf %1566, %1570 : vector<8x22xf32>
    %1572 = vector.extract_strided_slice %1504 {offsets = [0, 6], sizes = [8, 22], strides = [1, 1]} : vector<8x36xf32> to vector<8x22xf32>
    %1573 = vector.extract_strided_slice %1280 {offsets = [0, 12], sizes = [8, 1], strides = [1, 1]} : vector<8x36xf32> to vector<8x1xf32>
    %1574 = vector.broadcast %1573 : vector<8x1xf32> to vector<8x22xf32>
    %1575 = arith.mulf %1572, %1574 : vector<8x22xf32>
    %1576 = arith.addf %1571, %1575 : vector<8x22xf32>
    %1577 = vector.extract_strided_slice %1506 {offsets = [0, 6], sizes = [8, 22], strides = [1, 1]} : vector<8x36xf32> to vector<8x22xf32>
    %1578 = vector.extract_strided_slice %1280 {offsets = [0, 13], sizes = [8, 1], strides = [1, 1]} : vector<8x36xf32> to vector<8x1xf32>
    %1579 = vector.broadcast %1578 : vector<8x1xf32> to vector<8x22xf32>
    %1580 = arith.mulf %1577, %1579 : vector<8x22xf32>
    %1581 = arith.addf %1576, %1580 : vector<8x22xf32>
    %1582 = vector.extract_strided_slice %1508 {offsets = [0, 6], sizes = [8, 22], strides = [1, 1]} : vector<8x36xf32> to vector<8x22xf32>
    %1583 = vector.extract_strided_slice %1280 {offsets = [0, 14], sizes = [8, 1], strides = [1, 1]} : vector<8x36xf32> to vector<8x1xf32>
    %1584 = vector.broadcast %1583 : vector<8x1xf32> to vector<8x22xf32>
    %1585 = arith.mulf %1582, %1584 : vector<8x22xf32>
    %1586 = arith.addf %1581, %1585 : vector<8x22xf32>
    %1587 = vector.extract_strided_slice %1510 {offsets = [0, 6], sizes = [8, 22], strides = [1, 1]} : vector<8x36xf32> to vector<8x22xf32>
    %1588 = vector.extract_strided_slice %1280 {offsets = [0, 15], sizes = [8, 1], strides = [1, 1]} : vector<8x36xf32> to vector<8x1xf32>
    %1589 = vector.broadcast %1588 : vector<8x1xf32> to vector<8x22xf32>
    %1590 = arith.mulf %1587, %1589 : vector<8x22xf32>
    %1591 = arith.addf %1586, %1590 : vector<8x22xf32>
    %1592 = vector.extract_strided_slice %1504 {offsets = [0, 7], sizes = [8, 22], strides = [1, 1]} : vector<8x36xf32> to vector<8x22xf32>
    %1593 = vector.extract_strided_slice %1280 {offsets = [0, 16], sizes = [8, 1], strides = [1, 1]} : vector<8x36xf32> to vector<8x1xf32>
    %1594 = vector.broadcast %1593 : vector<8x1xf32> to vector<8x22xf32>
    %1595 = arith.mulf %1592, %1594 : vector<8x22xf32>
    %1596 = arith.addf %1591, %1595 : vector<8x22xf32>
    %1597 = vector.extract_strided_slice %1506 {offsets = [0, 7], sizes = [8, 22], strides = [1, 1]} : vector<8x36xf32> to vector<8x22xf32>
    %1598 = vector.extract_strided_slice %1280 {offsets = [0, 17], sizes = [8, 1], strides = [1, 1]} : vector<8x36xf32> to vector<8x1xf32>
    %1599 = vector.broadcast %1598 : vector<8x1xf32> to vector<8x22xf32>
    %1600 = arith.mulf %1597, %1599 : vector<8x22xf32>
    %1601 = arith.addf %1596, %1600 : vector<8x22xf32>
    %1602 = vector.extract_strided_slice %1508 {offsets = [0, 7], sizes = [8, 22], strides = [1, 1]} : vector<8x36xf32> to vector<8x22xf32>
    %1603 = vector.extract_strided_slice %1280 {offsets = [0, 18], sizes = [8, 1], strides = [1, 1]} : vector<8x36xf32> to vector<8x1xf32>
    %1604 = vector.broadcast %1603 : vector<8x1xf32> to vector<8x22xf32>
    %1605 = arith.mulf %1602, %1604 : vector<8x22xf32>
    %1606 = arith.addf %1601, %1605 : vector<8x22xf32>
    %1607 = vector.extract_strided_slice %1510 {offsets = [0, 7], sizes = [8, 22], strides = [1, 1]} : vector<8x36xf32> to vector<8x22xf32>
    %1608 = vector.extract_strided_slice %1280 {offsets = [0, 19], sizes = [8, 1], strides = [1, 1]} : vector<8x36xf32> to vector<8x1xf32>
    %1609 = vector.broadcast %1608 : vector<8x1xf32> to vector<8x22xf32>
    %1610 = arith.mulf %1607, %1609 : vector<8x22xf32>
    %1611 = arith.addf %1606, %1610 : vector<8x22xf32>
    %1612 = vector.extract_strided_slice %1504 {offsets = [0, 8], sizes = [8, 22], strides = [1, 1]} : vector<8x36xf32> to vector<8x22xf32>
    %1613 = vector.extract_strided_slice %1280 {offsets = [0, 20], sizes = [8, 1], strides = [1, 1]} : vector<8x36xf32> to vector<8x1xf32>
    %1614 = vector.broadcast %1613 : vector<8x1xf32> to vector<8x22xf32>
    %1615 = arith.mulf %1612, %1614 : vector<8x22xf32>
    %1616 = arith.addf %1611, %1615 : vector<8x22xf32>
    %1617 = vector.extract_strided_slice %1506 {offsets = [0, 8], sizes = [8, 22], strides = [1, 1]} : vector<8x36xf32> to vector<8x22xf32>
    %1618 = vector.extract_strided_slice %1280 {offsets = [0, 21], sizes = [8, 1], strides = [1, 1]} : vector<8x36xf32> to vector<8x1xf32>
    %1619 = vector.broadcast %1618 : vector<8x1xf32> to vector<8x22xf32>
    %1620 = arith.mulf %1617, %1619 : vector<8x22xf32>
    %1621 = arith.addf %1616, %1620 : vector<8x22xf32>
    %1622 = vector.extract_strided_slice %1508 {offsets = [0, 8], sizes = [8, 22], strides = [1, 1]} : vector<8x36xf32> to vector<8x22xf32>
    %1623 = vector.extract_strided_slice %1280 {offsets = [0, 22], sizes = [8, 1], strides = [1, 1]} : vector<8x36xf32> to vector<8x1xf32>
    %1624 = vector.broadcast %1623 : vector<8x1xf32> to vector<8x22xf32>
    %1625 = arith.mulf %1622, %1624 : vector<8x22xf32>
    %1626 = arith.addf %1621, %1625 : vector<8x22xf32>
    %1627 = vector.extract_strided_slice %1510 {offsets = [0, 8], sizes = [8, 22], strides = [1, 1]} : vector<8x36xf32> to vector<8x22xf32>
    %1628 = vector.extract_strided_slice %1280 {offsets = [0, 23], sizes = [8, 1], strides = [1, 1]} : vector<8x36xf32> to vector<8x1xf32>
    %1629 = vector.broadcast %1628 : vector<8x1xf32> to vector<8x22xf32>
    %1630 = arith.mulf %1627, %1629 : vector<8x22xf32>
    %1631 = arith.addf %1626, %1630 : vector<8x22xf32>
    %1632 = vector.extract_strided_slice %1504 {offsets = [0, 12], sizes = [8, 22], strides = [1, 1]} : vector<8x36xf32> to vector<8x22xf32>
    %1633 = vector.extract_strided_slice %1280 {offsets = [0, 24], sizes = [8, 1], strides = [1, 1]} : vector<8x36xf32> to vector<8x1xf32>
    %1634 = vector.broadcast %1633 : vector<8x1xf32> to vector<8x22xf32>
    %1635 = arith.mulf %1632, %1634 : vector<8x22xf32>
    %1636 = arith.addf %1631, %1635 : vector<8x22xf32>
    %1637 = vector.extract_strided_slice %1506 {offsets = [0, 12], sizes = [8, 22], strides = [1, 1]} : vector<8x36xf32> to vector<8x22xf32>
    %1638 = vector.extract_strided_slice %1280 {offsets = [0, 25], sizes = [8, 1], strides = [1, 1]} : vector<8x36xf32> to vector<8x1xf32>
    %1639 = vector.broadcast %1638 : vector<8x1xf32> to vector<8x22xf32>
    %1640 = arith.mulf %1637, %1639 : vector<8x22xf32>
    %1641 = arith.addf %1636, %1640 : vector<8x22xf32>
    %1642 = vector.extract_strided_slice %1508 {offsets = [0, 12], sizes = [8, 22], strides = [1, 1]} : vector<8x36xf32> to vector<8x22xf32>
    %1643 = vector.extract_strided_slice %1280 {offsets = [0, 26], sizes = [8, 1], strides = [1, 1]} : vector<8x36xf32> to vector<8x1xf32>
    %1644 = vector.broadcast %1643 : vector<8x1xf32> to vector<8x22xf32>
    %1645 = arith.mulf %1642, %1644 : vector<8x22xf32>
    %1646 = arith.addf %1641, %1645 : vector<8x22xf32>
    %1647 = vector.extract_strided_slice %1510 {offsets = [0, 12], sizes = [8, 22], strides = [1, 1]} : vector<8x36xf32> to vector<8x22xf32>
    %1648 = vector.extract_strided_slice %1280 {offsets = [0, 27], sizes = [8, 1], strides = [1, 1]} : vector<8x36xf32> to vector<8x1xf32>
    %1649 = vector.broadcast %1648 : vector<8x1xf32> to vector<8x22xf32>
    %1650 = arith.mulf %1647, %1649 : vector<8x22xf32>
    %1651 = arith.addf %1646, %1650 : vector<8x22xf32>
    %1652 = vector.extract_strided_slice %1504 {offsets = [0, 13], sizes = [8, 22], strides = [1, 1]} : vector<8x36xf32> to vector<8x22xf32>
    %1653 = vector.extract_strided_slice %1280 {offsets = [0, 28], sizes = [8, 1], strides = [1, 1]} : vector<8x36xf32> to vector<8x1xf32>
    %1654 = vector.broadcast %1653 : vector<8x1xf32> to vector<8x22xf32>
    %1655 = arith.mulf %1652, %1654 : vector<8x22xf32>
    %1656 = arith.addf %1651, %1655 : vector<8x22xf32>
    %1657 = vector.extract_strided_slice %1506 {offsets = [0, 13], sizes = [8, 22], strides = [1, 1]} : vector<8x36xf32> to vector<8x22xf32>
    %1658 = vector.extract_strided_slice %1280 {offsets = [0, 29], sizes = [8, 1], strides = [1, 1]} : vector<8x36xf32> to vector<8x1xf32>
    %1659 = vector.broadcast %1658 : vector<8x1xf32> to vector<8x22xf32>
    %1660 = arith.mulf %1657, %1659 : vector<8x22xf32>
    %1661 = arith.addf %1656, %1660 : vector<8x22xf32>
    %1662 = vector.extract_strided_slice %1508 {offsets = [0, 13], sizes = [8, 22], strides = [1, 1]} : vector<8x36xf32> to vector<8x22xf32>
    %1663 = vector.extract_strided_slice %1280 {offsets = [0, 30], sizes = [8, 1], strides = [1, 1]} : vector<8x36xf32> to vector<8x1xf32>
    %1664 = vector.broadcast %1663 : vector<8x1xf32> to vector<8x22xf32>
    %1665 = arith.mulf %1662, %1664 : vector<8x22xf32>
    %1666 = arith.addf %1661, %1665 : vector<8x22xf32>
    %1667 = vector.extract_strided_slice %1510 {offsets = [0, 13], sizes = [8, 22], strides = [1, 1]} : vector<8x36xf32> to vector<8x22xf32>
    %1668 = vector.extract_strided_slice %1280 {offsets = [0, 31], sizes = [8, 1], strides = [1, 1]} : vector<8x36xf32> to vector<8x1xf32>
    %1669 = vector.broadcast %1668 : vector<8x1xf32> to vector<8x22xf32>
    %1670 = arith.mulf %1667, %1669 : vector<8x22xf32>
    %1671 = arith.addf %1666, %1670 : vector<8x22xf32>
    %1672 = vector.extract_strided_slice %1504 {offsets = [0, 14], sizes = [8, 22], strides = [1, 1]} : vector<8x36xf32> to vector<8x22xf32>
    %1673 = vector.extract_strided_slice %1280 {offsets = [0, 32], sizes = [8, 1], strides = [1, 1]} : vector<8x36xf32> to vector<8x1xf32>
    %1674 = vector.broadcast %1673 : vector<8x1xf32> to vector<8x22xf32>
    %1675 = arith.mulf %1672, %1674 : vector<8x22xf32>
    %1676 = arith.addf %1671, %1675 : vector<8x22xf32>
    %1677 = vector.extract_strided_slice %1506 {offsets = [0, 14], sizes = [8, 22], strides = [1, 1]} : vector<8x36xf32> to vector<8x22xf32>
    %1678 = vector.extract_strided_slice %1280 {offsets = [0, 33], sizes = [8, 1], strides = [1, 1]} : vector<8x36xf32> to vector<8x1xf32>
    %1679 = vector.broadcast %1678 : vector<8x1xf32> to vector<8x22xf32>
    %1680 = arith.mulf %1677, %1679 : vector<8x22xf32>
    %1681 = arith.addf %1676, %1680 : vector<8x22xf32>
    %1682 = vector.extract_strided_slice %1508 {offsets = [0, 14], sizes = [8, 22], strides = [1, 1]} : vector<8x36xf32> to vector<8x22xf32>
    %1683 = vector.extract_strided_slice %1280 {offsets = [0, 34], sizes = [8, 1], strides = [1, 1]} : vector<8x36xf32> to vector<8x1xf32>
    %1684 = vector.broadcast %1683 : vector<8x1xf32> to vector<8x22xf32>
    %1685 = arith.mulf %1682, %1684 : vector<8x22xf32>
    %1686 = arith.addf %1681, %1685 : vector<8x22xf32>
    %1687 = vector.extract_strided_slice %1510 {offsets = [0, 14], sizes = [8, 22], strides = [1, 1]} : vector<8x36xf32> to vector<8x22xf32>
    %1688 = vector.extract_strided_slice %1280 {offsets = [0, 35], sizes = [8, 1], strides = [1, 1]} : vector<8x36xf32> to vector<8x1xf32>
    %1689 = vector.broadcast %1688 : vector<8x1xf32> to vector<8x22xf32>
    %1690 = arith.mulf %1687, %1689 : vector<8x22xf32>
    %1691 = arith.addf %1686, %1690 : vector<8x22xf32>
    %cst_120 = arith.constant 7.500000e-01 : f32
    %1692 = vector.broadcast %cst_120 : f32 to vector<8x22xf32>
    %1693 = arith.mulf %1692, %1259 : vector<8x22xf32>
    %1694 = arith.subf %1691, %1693 : vector<8x22xf32>
    %cst_121 = arith.constant 1.000000e+00 : f32
    %1695 = vector.broadcast %cst_121 : f32 to vector<8x22xf32>
    %1696 = arith.cmpf oge, %1694, %1695 : vector<8x22xf32>
    %cst_122 = arith.constant 1.000000e+00 : f32
    %cst_123 = arith.constant 0.000000e+00 : f32
    %1697 = vector.broadcast %cst_122 : f32 to vector<8x22xf32>
    %1698 = vector.broadcast %cst_123 : f32 to vector<8x22xf32>
    %1699 = arith.select %1696, %1697, %1698 : vector<8x22xi1>, vector<8x22xf32>
    %cst_124 = arith.constant 4.000000e+00 : f32
    %1700 = vector.broadcast %cst_124 : f32 to vector<8x22xf32>
    %1701 = arith.mulf %1700, %1699 : vector<8x22xf32>
    %1702 = arith.addf %1693, %1701 : vector<8x22xf32>
    %1703 = vector.extract_strided_slice %1699 {offsets = [0, 0], sizes = [8, 4], strides = [1, 1]} : vector<8x22xf32> to vector<8x4xf32>
    %1704 = vector.extract_strided_slice %1699 {offsets = [0, 6], sizes = [8, 4], strides = [1, 1]} : vector<8x22xf32> to vector<8x4xf32>
    %1705 = arith.maximumf %1703, %1704 : vector<8x4xf32>
    %1706 = vector.extract_strided_slice %1705 {offsets = [0, 0], sizes = [8, 1], strides = [1, 1]} : vector<8x4xf32> to vector<8x1xf32>
    %1707 = vector.extract_strided_slice %1705 {offsets = [0, 1], sizes = [8, 1], strides = [1, 1]} : vector<8x4xf32> to vector<8x1xf32>
    %1708 = arith.maximumf %1706, %1707 : vector<8x1xf32>
    %1709 = vector.extract_strided_slice %1705 {offsets = [0, 2], sizes = [8, 1], strides = [1, 1]} : vector<8x4xf32> to vector<8x1xf32>
    %1710 = vector.extract_strided_slice %1705 {offsets = [0, 3], sizes = [8, 1], strides = [1, 1]} : vector<8x4xf32> to vector<8x1xf32>
    %1711 = arith.maximumf %1709, %1710 : vector<8x1xf32>
    %1712 = vector.extract_strided_slice %1699 {offsets = [0, 12], sizes = [8, 4], strides = [1, 1]} : vector<8x22xf32> to vector<8x4xf32>
    %1713 = vector.extract_strided_slice %1699 {offsets = [0, 18], sizes = [8, 4], strides = [1, 1]} : vector<8x22xf32> to vector<8x4xf32>
    %1714 = arith.maximumf %1712, %1713 : vector<8x4xf32>
    %1715 = vector.extract_strided_slice %1714 {offsets = [0, 0], sizes = [8, 1], strides = [1, 1]} : vector<8x4xf32> to vector<8x1xf32>
    %1716 = vector.extract_strided_slice %1714 {offsets = [0, 1], sizes = [8, 1], strides = [1, 1]} : vector<8x4xf32> to vector<8x1xf32>
    %1717 = arith.maximumf %1715, %1716 : vector<8x1xf32>
    %1718 = vector.extract_strided_slice %1714 {offsets = [0, 2], sizes = [8, 1], strides = [1, 1]} : vector<8x4xf32> to vector<8x1xf32>
    %1719 = vector.extract_strided_slice %1714 {offsets = [0, 3], sizes = [8, 1], strides = [1, 1]} : vector<8x4xf32> to vector<8x1xf32>
    %1720 = arith.maximumf %1718, %1719 : vector<8x1xf32>
    %1721 = tpu.concatenate %1708, %1711, %1717, %1720 in 1 : vector<8x1xf32>, vector<8x1xf32>, vector<8x1xf32>, vector<8x1xf32> -> vector<8x4xf32>
    %c0_125 = arith.constant 0 : index
    %c0_126 = arith.constant 0 : index
    %1722 = vector.load %arg3[%c0_125, %c0_126] : memref<8x36xf32, #tpu.memory_space<vmem>>, vector<8x36xf32>
    %cst_127 = arith.constant 0.899999976 : f32
    %1723 = vector.broadcast %cst_127 : f32 to vector<8x36xf32>
    %1724 = arith.mulf %1723, %1497 : vector<8x36xf32>
    %cst_128 = arith.constant 1.000000e+01 : f32
    %1725 = vector.broadcast %cst_128 : f32 to vector<8x36xf32>
    %1726 = arith.mulf %1725, %1502 : vector<8x36xf32>
    %1727 = arith.addf %1724, %1726 : vector<8x36xf32>
    %1728 = vector.extract_strided_slice %1727 {offsets = [0, 0], sizes = [2, 36], strides = [1, 1]} : vector<8x36xf32> to vector<2x36xf32>
    %1729 = tpu.concatenate %1728, %1728, %1728, %1728 in 0 : vector<2x36xf32>, vector<2x36xf32>, vector<2x36xf32>, vector<2x36xf32> -> vector<8x36xf32>
    %1730 = vector.extract_strided_slice %1727 {offsets = [2, 0], sizes = [2, 36], strides = [1, 1]} : vector<8x36xf32> to vector<2x36xf32>
    %1731 = tpu.concatenate %1730, %1730, %1730, %1730 in 0 : vector<2x36xf32>, vector<2x36xf32>, vector<2x36xf32>, vector<2x36xf32> -> vector<8x36xf32>
    %1732 = vector.extract_strided_slice %1727 {offsets = [4, 0], sizes = [2, 36], strides = [1, 1]} : vector<8x36xf32> to vector<2x36xf32>
    %1733 = tpu.concatenate %1732, %1732, %1732, %1732 in 0 : vector<2x36xf32>, vector<2x36xf32>, vector<2x36xf32>, vector<2x36xf32> -> vector<8x36xf32>
    %1734 = vector.extract_strided_slice %1727 {offsets = [6, 0], sizes = [2, 36], strides = [1, 1]} : vector<8x36xf32> to vector<2x36xf32>
    %1735 = tpu.concatenate %1734, %1734, %1734, %1734 in 0 : vector<2x36xf32>, vector<2x36xf32>, vector<2x36xf32>, vector<2x36xf32> -> vector<8x36xf32>
    %cst_129 = arith.constant 0.000000e+00 : f32
    %1736 = vector.broadcast %cst_129 : f32 to vector<8x22xf32>
    %1737 = vector.extract_strided_slice %1729 {offsets = [0, 0], sizes = [8, 22], strides = [1, 1]} : vector<8x36xf32> to vector<8x22xf32>
    %1738 = vector.extract_strided_slice %1722 {offsets = [0, 0], sizes = [8, 1], strides = [1, 1]} : vector<8x36xf32> to vector<8x1xf32>
    %1739 = vector.broadcast %1738 : vector<8x1xf32> to vector<8x22xf32>
    %1740 = arith.mulf %1737, %1739 : vector<8x22xf32>
    %1741 = arith.addf %1736, %1740 : vector<8x22xf32>
    %1742 = vector.extract_strided_slice %1731 {offsets = [0, 0], sizes = [8, 22], strides = [1, 1]} : vector<8x36xf32> to vector<8x22xf32>
    %1743 = vector.extract_strided_slice %1722 {offsets = [0, 1], sizes = [8, 1], strides = [1, 1]} : vector<8x36xf32> to vector<8x1xf32>
    %1744 = vector.broadcast %1743 : vector<8x1xf32> to vector<8x22xf32>
    %1745 = arith.mulf %1742, %1744 : vector<8x22xf32>
    %1746 = arith.addf %1741, %1745 : vector<8x22xf32>
    %1747 = vector.extract_strided_slice %1733 {offsets = [0, 0], sizes = [8, 22], strides = [1, 1]} : vector<8x36xf32> to vector<8x22xf32>
    %1748 = vector.extract_strided_slice %1722 {offsets = [0, 2], sizes = [8, 1], strides = [1, 1]} : vector<8x36xf32> to vector<8x1xf32>
    %1749 = vector.broadcast %1748 : vector<8x1xf32> to vector<8x22xf32>
    %1750 = arith.mulf %1747, %1749 : vector<8x22xf32>
    %1751 = arith.addf %1746, %1750 : vector<8x22xf32>
    %1752 = vector.extract_strided_slice %1735 {offsets = [0, 0], sizes = [8, 22], strides = [1, 1]} : vector<8x36xf32> to vector<8x22xf32>
    %1753 = vector.extract_strided_slice %1722 {offsets = [0, 3], sizes = [8, 1], strides = [1, 1]} : vector<8x36xf32> to vector<8x1xf32>
    %1754 = vector.broadcast %1753 : vector<8x1xf32> to vector<8x22xf32>
    %1755 = arith.mulf %1752, %1754 : vector<8x22xf32>
    %1756 = arith.addf %1751, %1755 : vector<8x22xf32>
    %1757 = vector.extract_strided_slice %1729 {offsets = [0, 1], sizes = [8, 22], strides = [1, 1]} : vector<8x36xf32> to vector<8x22xf32>
    %1758 = vector.extract_strided_slice %1722 {offsets = [0, 4], sizes = [8, 1], strides = [1, 1]} : vector<8x36xf32> to vector<8x1xf32>
    %1759 = vector.broadcast %1758 : vector<8x1xf32> to vector<8x22xf32>
    %1760 = arith.mulf %1757, %1759 : vector<8x22xf32>
    %1761 = arith.addf %1756, %1760 : vector<8x22xf32>
    %1762 = vector.extract_strided_slice %1731 {offsets = [0, 1], sizes = [8, 22], strides = [1, 1]} : vector<8x36xf32> to vector<8x22xf32>
    %1763 = vector.extract_strided_slice %1722 {offsets = [0, 5], sizes = [8, 1], strides = [1, 1]} : vector<8x36xf32> to vector<8x1xf32>
    %1764 = vector.broadcast %1763 : vector<8x1xf32> to vector<8x22xf32>
    %1765 = arith.mulf %1762, %1764 : vector<8x22xf32>
    %1766 = arith.addf %1761, %1765 : vector<8x22xf32>
    %1767 = vector.extract_strided_slice %1733 {offsets = [0, 1], sizes = [8, 22], strides = [1, 1]} : vector<8x36xf32> to vector<8x22xf32>
    %1768 = vector.extract_strided_slice %1722 {offsets = [0, 6], sizes = [8, 1], strides = [1, 1]} : vector<8x36xf32> to vector<8x1xf32>
    %1769 = vector.broadcast %1768 : vector<8x1xf32> to vector<8x22xf32>
    %1770 = arith.mulf %1767, %1769 : vector<8x22xf32>
    %1771 = arith.addf %1766, %1770 : vector<8x22xf32>
    %1772 = vector.extract_strided_slice %1735 {offsets = [0, 1], sizes = [8, 22], strides = [1, 1]} : vector<8x36xf32> to vector<8x22xf32>
    %1773 = vector.extract_strided_slice %1722 {offsets = [0, 7], sizes = [8, 1], strides = [1, 1]} : vector<8x36xf32> to vector<8x1xf32>
    %1774 = vector.broadcast %1773 : vector<8x1xf32> to vector<8x22xf32>
    %1775 = arith.mulf %1772, %1774 : vector<8x22xf32>
    %1776 = arith.addf %1771, %1775 : vector<8x22xf32>
    %1777 = vector.extract_strided_slice %1729 {offsets = [0, 2], sizes = [8, 22], strides = [1, 1]} : vector<8x36xf32> to vector<8x22xf32>
    %1778 = vector.extract_strided_slice %1722 {offsets = [0, 8], sizes = [8, 1], strides = [1, 1]} : vector<8x36xf32> to vector<8x1xf32>
    %1779 = vector.broadcast %1778 : vector<8x1xf32> to vector<8x22xf32>
    %1780 = arith.mulf %1777, %1779 : vector<8x22xf32>
    %1781 = arith.addf %1776, %1780 : vector<8x22xf32>
    %1782 = vector.extract_strided_slice %1731 {offsets = [0, 2], sizes = [8, 22], strides = [1, 1]} : vector<8x36xf32> to vector<8x22xf32>
    %1783 = vector.extract_strided_slice %1722 {offsets = [0, 9], sizes = [8, 1], strides = [1, 1]} : vector<8x36xf32> to vector<8x1xf32>
    %1784 = vector.broadcast %1783 : vector<8x1xf32> to vector<8x22xf32>
    %1785 = arith.mulf %1782, %1784 : vector<8x22xf32>
    %1786 = arith.addf %1781, %1785 : vector<8x22xf32>
    %1787 = vector.extract_strided_slice %1733 {offsets = [0, 2], sizes = [8, 22], strides = [1, 1]} : vector<8x36xf32> to vector<8x22xf32>
    %1788 = vector.extract_strided_slice %1722 {offsets = [0, 10], sizes = [8, 1], strides = [1, 1]} : vector<8x36xf32> to vector<8x1xf32>
    %1789 = vector.broadcast %1788 : vector<8x1xf32> to vector<8x22xf32>
    %1790 = arith.mulf %1787, %1789 : vector<8x22xf32>
    %1791 = arith.addf %1786, %1790 : vector<8x22xf32>
    %1792 = vector.extract_strided_slice %1735 {offsets = [0, 2], sizes = [8, 22], strides = [1, 1]} : vector<8x36xf32> to vector<8x22xf32>
    %1793 = vector.extract_strided_slice %1722 {offsets = [0, 11], sizes = [8, 1], strides = [1, 1]} : vector<8x36xf32> to vector<8x1xf32>
    %1794 = vector.broadcast %1793 : vector<8x1xf32> to vector<8x22xf32>
    %1795 = arith.mulf %1792, %1794 : vector<8x22xf32>
    %1796 = arith.addf %1791, %1795 : vector<8x22xf32>
    %1797 = vector.extract_strided_slice %1729 {offsets = [0, 6], sizes = [8, 22], strides = [1, 1]} : vector<8x36xf32> to vector<8x22xf32>
    %1798 = vector.extract_strided_slice %1722 {offsets = [0, 12], sizes = [8, 1], strides = [1, 1]} : vector<8x36xf32> to vector<8x1xf32>
    %1799 = vector.broadcast %1798 : vector<8x1xf32> to vector<8x22xf32>
    %1800 = arith.mulf %1797, %1799 : vector<8x22xf32>
    %1801 = arith.addf %1796, %1800 : vector<8x22xf32>
    %1802 = vector.extract_strided_slice %1731 {offsets = [0, 6], sizes = [8, 22], strides = [1, 1]} : vector<8x36xf32> to vector<8x22xf32>
    %1803 = vector.extract_strided_slice %1722 {offsets = [0, 13], sizes = [8, 1], strides = [1, 1]} : vector<8x36xf32> to vector<8x1xf32>
    %1804 = vector.broadcast %1803 : vector<8x1xf32> to vector<8x22xf32>
    %1805 = arith.mulf %1802, %1804 : vector<8x22xf32>
    %1806 = arith.addf %1801, %1805 : vector<8x22xf32>
    %1807 = vector.extract_strided_slice %1733 {offsets = [0, 6], sizes = [8, 22], strides = [1, 1]} : vector<8x36xf32> to vector<8x22xf32>
    %1808 = vector.extract_strided_slice %1722 {offsets = [0, 14], sizes = [8, 1], strides = [1, 1]} : vector<8x36xf32> to vector<8x1xf32>
    %1809 = vector.broadcast %1808 : vector<8x1xf32> to vector<8x22xf32>
    %1810 = arith.mulf %1807, %1809 : vector<8x22xf32>
    %1811 = arith.addf %1806, %1810 : vector<8x22xf32>
    %1812 = vector.extract_strided_slice %1735 {offsets = [0, 6], sizes = [8, 22], strides = [1, 1]} : vector<8x36xf32> to vector<8x22xf32>
    %1813 = vector.extract_strided_slice %1722 {offsets = [0, 15], sizes = [8, 1], strides = [1, 1]} : vector<8x36xf32> to vector<8x1xf32>
    %1814 = vector.broadcast %1813 : vector<8x1xf32> to vector<8x22xf32>
    %1815 = arith.mulf %1812, %1814 : vector<8x22xf32>
    %1816 = arith.addf %1811, %1815 : vector<8x22xf32>
    %1817 = vector.extract_strided_slice %1729 {offsets = [0, 7], sizes = [8, 22], strides = [1, 1]} : vector<8x36xf32> to vector<8x22xf32>
    %1818 = vector.extract_strided_slice %1722 {offsets = [0, 16], sizes = [8, 1], strides = [1, 1]} : vector<8x36xf32> to vector<8x1xf32>
    %1819 = vector.broadcast %1818 : vector<8x1xf32> to vector<8x22xf32>
    %1820 = arith.mulf %1817, %1819 : vector<8x22xf32>
    %1821 = arith.addf %1816, %1820 : vector<8x22xf32>
    %1822 = vector.extract_strided_slice %1731 {offsets = [0, 7], sizes = [8, 22], strides = [1, 1]} : vector<8x36xf32> to vector<8x22xf32>
    %1823 = vector.extract_strided_slice %1722 {offsets = [0, 17], sizes = [8, 1], strides = [1, 1]} : vector<8x36xf32> to vector<8x1xf32>
    %1824 = vector.broadcast %1823 : vector<8x1xf32> to vector<8x22xf32>
    %1825 = arith.mulf %1822, %1824 : vector<8x22xf32>
    %1826 = arith.addf %1821, %1825 : vector<8x22xf32>
    %1827 = vector.extract_strided_slice %1733 {offsets = [0, 7], sizes = [8, 22], strides = [1, 1]} : vector<8x36xf32> to vector<8x22xf32>
    %1828 = vector.extract_strided_slice %1722 {offsets = [0, 18], sizes = [8, 1], strides = [1, 1]} : vector<8x36xf32> to vector<8x1xf32>
    %1829 = vector.broadcast %1828 : vector<8x1xf32> to vector<8x22xf32>
    %1830 = arith.mulf %1827, %1829 : vector<8x22xf32>
    %1831 = arith.addf %1826, %1830 : vector<8x22xf32>
    %1832 = vector.extract_strided_slice %1735 {offsets = [0, 7], sizes = [8, 22], strides = [1, 1]} : vector<8x36xf32> to vector<8x22xf32>
    %1833 = vector.extract_strided_slice %1722 {offsets = [0, 19], sizes = [8, 1], strides = [1, 1]} : vector<8x36xf32> to vector<8x1xf32>
    %1834 = vector.broadcast %1833 : vector<8x1xf32> to vector<8x22xf32>
    %1835 = arith.mulf %1832, %1834 : vector<8x22xf32>
    %1836 = arith.addf %1831, %1835 : vector<8x22xf32>
    %1837 = vector.extract_strided_slice %1729 {offsets = [0, 8], sizes = [8, 22], strides = [1, 1]} : vector<8x36xf32> to vector<8x22xf32>
    %1838 = vector.extract_strided_slice %1722 {offsets = [0, 20], sizes = [8, 1], strides = [1, 1]} : vector<8x36xf32> to vector<8x1xf32>
    %1839 = vector.broadcast %1838 : vector<8x1xf32> to vector<8x22xf32>
    %1840 = arith.mulf %1837, %1839 : vector<8x22xf32>
    %1841 = arith.addf %1836, %1840 : vector<8x22xf32>
    %1842 = vector.extract_strided_slice %1731 {offsets = [0, 8], sizes = [8, 22], strides = [1, 1]} : vector<8x36xf32> to vector<8x22xf32>
    %1843 = vector.extract_strided_slice %1722 {offsets = [0, 21], sizes = [8, 1], strides = [1, 1]} : vector<8x36xf32> to vector<8x1xf32>
    %1844 = vector.broadcast %1843 : vector<8x1xf32> to vector<8x22xf32>
    %1845 = arith.mulf %1842, %1844 : vector<8x22xf32>
    %1846 = arith.addf %1841, %1845 : vector<8x22xf32>
    %1847 = vector.extract_strided_slice %1733 {offsets = [0, 8], sizes = [8, 22], strides = [1, 1]} : vector<8x36xf32> to vector<8x22xf32>
    %1848 = vector.extract_strided_slice %1722 {offsets = [0, 22], sizes = [8, 1], strides = [1, 1]} : vector<8x36xf32> to vector<8x1xf32>
    %1849 = vector.broadcast %1848 : vector<8x1xf32> to vector<8x22xf32>
    %1850 = arith.mulf %1847, %1849 : vector<8x22xf32>
    %1851 = arith.addf %1846, %1850 : vector<8x22xf32>
    %1852 = vector.extract_strided_slice %1735 {offsets = [0, 8], sizes = [8, 22], strides = [1, 1]} : vector<8x36xf32> to vector<8x22xf32>
    %1853 = vector.extract_strided_slice %1722 {offsets = [0, 23], sizes = [8, 1], strides = [1, 1]} : vector<8x36xf32> to vector<8x1xf32>
    %1854 = vector.broadcast %1853 : vector<8x1xf32> to vector<8x22xf32>
    %1855 = arith.mulf %1852, %1854 : vector<8x22xf32>
    %1856 = arith.addf %1851, %1855 : vector<8x22xf32>
    %1857 = vector.extract_strided_slice %1729 {offsets = [0, 12], sizes = [8, 22], strides = [1, 1]} : vector<8x36xf32> to vector<8x22xf32>
    %1858 = vector.extract_strided_slice %1722 {offsets = [0, 24], sizes = [8, 1], strides = [1, 1]} : vector<8x36xf32> to vector<8x1xf32>
    %1859 = vector.broadcast %1858 : vector<8x1xf32> to vector<8x22xf32>
    %1860 = arith.mulf %1857, %1859 : vector<8x22xf32>
    %1861 = arith.addf %1856, %1860 : vector<8x22xf32>
    %1862 = vector.extract_strided_slice %1731 {offsets = [0, 12], sizes = [8, 22], strides = [1, 1]} : vector<8x36xf32> to vector<8x22xf32>
    %1863 = vector.extract_strided_slice %1722 {offsets = [0, 25], sizes = [8, 1], strides = [1, 1]} : vector<8x36xf32> to vector<8x1xf32>
    %1864 = vector.broadcast %1863 : vector<8x1xf32> to vector<8x22xf32>
    %1865 = arith.mulf %1862, %1864 : vector<8x22xf32>
    %1866 = arith.addf %1861, %1865 : vector<8x22xf32>
    %1867 = vector.extract_strided_slice %1733 {offsets = [0, 12], sizes = [8, 22], strides = [1, 1]} : vector<8x36xf32> to vector<8x22xf32>
    %1868 = vector.extract_strided_slice %1722 {offsets = [0, 26], sizes = [8, 1], strides = [1, 1]} : vector<8x36xf32> to vector<8x1xf32>
    %1869 = vector.broadcast %1868 : vector<8x1xf32> to vector<8x22xf32>
    %1870 = arith.mulf %1867, %1869 : vector<8x22xf32>
    %1871 = arith.addf %1866, %1870 : vector<8x22xf32>
    %1872 = vector.extract_strided_slice %1735 {offsets = [0, 12], sizes = [8, 22], strides = [1, 1]} : vector<8x36xf32> to vector<8x22xf32>
    %1873 = vector.extract_strided_slice %1722 {offsets = [0, 27], sizes = [8, 1], strides = [1, 1]} : vector<8x36xf32> to vector<8x1xf32>
    %1874 = vector.broadcast %1873 : vector<8x1xf32> to vector<8x22xf32>
    %1875 = arith.mulf %1872, %1874 : vector<8x22xf32>
    %1876 = arith.addf %1871, %1875 : vector<8x22xf32>
    %1877 = vector.extract_strided_slice %1729 {offsets = [0, 13], sizes = [8, 22], strides = [1, 1]} : vector<8x36xf32> to vector<8x22xf32>
    %1878 = vector.extract_strided_slice %1722 {offsets = [0, 28], sizes = [8, 1], strides = [1, 1]} : vector<8x36xf32> to vector<8x1xf32>
    %1879 = vector.broadcast %1878 : vector<8x1xf32> to vector<8x22xf32>
    %1880 = arith.mulf %1877, %1879 : vector<8x22xf32>
    %1881 = arith.addf %1876, %1880 : vector<8x22xf32>
    %1882 = vector.extract_strided_slice %1731 {offsets = [0, 13], sizes = [8, 22], strides = [1, 1]} : vector<8x36xf32> to vector<8x22xf32>
    %1883 = vector.extract_strided_slice %1722 {offsets = [0, 29], sizes = [8, 1], strides = [1, 1]} : vector<8x36xf32> to vector<8x1xf32>
    %1884 = vector.broadcast %1883 : vector<8x1xf32> to vector<8x22xf32>
    %1885 = arith.mulf %1882, %1884 : vector<8x22xf32>
    %1886 = arith.addf %1881, %1885 : vector<8x22xf32>
    %1887 = vector.extract_strided_slice %1733 {offsets = [0, 13], sizes = [8, 22], strides = [1, 1]} : vector<8x36xf32> to vector<8x22xf32>
    %1888 = vector.extract_strided_slice %1722 {offsets = [0, 30], sizes = [8, 1], strides = [1, 1]} : vector<8x36xf32> to vector<8x1xf32>
    %1889 = vector.broadcast %1888 : vector<8x1xf32> to vector<8x22xf32>
    %1890 = arith.mulf %1887, %1889 : vector<8x22xf32>
    %1891 = arith.addf %1886, %1890 : vector<8x22xf32>
    %1892 = vector.extract_strided_slice %1735 {offsets = [0, 13], sizes = [8, 22], strides = [1, 1]} : vector<8x36xf32> to vector<8x22xf32>
    %1893 = vector.extract_strided_slice %1722 {offsets = [0, 31], sizes = [8, 1], strides = [1, 1]} : vector<8x36xf32> to vector<8x1xf32>
    %1894 = vector.broadcast %1893 : vector<8x1xf32> to vector<8x22xf32>
    %1895 = arith.mulf %1892, %1894 : vector<8x22xf32>
    %1896 = arith.addf %1891, %1895 : vector<8x22xf32>
    %1897 = vector.extract_strided_slice %1729 {offsets = [0, 14], sizes = [8, 22], strides = [1, 1]} : vector<8x36xf32> to vector<8x22xf32>
    %1898 = vector.extract_strided_slice %1722 {offsets = [0, 32], sizes = [8, 1], strides = [1, 1]} : vector<8x36xf32> to vector<8x1xf32>
    %1899 = vector.broadcast %1898 : vector<8x1xf32> to vector<8x22xf32>
    %1900 = arith.mulf %1897, %1899 : vector<8x22xf32>
    %1901 = arith.addf %1896, %1900 : vector<8x22xf32>
    %1902 = vector.extract_strided_slice %1731 {offsets = [0, 14], sizes = [8, 22], strides = [1, 1]} : vector<8x36xf32> to vector<8x22xf32>
    %1903 = vector.extract_strided_slice %1722 {offsets = [0, 33], sizes = [8, 1], strides = [1, 1]} : vector<8x36xf32> to vector<8x1xf32>
    %1904 = vector.broadcast %1903 : vector<8x1xf32> to vector<8x22xf32>
    %1905 = arith.mulf %1902, %1904 : vector<8x22xf32>
    %1906 = arith.addf %1901, %1905 : vector<8x22xf32>
    %1907 = vector.extract_strided_slice %1733 {offsets = [0, 14], sizes = [8, 22], strides = [1, 1]} : vector<8x36xf32> to vector<8x22xf32>
    %1908 = vector.extract_strided_slice %1722 {offsets = [0, 34], sizes = [8, 1], strides = [1, 1]} : vector<8x36xf32> to vector<8x1xf32>
    %1909 = vector.broadcast %1908 : vector<8x1xf32> to vector<8x22xf32>
    %1910 = arith.mulf %1907, %1909 : vector<8x22xf32>
    %1911 = arith.addf %1906, %1910 : vector<8x22xf32>
    %1912 = vector.extract_strided_slice %1735 {offsets = [0, 14], sizes = [8, 22], strides = [1, 1]} : vector<8x36xf32> to vector<8x22xf32>
    %1913 = vector.extract_strided_slice %1722 {offsets = [0, 35], sizes = [8, 1], strides = [1, 1]} : vector<8x36xf32> to vector<8x1xf32>
    %1914 = vector.broadcast %1913 : vector<8x1xf32> to vector<8x22xf32>
    %1915 = arith.mulf %1912, %1914 : vector<8x22xf32>
    %1916 = arith.addf %1911, %1915 : vector<8x22xf32>
    %cst_130 = arith.constant 7.500000e-01 : f32
    %1917 = vector.broadcast %cst_130 : f32 to vector<8x22xf32>
    %1918 = arith.mulf %1917, %1702 : vector<8x22xf32>
    %1919 = arith.subf %1916, %1918 : vector<8x22xf32>
    %cst_131 = arith.constant 1.000000e+00 : f32
    %1920 = vector.broadcast %cst_131 : f32 to vector<8x22xf32>
    %1921 = arith.cmpf oge, %1919, %1920 : vector<8x22xf32>
    %cst_132 = arith.constant 1.000000e+00 : f32
    %cst_133 = arith.constant 0.000000e+00 : f32
    %1922 = vector.broadcast %cst_132 : f32 to vector<8x22xf32>
    %1923 = vector.broadcast %cst_133 : f32 to vector<8x22xf32>
    %1924 = arith.select %1921, %1922, %1923 : vector<8x22xi1>, vector<8x22xf32>
    %1925 = vector.extract_strided_slice %1924 {offsets = [0, 0], sizes = [8, 4], strides = [1, 1]} : vector<8x22xf32> to vector<8x4xf32>
    %1926 = vector.extract_strided_slice %1924 {offsets = [0, 6], sizes = [8, 4], strides = [1, 1]} : vector<8x22xf32> to vector<8x4xf32>
    %1927 = arith.maximumf %1925, %1926 : vector<8x4xf32>
    %1928 = vector.extract_strided_slice %1927 {offsets = [0, 0], sizes = [8, 1], strides = [1, 1]} : vector<8x4xf32> to vector<8x1xf32>
    %1929 = vector.extract_strided_slice %1927 {offsets = [0, 1], sizes = [8, 1], strides = [1, 1]} : vector<8x4xf32> to vector<8x1xf32>
    %1930 = arith.maximumf %1928, %1929 : vector<8x1xf32>
    %1931 = vector.extract_strided_slice %1927 {offsets = [0, 2], sizes = [8, 1], strides = [1, 1]} : vector<8x4xf32> to vector<8x1xf32>
    %1932 = vector.extract_strided_slice %1927 {offsets = [0, 3], sizes = [8, 1], strides = [1, 1]} : vector<8x4xf32> to vector<8x1xf32>
    %1933 = arith.maximumf %1931, %1932 : vector<8x1xf32>
    %1934 = vector.extract_strided_slice %1924 {offsets = [0, 12], sizes = [8, 4], strides = [1, 1]} : vector<8x22xf32> to vector<8x4xf32>
    %1935 = vector.extract_strided_slice %1924 {offsets = [0, 18], sizes = [8, 4], strides = [1, 1]} : vector<8x22xf32> to vector<8x4xf32>
    %1936 = arith.maximumf %1934, %1935 : vector<8x4xf32>
    %1937 = vector.extract_strided_slice %1936 {offsets = [0, 0], sizes = [8, 1], strides = [1, 1]} : vector<8x4xf32> to vector<8x1xf32>
    %1938 = vector.extract_strided_slice %1936 {offsets = [0, 1], sizes = [8, 1], strides = [1, 1]} : vector<8x4xf32> to vector<8x1xf32>
    %1939 = arith.maximumf %1937, %1938 : vector<8x1xf32>
    %1940 = vector.extract_strided_slice %1936 {offsets = [0, 2], sizes = [8, 1], strides = [1, 1]} : vector<8x4xf32> to vector<8x1xf32>
    %1941 = vector.extract_strided_slice %1936 {offsets = [0, 3], sizes = [8, 1], strides = [1, 1]} : vector<8x4xf32> to vector<8x1xf32>
    %1942 = arith.maximumf %1940, %1941 : vector<8x1xf32>
    %1943 = tpu.concatenate %1930, %1933, %1939, %1942 in 1 : vector<8x1xf32>, vector<8x1xf32>, vector<8x1xf32>, vector<8x1xf32> -> vector<8x4xf32>
    %1944 = tpu.concatenate %648, %1278, %1721, %1943 in 1 : vector<8x4xf32>, vector<8x4xf32>, vector<8x4xf32>, vector<8x4xf32> -> vector<8x16xf32>
    %c0_134 = arith.constant 0 : index
    %c0_135 = arith.constant 0 : index
    %1945 = vector.load %arg4[%c0_134, %c0_135] : memref<8x16xf32, #tpu.memory_space<vmem>>, vector<8x16xf32>
    tpu.vector_store %arg4[%c0_134, %c0_135], %1944 {strides = array<i32>} : memref<8x16xf32, #tpu.memory_space<vmem>>, vector<8x16xf32>,
    return
  }
}

</mosaic_0001>

<llo_original>
// kernel: backbone_forward.1
$region0: #{backbone_forward.1}
  #allocation0 [shape = 'u32[]', space=smem, size = 0x4, offset = 0x4, fixed_abs, tag = 'smem constant byte address 0x4 - core index']
  #allocation1 [shape = 'u32[72,128]{1,0:T(1,128)}', space=vmem, size = 0x9000, scoped, tag = 'internal scratch']
  %s0 = inlined_call_operand.vmem [shape: f32[4,4,100], index: 0, kind: input, shape index: {}]
  %s1 = inlined_call_operand.vmem [shape: f32[8,18], index: 1, kind: input, shape index: {}]
  %s2 = inlined_call_operand.vmem [shape: f32[8,36], index: 2, kind: input, shape index: {}]
  %s3 = inlined_call_operand.vmem [shape: f32[8,36], index: 3, kind: input, shape index: {}]
  %s4 = inlined_call_operand.vmem [shape: f32[8,16], index: 4, kind: output, shape index: {}]
  %s5 = sld [smem:[#allocation0]]
  $region26: #{backbone_forward.1} parent=0
    _
  %s7 = ssub.s32 1, %s5
  %s8 = scalar_select 0, %s7, %s5
  // Predicated region
  $region2: #{backbone_forward.1} parent=0 // pred_check
    _
  $region3: #{backbone_forward.1} parent=0 // pred_check_branch
    %10 = sbr.rel (0) target = $region5
  $region4: #{backbone_forward.1} parent=0 // pred_region
    _
  $region5: #{backbone_forward.1} parent=0 // pred_fallthru
    _
  // Predicated region
  $region6: #{backbone_forward.1} parent=0 // pred_check
    _
  $region7: #{backbone_forward.1} parent=0 // pred_check_branch
    %12 = sbr.rel (0) target = $region9
  $region8: #{backbone_forward.1} parent=0 // pred_region
    _
  $region9: #{backbone_forward.1} parent=0 // pred_fallthru
    _
  // Predicated region
  $region10: #{backbone_forward.1} parent=0 // pred_check
    _
  $region11: #{backbone_forward.1} parent=0 // pred_check_branch
    %14 = sbr.rel (0) target = $region13
  $region12: #{backbone_forward.1} parent=0 // pred_region
    _
  $region13: #{backbone_forward.1} parent=0 // pred_fallthru
    _
  // Predicated region
  $region14: #{backbone_forward.1} parent=0 // pred_check
    _
  $region15: #{backbone_forward.1} parent=0 // pred_check_branch
    %16 = sbr.rel (0) target = $region17
  $region16: #{backbone_forward.1} parent=0 // pred_region
    _
  $region17: #{backbone_forward.1} parent=0 // pred_fallthru
    _
  %v17 = vld [vmem:[%s1] sm:$0xff]
  %v18 = vld [vmem:[%s2] sm:$0xff]
  %v19 = vld [vmem:[%s3] sm:$0xff]
  %v20 = vld [vmem:[%s0] sm:$0xf]
  %v21 = vmul.f32 %v20, 5.0
  %v22 = vadd.f32 %v21, 0.0
  %24 = vset.pattern.permute.xlu0 0
  %25 = vperm.xlu0 %24, %v17
  %v26 = vpop.permute.xlu0 %25
  %v28 = vmul.f32 %v26, 0.0
  %v29 = vadd.f32 %v28, 0.0
  %30 = vset.pattern.permute.xlu0 1
  %31 = vperm.xlu0 %30, %v17
  %v32 = vpop.permute.xlu0 %31
  %v34 = vmul.f32 %v32, 0.0
  %v35 = vadd.f32 %v29, %v34
  %36 = vset.pattern.permute.xlu0 2
  %37 = vperm.xlu0 %36, %v17
  %v38 = vpop.permute.xlu0 %37
  %v40 = vmul.f32 %v38, 0.0
  %42 = vrot.lane.b32.xlu0 %v40, 127
  %v43 = vpop.permute.xlu0 %42
  %v45 = vadd.f32 %v35, %v43
  %46 = vset.pattern.permute.xlu0 3
  %47 = vperm.xlu0 %46, %v17
  %v48 = vpop.permute.xlu0 %47
  %v50 = vmul.f32 %v48, 0.0
  %52 = vrot.lane.b32.xlu0 %v50, 127
  %v53 = vpop.permute.xlu0 %52
  %v55 = vadd.f32 %v45, %v53
  %56 = vset.pattern.permute.xlu0 4
  %57 = vperm.xlu0 %56, %v17
  %v58 = vpop.permute.xlu0 %57
  %v60 = vmul.f32 %v58, 0.0
  %62 = vrot.lane.b32.xlu0 %v60, 126
  %v63 = vpop.permute.xlu0 %62
  %v65 = vadd.f32 %v55, %v63
  %66 = vset.pattern.permute.xlu0 5
  %67 = vperm.xlu0 %66, %v17
  %v68 = vpop.permute.xlu0 %67
  %v70 = vmul.f32 %v68, 0.0
  %72 = vrot.lane.b32.xlu0 %v70, 126
  %v73 = vpop.permute.xlu0 %72
  %v75 = vadd.f32 %v65, %v73
  %76 = vset.pattern.permute.xlu0 6
  %77 = vperm.xlu0 %76, %v17
  %v78 = vpop.permute.xlu0 %77
  %v80 = vmul.f32 %v78, 0.0
  %82 = vrot.lane.b32.xlu0 %v80, 118
  %v83 = vpop.permute.xlu0 %82
  %v85 = vadd.f32 %v75, %v83
  %86 = vset.pattern.permute.xlu0 7
  %87 = vperm.xlu0 %86, %v17
  %v88 = vpop.permute.xlu0 %87
  %v90 = vmul.f32 %v88, 0.0
  %92 = vrot.lane.b32.xlu0 %v90, 118
  %v93 = vpop.permute.xlu0 %92
  %v95 = vadd.f32 %v85, %v93
  %96 = vset.pattern.permute.xlu0 8
  %97 = vperm.xlu0 %96, %v17
  %v98 = vpop.permute.xlu0 %97
  %v100 = vmul.f32 %v98, 0.0
  %102 = vrot.lane.b32.xlu0 %v100, 117
  %v103 = vpop.permute.xlu0 %102
  %v105 = vadd.f32 %v95, %v103
  %106 = vset.pattern.permute.xlu0 9
  %107 = vperm.xlu0 %106, %v17
  %v108 = vpop.permute.xlu0 %107
  %v110 = vmul.f32 %v108, 0.0
  %112 = vrot.lane.b32.xlu0 %v110, 117
  %v113 = vpop.permute.xlu0 %112
  %v115 = vadd.f32 %v105, %v113
  %116 = vset.pattern.permute.xlu0 10
  %117 = vperm.xlu0 %116, %v17
  %v118 = vpop.permute.xlu0 %117
  %v120 = vmul.f32 %v118, 0.0
  %122 = vrot.lane.b32.xlu0 %v120, 116
  %v123 = vpop.permute.xlu0 %122
  %v125 = vadd.f32 %v115, %v123
  %126 = vset.pattern.permute.xlu0 11
  %127 = vperm.xlu0 %126, %v17
  %v128 = vpop.permute.xlu0 %127
  %v130 = vmul.f32 %v128, 0.0
  %132 = vrot.lane.b32.xlu0 %v130, 116
  %v133 = vpop.permute.xlu0 %132
  %v135 = vadd.f32 %v125, %v133
  %136 = vset.pattern.permute.xlu0 12
  %137 = vperm.xlu0 %136, %v17
  %v138 = vpop.permute.xlu0 %137
  %v140 = vmul.f32 %v138, 0.0
  %142 = vrot.lane.b32.xlu0 %v140, 108
  %v143 = vpop.permute.xlu0 %142
  %v145 = vadd.f32 %v135, %v143
  %146 = vset.pattern.permute.xlu0 13
  %147 = vperm.xlu0 %146, %v17
  %v148 = vpop.permute.xlu0 %147
  %v150 = vmul.f32 %v148, 0.0
  %152 = vrot.lane.b32.xlu0 %v150, 108
  %v153 = vpop.permute.xlu0 %152
  %v155 = vadd.f32 %v145, %v153
  %156 = vset.pattern.permute.xlu0 14
  %157 = vperm.xlu0 %156, %v17
  %v158 = vpop.permute.xlu0 %157
  %v160 = vmul.f32 %v158, 0.0
  %162 = vrot.lane.b32.xlu0 %v160, 107
  %v163 = vpop.permute.xlu0 %162
  %v165 = vadd.f32 %v155, %v163
  %166 = vset.pattern.permute.xlu0 15
  %167 = vperm.xlu0 %166, %v17
  %v168 = vpop.permute.xlu0 %167
  %v170 = vmul.f32 %v168, 0.0
  %172 = vrot.lane.b32.xlu0 %v170, 107
  %v173 = vpop.permute.xlu0 %172
  %v175 = vadd.f32 %v165, %v173
  %176 = vset.pattern.permute.xlu0 16
  %177 = vperm.xlu0 %176, %v17
  %v178 = vpop.permute.xlu0 %177
  %v180 = vmul.f32 %v178, 0.0
  %182 = vrot.lane.b32.xlu0 %v180, 106
  %v183 = vpop.permute.xlu0 %182
  %v185 = vadd.f32 %v175, %v183
  %186 = vset.pattern.permute.xlu0 17
  %187 = vperm.xlu0 %186, %v17
  %v188 = vpop.permute.xlu0 %187
  %v190 = vmul.f32 %v188, 0.0
  %192 = vrot.lane.b32.xlu0 %v190, 106
  %v193 = vpop.permute.xlu0 %192
  %v195 = vadd.f32 %v185, %v193
  %vm196 = vcmp.ge.f32.partialorder %v195, 1.0
  %v197 = vsel %vm196, 1.0, 0.0
  %v198 = vmul.f32 %v197, 4.0
  %v199 = vadd.f32 %v198, 0.0
  %201 = vrot.lane.b32.xlu0 %v197, 118
  %v202 = vpop.permute.xlu0 %201
  %v204 = vmax.f32 %v197, %v202
  %206 = vrot.lane.b32.xlu0 %v204, 127
  %v207 = vpop.permute.xlu0 %206
  %v209 = vmax.f32 %v204, %v207
  %211 = vrot.lane.b32.xlu0 %v209, 127
  %v212 = vpop.permute.xlu0 %211
  %214 = vrot.lane.b32.xlu0 %v209, 126
  %v215 = vpop.permute.xlu0 %214
  %217 = vrot.lane.b32.xlu0 %v209, 125
  %v218 = vpop.permute.xlu0 %217
  %vm220 = vcmask 7168
  %v221 = vsel %vm220, %v209, %v212
  %vm222 = vcmask 15360
  %v223 = vsel %vm222, %v221, %v215
  %vm224 = vcmask 23552
  %v225 = vsel %vm224, %v223, %v218
  %226 = vrot.lane.b32.xlu0 %v209, 108
  %v227 = vpop.permute.xlu0 %226
  %229 = vrot.lane.b32.xlu0 %v209, 107
  %v230 = vpop.permute.xlu0 %229
  %232 = vrot.lane.b32.xlu0 %v209, 106
  %v233 = vpop.permute.xlu0 %232
  %235 = vrot.lane.b32.xlu0 %v209, 105
  %v236 = vpop.permute.xlu0 %235
  %v238 = vsel %vm220, %v227, %v230
  %v239 = vsel %vm222, %v238, %v233
  %v240 = vsel %vm224, %v239, %v236
  %241 = vrot.lane.b32.xlu0 %v209, 88
  %v242 = vpop.permute.xlu0 %241
  %244 = vrot.lane.b32.xlu0 %v209, 87
  %v245 = vpop.permute.xlu0 %244
  %247 = vrot.lane.b32.xlu0 %v209, 86
  %v248 = vpop.permute.xlu0 %247
  %250 = vrot.lane.b32.xlu0 %v209, 85
  %v251 = vpop.permute.xlu0 %250
  %v253 = vsel %vm220, %v242, %v245
  %v254 = vsel %vm222, %v253, %v248
  %v255 = vsel %vm224, %v254, %v251
  %256 = vrot.lane.b32.xlu0 %v209, 68
  %v257 = vpop.permute.xlu0 %256
  %259 = vrot.lane.b32.xlu0 %v209, 67
  %v260 = vpop.permute.xlu0 %259
  %262 = vrot.lane.b32.xlu0 %v209, 66
  %v263 = vpop.permute.xlu0 %262
  %265 = vrot.lane.b32.xlu0 %v209, 65
  %v266 = vpop.permute.xlu0 %265
  %v268 = vsel %vm220, %v257, %v260
  %v269 = vsel %vm222, %v268, %v263
  %v270 = vsel %vm224, %v269, %v266
  %272 = vrot.lane.b32.xlu0 %v225, 7
  %v273 = vpop.permute.xlu0 %272
  %276 = vrot.lane.b32.xlu0 %v240, 13
  %v277 = vpop.permute.xlu0 %276
  %280 = vrot.lane.b32.xlu0 %v255, 19
  %v281 = vpop.permute.xlu0 %280
  %284 = vrot.lane.b32.xlu0 %v270, 25
  %v285 = vpop.permute.xlu0 %284
  %vm287 = vcmask 56320
  %v288 = vsel %vm287, 0.0, %v273
  %vm289 = vcmask 89088
  %v290 = vsel %vm289, %v288, 0.0
  %vm291 = vcmask 105472
  %v292 = vsel %vm291, %v290, %v277
  %vm293 = vcmask 138240
  %v294 = vsel %vm293, %v292, 0.0
  %vm295 = vcmask 154624
  %v296 = vsel %vm295, %v294, %v281
  %vm297 = vcmask 187392
  %v298 = vsel %vm297, %v296, 0.0
  %vm299 = vcmask 203776
  %v300 = vsel %vm299, %v298, %v285
  %vm301 = vcmask 236544
  %v302 = vsel %vm301, %v300, 0.0
  %v303 = vmul.f32 %v302, 5.0
  %v304 = vadd.f32 %v303, 0.0
  %306 = vset.pattern.permute.xlu0 0
  %307 = vperm.xlu0 %306, %v18
  %v308 = vpop.permute.xlu0 %307
  %v310 = vmul.f32 %v308, 0.0
  %v311 = vadd.f32 %v310, 0.0
  %312 = vset.pattern.permute.xlu0 1
  %313 = vperm.xlu0 %312, %v18
  %v314 = vpop.permute.xlu0 %313
  %v316 = vmul.f32 %v314, 0.0
  %v317 = vadd.f32 %v311, %v316
  %318 = vset.pattern.permute.xlu0 2
  %319 = vperm.xlu0 %318, %v18
  %v320 = vpop.permute.xlu0 %319
  %v322 = vmul.f32 %v320, 0.0
  %v323 = vadd.f32 %v317, %v322
  %324 = vset.pattern.permute.xlu0 3
  %325 = vperm.xlu0 %324, %v18
  %v326 = vpop.permute.xlu0 %325
  %v328 = vmul.f32 %v326, 0.0
  %v329 = vadd.f32 %v323, %v328
  %330 = vset.pattern.permute.xlu0 4
  %331 = vperm.xlu0 %330, %v18
  %v332 = vpop.permute.xlu0 %331
  %v334 = vmul.f32 %v332, 0.0
  %336 = vrot.lane.b32.xlu0 %v334, 127
  %v337 = vpop.permute.xlu0 %336
  %v339 = vadd.f32 %v329, %v337
  %340 = vset.pattern.permute.xlu0 5
  %341 = vperm.xlu0 %340, %v18
  %v342 = vpop.permute.xlu0 %341
  %v344 = vmul.f32 %v342, 0.0
  %346 = vrot.lane.b32.xlu0 %v344, 127
  %v347 = vpop.permute.xlu0 %346
  %v349 = vadd.f32 %v339, %v347
  %350 = vset.pattern.permute.xlu0 6
  %351 = vperm.xlu0 %350, %v18
  %v352 = vpop.permute.xlu0 %351
  %v354 = vmul.f32 %v352, 0.0
  %356 = vrot.lane.b32.xlu0 %v354, 127
  %v357 = vpop.permute.xlu0 %356
  %v359 = vadd.f32 %v349, %v357
  %360 = vset.pattern.permute.xlu0 7
  %361 = vperm.xlu0 %360, %v18
  %v362 = vpop.permute.xlu0 %361
  %v364 = vmul.f32 %v362, 0.0
  %366 = vrot.lane.b32.xlu0 %v364, 127
  %v367 = vpop.permute.xlu0 %366
  %v369 = vadd.f32 %v359, %v367
  %370 = vset.pattern.permute.xlu0 8
  %371 = vperm.xlu0 %370, %v18
  %v372 = vpop.permute.xlu0 %371
  %v374 = vmul.f32 %v372, 0.0
  %376 = vrot.lane.b32.xlu0 %v374, 126
  %v377 = vpop.permute.xlu0 %376
  %v379 = vadd.f32 %v369, %v377
  %380 = vset.pattern.permute.xlu0 9
  %381 = vperm.xlu0 %380, %v18
  %v382 = vpop.permute.xlu0 %381
  %v384 = vmul.f32 %v382, 0.0
  %386 = vrot.lane.b32.xlu0 %v384, 126
  %v387 = vpop.permute.xlu0 %386
  %v389 = vadd.f32 %v379, %v387
  %390 = vset.pattern.permute.xlu0 10
  %391 = vperm.xlu0 %390, %v18
  %v392 = vpop.permute.xlu0 %391
  %v394 = vmul.f32 %v392, 0.0
  %396 = vrot.lane.b32.xlu0 %v394, 126
  %v397 = vpop.permute.xlu0 %396
  %v399 = vadd.f32 %v389, %v397
  %400 = vset.pattern.permute.xlu0 11
  %401 = vperm.xlu0 %400, %v18
  %v402 = vpop.permute.xlu0 %401
  %v404 = vmul.f32 %v402, 0.0
  %406 = vrot.lane.b32.xlu0 %v404, 126
  %v407 = vpop.permute.xlu0 %406
  %v409 = vadd.f32 %v399, %v407
  %410 = vset.pattern.permute.xlu0 12
  %411 = vperm.xlu0 %410, %v18
  %v412 = vpop.permute.xlu0 %411
  %v414 = vmul.f32 %v412, 0.0
  %416 = vrot.lane.b32.xlu0 %v414, 122
  %v417 = vpop.permute.xlu0 %416
  %v419 = vadd.f32 %v409, %v417
  %420 = vset.pattern.permute.xlu0 13
  %421 = vperm.xlu0 %420, %v18
  %v422 = vpop.permute.xlu0 %421
  %v424 = vmul.f32 %v422, 0.0
  %426 = vrot.lane.b32.xlu0 %v424, 122
  %v427 = vpop.permute.xlu0 %426
  %v429 = vadd.f32 %v419, %v427
  %430 = vset.pattern.permute.xlu0 14
  %431 = vperm.xlu0 %430, %v18
  %v432 = vpop.permute.xlu0 %431
  %v434 = vmul.f32 %v432, 0.0
  %436 = vrot.lane.b32.xlu0 %v434, 122
  %v437 = vpop.permute.xlu0 %436
  %v439 = vadd.f32 %v429, %v437
  %440 = vset.pattern.permute.xlu0 15
  %441 = vperm.xlu0 %440, %v18
  %v442 = vpop.permute.xlu0 %441
  %v444 = vmul.f32 %v442, 0.0
  %446 = vrot.lane.b32.xlu0 %v444, 122
  %v447 = vpop.permute.xlu0 %446
  %v449 = vadd.f32 %v439, %v447
  %450 = vset.pattern.permute.xlu0 16
  %451 = vperm.xlu0 %450, %v18
  %v452 = vpop.permute.xlu0 %451
  %v454 = vmul.f32 %v452, 0.0
  %456 = vrot.lane.b32.xlu0 %v454, 121
  %v457 = vpop.permute.xlu0 %456
  %v459 = vadd.f32 %v449, %v457
  %460 = vset.pattern.permute.xlu0 17
  %461 = vperm.xlu0 %460, %v18
  %v462 = vpop.permute.xlu0 %461
  %v464 = vmul.f32 %v462, 0.0
  %466 = vrot.lane.b32.xlu0 %v464, 121
  %v467 = vpop.permute.xlu0 %466
  %v469 = vadd.f32 %v459, %v467
  %470 = vset.pattern.permute.xlu0 18
  %471 = vperm.xlu0 %470, %v18
  %v472 = vpop.permute.xlu0 %471
  %v474 = vmul.f32 %v472, 0.0
  %476 = vrot.lane.b32.xlu0 %v474, 121
  %v477 = vpop.permute.xlu0 %476
  %v479 = vadd.f32 %v469, %v477
  %480 = vset.pattern.permute.xlu0 19
  %481 = vperm.xlu0 %480, %v18
  %v482 = vpop.permute.xlu0 %481
  %v484 = vmul.f32 %v482, 0.0
  %486 = vrot.lane.b32.xlu0 %v484, 121
  %v487 = vpop.permute.xlu0 %486
  %v489 = vadd.f32 %v479, %v487
  %490 = vset.pattern.permute.xlu0 20
  %491 = vperm.xlu0 %490, %v18
  %v492 = vpop.permute.xlu0 %491
  %v494 = vmul.f32 %v492, 0.0
  %496 = vrot.lane.b32.xlu0 %v494, 120
  %v497 = vpop.permute.xlu0 %496
  %v499 = vadd.f32 %v489, %v497
  %500 = vset.pattern.permute.xlu0 21
  %501 = vperm.xlu0 %500, %v18
  %v502 = vpop.permute.xlu0 %501
  %v504 = vmul.f32 %v502, 0.0
  %506 = vrot.lane.b32.xlu0 %v504, 120
  %v507 = vpop.permute.xlu0 %506
  %v509 = vadd.f32 %v499, %v507
  %510 = vset.pattern.permute.xlu0 22
  %511 = vperm.xlu0 %510, %v18
  %v512 = vpop.permute.xlu0 %511
  %v514 = vmul.f32 %v512, 0.0
  %516 = vrot.lane.b32.xlu0 %v514, 120
  %v517 = vpop.permute.xlu0 %516
  %v519 = vadd.f32 %v509, %v517
  %520 = vset.pattern.permute.xlu0 23
  %521 = vperm.xlu0 %520, %v18
  %v522 = vpop.permute.xlu0 %521
  %v524 = vmul.f32 %v522, 0.0
  %526 = vrot.lane.b32.xlu0 %v524, 120
  %v527 = vpop.permute.xlu0 %526
  %v529 = vadd.f32 %v519, %v527
  %530 = vset.pattern.permute.xlu0 24
  %531 = vperm.xlu0 %530, %v18
  %v532 = vpop.permute.xlu0 %531
  %v534 = vmul.f32 %v532, 0.0
  %536 = vrot.lane.b32.xlu0 %v534, 116
  %v537 = vpop.permute.xlu0 %536
  %v539 = vadd.f32 %v529, %v537
  %540 = vset.pattern.permute.xlu0 25
  %541 = vperm.xlu0 %540, %v18
  %v542 = vpop.permute.xlu0 %541
  %v544 = vmul.f32 %v542, 0.0
  %546 = vrot.lane.b32.xlu0 %v544, 116
  %v547 = vpop.permute.xlu0 %546
  %v549 = vadd.f32 %v539, %v547
  %550 = vset.pattern.permute.xlu0 26
  %551 = vperm.xlu0 %550, %v18
  %v552 = vpop.permute.xlu0 %551
  %v554 = vmul.f32 %v552, 0.0
  %556 = vrot.lane.b32.xlu0 %v554, 116
  %v557 = vpop.permute.xlu0 %556
  %v559 = vadd.f32 %v549, %v557
  %560 = vset.pattern.permute.xlu0 27
  %561 = vperm.xlu0 %560, %v18
  %v562 = vpop.permute.xlu0 %561
  %v564 = vmul.f32 %v562, 0.0
  %566 = vrot.lane.b32.xlu0 %v564, 116
  %v567 = vpop.permute.xlu0 %566
  %v569 = vadd.f32 %v559, %v567
  %570 = vset.pattern.permute.xlu0 28
  %571 = vperm.xlu0 %570, %v18
  %v572 = vpop.permute.xlu0 %571
  %v574 = vmul.f32 %v572, 0.0
  %576 = vrot.lane.b32.xlu0 %v574, 115
  %v577 = vpop.permute.xlu0 %576
  %v579 = vadd.f32 %v569, %v577
  %580 = vset.pattern.permute.xlu0 29
  %581 = vperm.xlu0 %580, %v18
  %v582 = vpop.permute.xlu0 %581
  %v584 = vmul.f32 %v582, 0.0
  %586 = vrot.lane.b32.xlu0 %v584, 115
  %v587 = vpop.permute.xlu0 %586
  %v589 = vadd.f32 %v579, %v587
  %590 = vset.pattern.permute.xlu0 30
  %591 = vperm.xlu0 %590, %v18
  %v592 = vpop.permute.xlu0 %591
  %v594 = vmul.f32 %v592, 0.0
  %596 = vrot.lane.b32.xlu0 %v594, 115
  %v597 = vpop.permute.xlu0 %596
  %v599 = vadd.f32 %v589, %v597
  %600 = vset.pattern.permute.xlu0 31
  %601 = vperm.xlu0 %600, %v18
  %v602 = vpop.permute.xlu0 %601
  %v604 = vmul.f32 %v602, 0.0
  %606 = vrot.lane.b32.xlu0 %v604, 115
  %v607 = vpop.permute.xlu0 %606
  %v609 = vadd.f32 %v599, %v607
  %610 = vset.pattern.permute.xlu0 32
  %611 = vperm.xlu0 %610, %v18
  %v612 = vpop.permute.xlu0 %611
  %v614 = vmul.f32 %v612, 0.0
  %616 = vrot.lane.b32.xlu0 %v614, 114
  %v617 = vpop.permute.xlu0 %616
  %v619 = vadd.f32 %v609, %v617
  %620 = vset.pattern.permute.xlu0 33
  %621 = vperm.xlu0 %620, %v18
  %v622 = vpop.permute.xlu0 %621
  %v624 = vmul.f32 %v622, 0.0
  %626 = vrot.lane.b32.xlu0 %v624, 114
  %v627 = vpop.permute.xlu0 %626
  %v629 = vadd.f32 %v619, %v627
  %630 = vset.pattern.permute.xlu0 34
  %631 = vperm.xlu0 %630, %v18
  %v632 = vpop.permute.xlu0 %631
  %v634 = vmul.f32 %v632, 0.0
  %636 = vrot.lane.b32.xlu0 %v634, 114
  %v637 = vpop.permute.xlu0 %636
  %v639 = vadd.f32 %v629, %v637
  %640 = vset.pattern.permute.xlu0 35
  %641 = vperm.xlu0 %640, %v18
  %v642 = vpop.permute.xlu0 %641
  %v644 = vmul.f32 %v642, 0.0
  %646 = vrot.lane.b32.xlu0 %v644, 114
  %v647 = vpop.permute.xlu0 %646
  %v649 = vadd.f32 %v639, %v647
  %vm650 = vcmp.ge.f32.partialorder %v649, 1.0
  %v651 = vsel %vm650, 1.0, 0.0
  %v652 = vmul.f32 %v651, 4.0
  %v653 = vadd.f32 %v652, 0.0
  %655 = vrot.lane.b32.xlu0 %v651, 7
  %v656 = vpop.permute.xlu0 %655
  %v658 = vsel %vm287, 0.0, %v656
  %v659 = vsel %vm289, %v658, 0.0
  %v660 = vsel %vm291, %v659, %v656
  %v661 = vsel %vm293, %v660, 0.0
  %v662 = vsel %vm295, %v661, %v656
  %v663 = vsel %vm297, %v662, 0.0
  %v664 = vsel %vm299, %v663, %v656
  %v665 = vsel %vm301, %v664, 0.0
  %v666 = vmul.f32 %v665, 5.0
  %v667 = vadd.f32 %v666, 0.0
  %669 = vset.pattern.permute.xlu0 0
  %670 = vperm.xlu0 %669, %v19
  %v671 = vpop.permute.xlu0 %670
  %v673 = vmul.f32 %v671, 0.0
  %v674 = vadd.f32 %v673, 0.0
  %675 = vset.pattern.permute.xlu0 1
  %676 = vperm.xlu0 %675, %v19
  %v677 = vpop.permute.xlu0 %676
  %v679 = vmul.f32 %v677, 0.0
  %v680 = vadd.f32 %v674, %v679
  %681 = vset.pattern.permute.xlu0 2
  %682 = vperm.xlu0 %681, %v19
  %v683 = vpop.permute.xlu0 %682
  %v685 = vmul.f32 %v683, 0.0
  %v686 = vadd.f32 %v680, %v685
  %687 = vset.pattern.permute.xlu0 3
  %688 = vperm.xlu0 %687, %v19
  %v689 = vpop.permute.xlu0 %688
  %v691 = vmul.f32 %v689, 0.0
  %v692 = vadd.f32 %v686, %v691
  %693 = vset.pattern.permute.xlu0 4
  %694 = vperm.xlu0 %693, %v19
  %v695 = vpop.permute.xlu0 %694
  %v697 = vmul.f32 %v695, 0.0
  %699 = vrot.lane.b32.xlu0 %v697, 127
  %v700 = vpop.permute.xlu0 %699
  %v702 = vadd.f32 %v692, %v700
  %703 = vset.pattern.permute.xlu0 5
  %704 = vperm.xlu0 %703, %v19
  %v705 = vpop.permute.xlu0 %704
  %v707 = vmul.f32 %v705, 0.0
  %709 = vrot.lane.b32.xlu0 %v707, 127
  %v710 = vpop.permute.xlu0 %709
  %v712 = vadd.f32 %v702, %v710
  %713 = vset.pattern.permute.xlu0 6
  %714 = vperm.xlu0 %713, %v19
  %v715 = vpop.permute.xlu0 %714
  %v717 = vmul.f32 %v715, 0.0
  %719 = vrot.lane.b32.xlu0 %v717, 127
  %v720 = vpop.permute.xlu0 %719
  %v722 = vadd.f32 %v712, %v720
  %723 = vset.pattern.permute.xlu0 7
  %724 = vperm.xlu0 %723, %v19
  %v725 = vpop.permute.xlu0 %724
  %v727 = vmul.f32 %v725, 0.0
  %729 = vrot.lane.b32.xlu0 %v727, 127
  %v730 = vpop.permute.xlu0 %729
  %v732 = vadd.f32 %v722, %v730
  %733 = vset.pattern.permute.xlu0 8
  %734 = vperm.xlu0 %733, %v19
  %v735 = vpop.permute.xlu0 %734
  %v737 = vmul.f32 %v735, 0.0
  %739 = vrot.lane.b32.xlu0 %v737, 126
  %v740 = vpop.permute.xlu0 %739
  %v742 = vadd.f32 %v732, %v740
  %743 = vset.pattern.permute.xlu0 9
  %744 = vperm.xlu0 %743, %v19
  %v745 = vpop.permute.xlu0 %744
  %v747 = vmul.f32 %v745, 0.0
  %749 = vrot.lane.b32.xlu0 %v747, 126
  %v750 = vpop.permute.xlu0 %749
  %v752 = vadd.f32 %v742, %v750
  %753 = vset.pattern.permute.xlu0 10
  %754 = vperm.xlu0 %753, %v19
  %v755 = vpop.permute.xlu0 %754
  %v757 = vmul.f32 %v755, 0.0
  %759 = vrot.lane.b32.xlu0 %v757, 126
  %v760 = vpop.permute.xlu0 %759
  %v762 = vadd.f32 %v752, %v760
  %763 = vset.pattern.permute.xlu0 11
  %764 = vperm.xlu0 %763, %v19
  %v765 = vpop.permute.xlu0 %764
  %v767 = vmul.f32 %v765, 0.0
  %769 = vrot.lane.b32.xlu0 %v767, 126
  %v770 = vpop.permute.xlu0 %769
  %v772 = vadd.f32 %v762, %v770
  %773 = vset.pattern.permute.xlu0 12
  %774 = vperm.xlu0 %773, %v19
  %v775 = vpop.permute.xlu0 %774
  %v777 = vmul.f32 %v775, 0.0
  %779 = vrot.lane.b32.xlu0 %v777, 122
  %v780 = vpop.permute.xlu0 %779
  %v782 = vadd.f32 %v772, %v780
  %783 = vset.pattern.permute.xlu0 13
  %784 = vperm.xlu0 %783, %v19
  %v785 = vpop.permute.xlu0 %784
  %v787 = vmul.f32 %v785, 0.0
  %789 = vrot.lane.b32.xlu0 %v787, 122
  %v790 = vpop.permute.xlu0 %789
  %v792 = vadd.f32 %v782, %v790
  %793 = vset.pattern.permute.xlu0 14
  %794 = vperm.xlu0 %793, %v19
  %v795 = vpop.permute.xlu0 %794
  %v797 = vmul.f32 %v795, 0.0
  %799 = vrot.lane.b32.xlu0 %v797, 122
  %v800 = vpop.permute.xlu0 %799
  %v802 = vadd.f32 %v792, %v800
  %803 = vset.pattern.permute.xlu0 15
  %804 = vperm.xlu0 %803, %v19
  %v805 = vpop.permute.xlu0 %804
  %v807 = vmul.f32 %v805, 0.0
  %809 = vrot.lane.b32.xlu0 %v807, 122
  %v810 = vpop.permute.xlu0 %809
  %v812 = vadd.f32 %v802, %v810
  %813 = vset.pattern.permute.xlu0 16
  %814 = vperm.xlu0 %813, %v19
  %v815 = vpop.permute.xlu0 %814
  %v817 = vmul.f32 %v815, 0.0
  %819 = vrot.lane.b32.xlu0 %v817, 121
  %v820 = vpop.permute.xlu0 %819
  %v822 = vadd.f32 %v812, %v820
  %823 = vset.pattern.permute.xlu0 17
  %824 = vperm.xlu0 %823, %v19
  %v825 = vpop.permute.xlu0 %824
  %v827 = vmul.f32 %v825, 0.0
  %829 = vrot.lane.b32.xlu0 %v827, 121
  %v830 = vpop.permute.xlu0 %829
  %v832 = vadd.f32 %v822, %v830
  %833 = vset.pattern.permute.xlu0 18
  %834 = vperm.xlu0 %833, %v19
  %v835 = vpop.permute.xlu0 %834
  %v837 = vmul.f32 %v835, 0.0
  %839 = vrot.lane.b32.xlu0 %v837, 121
  %v840 = vpop.permute.xlu0 %839
  %v842 = vadd.f32 %v832, %v840
  %843 = vset.pattern.permute.xlu0 19
  %844 = vperm.xlu0 %843, %v19
  %v845 = vpop.permute.xlu0 %844
  %v847 = vmul.f32 %v845, 0.0
  %849 = vrot.lane.b32.xlu0 %v847, 121
  %v850 = vpop.permute.xlu0 %849
  %v852 = vadd.f32 %v842, %v850
  %853 = vset.pattern.permute.xlu0 20
  %854 = vperm.xlu0 %853, %v19
  %v855 = vpop.permute.xlu0 %854
  %v857 = vmul.f32 %v855, 0.0
  %859 = vrot.lane.b32.xlu0 %v857, 120
  %v860 = vpop.permute.xlu0 %859
  %v862 = vadd.f32 %v852, %v860
  %863 = vset.pattern.permute.xlu0 21
  %864 = vperm.xlu0 %863, %v19
  %v865 = vpop.permute.xlu0 %864
  %v867 = vmul.f32 %v865, 0.0
  %869 = vrot.lane.b32.xlu0 %v867, 120
  %v870 = vpop.permute.xlu0 %869
  %v872 = vadd.f32 %v862, %v870
  %873 = vset.pattern.permute.xlu0 22
  %874 = vperm.xlu0 %873, %v19
  %v875 = vpop.permute.xlu0 %874
  %v877 = vmul.f32 %v875, 0.0
  %879 = vrot.lane.b32.xlu0 %v877, 120
  %v880 = vpop.permute.xlu0 %879
  %v882 = vadd.f32 %v872, %v880
  %883 = vset.pattern.permute.xlu0 23
  %884 = vperm.xlu0 %883, %v19
  %v885 = vpop.permute.xlu0 %884
  %v887 = vmul.f32 %v885, 0.0
  %889 = vrot.lane.b32.xlu0 %v887, 120
  %v890 = vpop.permute.xlu0 %889
  %v892 = vadd.f32 %v882, %v890
  %893 = vset.pattern.permute.xlu0 24
  %894 = vperm.xlu0 %893, %v19
  %v895 = vpop.permute.xlu0 %894
  %v897 = vmul.f32 %v895, 0.0
  %899 = vrot.lane.b32.xlu0 %v897, 116
  %v900 = vpop.permute.xlu0 %899
  %v902 = vadd.f32 %v892, %v900
  %903 = vset.pattern.permute.xlu0 25
  %904 = vperm.xlu0 %903, %v19
  %v905 = vpop.permute.xlu0 %904
  %v907 = vmul.f32 %v905, 0.0
  %909 = vrot.lane.b32.xlu0 %v907, 116
  %v910 = vpop.permute.xlu0 %909
  %v912 = vadd.f32 %v902, %v910
  %913 = vset.pattern.permute.xlu0 26
  %914 = vperm.xlu0 %913, %v19
  %v915 = vpop.permute.xlu0 %914
  %v917 = vmul.f32 %v915, 0.0
  %919 = vrot.lane.b32.xlu0 %v917, 116
  %v920 = vpop.permute.xlu0 %919
  %v922 = vadd.f32 %v912, %v920
  %923 = vset.pattern.permute.xlu0 27
  %924 = vperm.xlu0 %923, %v19
  %v925 = vpop.permute.xlu0 %924
  %v927 = vmul.f32 %v925, 0.0
  %929 = vrot.lane.b32.xlu0 %v927, 116
  %v930 = vpop.permute.xlu0 %929
  %v932 = vadd.f32 %v922, %v930
  %933 = vset.pattern.permute.xlu0 28
  %934 = vperm.xlu0 %933, %v19
  %v935 = vpop.permute.xlu0 %934
  %v937 = vmul.f32 %v935, 0.0
  %939 = vrot.lane.b32.xlu0 %v937, 115
  %v940 = vpop.permute.xlu0 %939
  %v942 = vadd.f32 %v932, %v940
  %943 = vset.pattern.permute.xlu0 29
  %944 = vperm.xlu0 %943, %v19
  %v945 = vpop.permute.xlu0 %944
  %v947 = vmul.f32 %v945, 0.0
  %949 = vrot.lane.b32.xlu0 %v947, 115
  %v950 = vpop.permute.xlu0 %949
  %v952 = vadd.f32 %v942, %v950
  %953 = vset.pattern.permute.xlu0 30
  %954 = vperm.xlu0 %953, %v19
  %v955 = vpop.permute.xlu0 %954
  %v957 = vmul.f32 %v955, 0.0
  %959 = vrot.lane.b32.xlu0 %v957, 115
  %v960 = vpop.permute.xlu0 %959
  %v962 = vadd.f32 %v952, %v960
  %963 = vset.pattern.permute.xlu0 31
  %964 = vperm.xlu0 %963, %v19
  %v965 = vpop.permute.xlu0 %964
  %v967 = vmul.f32 %v965, 0.0
  %969 = vrot.lane.b32.xlu0 %v967, 115
  %v970 = vpop.permute.xlu0 %969
  %v972 = vadd.f32 %v962, %v970
  %973 = vset.pattern.permute.xlu0 32
  %974 = vperm.xlu0 %973, %v19
  %v975 = vpop.permute.xlu0 %974
  %v977 = vmul.f32 %v975, 0.0
  %979 = vrot.lane.b32.xlu0 %v977, 114
  %v980 = vpop.permute.xlu0 %979
  %v982 = vadd.f32 %v972, %v980
  %983 = vset.pattern.permute.xlu0 33
  %984 = vperm.xlu0 %983, %v19
  %v985 = vpop.permute.xlu0 %984
  %v987 = vmul.f32 %v985, 0.0
  %989 = vrot.lane.b32.xlu0 %v987, 114
  %v990 = vpop.permute.xlu0 %989
  %v992 = vadd.f32 %v982, %v990
  %993 = vset.pattern.permute.xlu0 34
  %994 = vperm.xlu0 %993, %v19
  %v995 = vpop.permute.xlu0 %994
  %v997 = vmul.f32 %v995, 0.0
  %999 = vrot.lane.b32.xlu0 %v997, 114
  %v1000 = vpop.permute.xlu0 %999
  %v1002 = vadd.f32 %v992, %v1000
  %1003 = vset.pattern.permute.xlu0 35
  %1004 = vperm.xlu0 %1003, %v19
  %v1005 = vpop.permute.xlu0 %1004
  %v1007 = vmul.f32 %v1005, 0.0
  %1009 = vrot.lane.b32.xlu0 %v1007, 114
  %v1010 = vpop.permute.xlu0 %1009
  %v1012 = vadd.f32 %v1002, %v1010
  %vm1013 = vcmp.ge.f32.partialorder %v1012, 1.0
  %v1014 = vsel %vm1013, 1.0, 0.0
  %v1015 = vmul.f32 %v1014, 4.0
  %v1016 = vadd.f32 %v1015, 0.0
  %1018 = vrot.lane.b32.xlu0 %v1014, 122
  %v1019 = vpop.permute.xlu0 %1018
  %v1021 = vmax.f32 %v1014, %v1019
  %1023 = vrot.lane.b32.xlu0 %v1021, 127
  %v1024 = vpop.permute.xlu0 %1023
  %v1026 = vmax.f32 %v1021, %v1024
  %1028 = vrot.lane.b32.xlu0 %v1026, 127
  %v1029 = vpop.permute.xlu0 %1028
  %1031 = vrot.lane.b32.xlu0 %v1026, 118
  %v1032 = vpop.permute.xlu0 %1031
  %1034 = vrot.lane.b32.xlu0 %v1026, 117
  %v1035 = vpop.permute.xlu0 %1034
  %v1037 = vsel %vm220, %v1026, %v1029
  %v1038 = vsel %vm222, %v1037, %v1032
  %v1039 = vsel %vm224, %v1038, %v1035
  %v1040 = vmul.f32 %v22, 10.0
  %v1041 = vadd.f32 %v1040, 0.0
  %v1043 = vrot.slane %v1041, 6
  %v1045 = vrot.slane %v1041, 4
  %v1047 = vrot.slane %v1041, 2
  %vm1049 = vcmask 1041408
  %v1050 = vsel %vm1049, %v1041, %v1043
  %vm1051 = vcmask 1043456
  %v1052 = vsel %vm1051, %v1050, %v1045
  %vm1053 = vcmask 1045504
  %v1054 = vsel %vm1053, %v1052, %v1047
  %v1055 = vsel %vm1049, %v1047, %v1041
  %v1056 = vsel %vm1051, %v1055, %v1043
  %v1057 = vsel %vm1053, %v1056, %v1045
  %v1058 = vmul.f32 %v1054, %v26
  %v1059 = vadd.f32 %v1058, 0.0
  %v1060 = vmul.f32 %v1057, %v32
  %v1061 = vadd.f32 %v1059, %v1060
  %v1062 = vmul.f32 %v1054, %v38
  %1064 = vrot.lane.b32.xlu0 %v1062, 127
  %v1065 = vpop.permute.xlu0 %1064
  %v1067 = vadd.f32 %v1061, %v1065
  %v1068 = vmul.f32 %v1057, %v48
  %1070 = vrot.lane.b32.xlu0 %v1068, 127
  %v1071 = vpop.permute.xlu0 %1070
  %v1073 = vadd.f32 %v1067, %v1071
  %v1074 = vmul.f32 %v1054, %v58
  %1076 = vrot.lane.b32.xlu0 %v1074, 126
  %v1077 = vpop.permute.xlu0 %1076
  %v1079 = vadd.f32 %v1073, %v1077
  %v1080 = vmul.f32 %v1057, %v68
  %1082 = vrot.lane.b32.xlu0 %v1080, 126
  %v1083 = vpop.permute.xlu0 %1082
  %v1085 = vadd.f32 %v1079, %v1083
  %v1086 = vmul.f32 %v1054, %v78
  %1088 = vrot.lane.b32.xlu0 %v1086, 118
  %v1089 = vpop.permute.xlu0 %1088
  %v1091 = vadd.f32 %v1085, %v1089
  %v1092 = vmul.f32 %v1057, %v88
  %1094 = vrot.lane.b32.xlu0 %v1092, 118
  %v1095 = vpop.permute.xlu0 %1094
  %v1097 = vadd.f32 %v1091, %v1095
  %v1098 = vmul.f32 %v1054, %v98
  %1100 = vrot.lane.b32.xlu0 %v1098, 117
  %v1101 = vpop.permute.xlu0 %1100
  %v1103 = vadd.f32 %v1097, %v1101
  %v1104 = vmul.f32 %v1057, %v108
  %1106 = vrot.lane.b32.xlu0 %v1104, 117
  %v1107 = vpop.permute.xlu0 %1106
  %v1109 = vadd.f32 %v1103, %v1107
  %v1110 = vmul.f32 %v1054, %v118
  %1112 = vrot.lane.b32.xlu0 %v1110, 116
  %v1113 = vpop.permute.xlu0 %1112
  %v1115 = vadd.f32 %v1109, %v1113
  %v1116 = vmul.f32 %v1057, %v128
  %1118 = vrot.lane.b32.xlu0 %v1116, 116
  %v1119 = vpop.permute.xlu0 %1118
  %v1121 = vadd.f32 %v1115, %v1119
  %v1122 = vmul.f32 %v1054, %v138
  %1124 = vrot.lane.b32.xlu0 %v1122, 108
  %v1125 = vpop.permute.xlu0 %1124
  %v1127 = vadd.f32 %v1121, %v1125
  %v1128 = vmul.f32 %v1057, %v148
  %1130 = vrot.lane.b32.xlu0 %v1128, 108
  %v1131 = vpop.permute.xlu0 %1130
  %v1133 = vadd.f32 %v1127, %v1131
  %v1134 = vmul.f32 %v1054, %v158
  %1136 = vrot.lane.b32.xlu0 %v1134, 107
  %v1137 = vpop.permute.xlu0 %1136
  %v1139 = vadd.f32 %v1133, %v1137
  %v1140 = vmul.f32 %v1057, %v168
  %1142 = vrot.lane.b32.xlu0 %v1140, 107
  %v1143 = vpop.permute.xlu0 %1142
  %v1145 = vadd.f32 %v1139, %v1143
  %v1146 = vmul.f32 %v1054, %v178
  %1148 = vrot.lane.b32.xlu0 %v1146, 106
  %v1149 = vpop.permute.xlu0 %1148
  %v1151 = vadd.f32 %v1145, %v1149
  %v1152 = vmul.f32 %v1057, %v188
  %1154 = vrot.lane.b32.xlu0 %v1152, 106
  %v1155 = vpop.permute.xlu0 %1154
  %v1157 = vadd.f32 %v1151, %v1155
  %v1158 = vmul.f32 %v199, 0.75
  %v1159 = vsub.f32 %v1157, %v1158
  %vm1160 = vcmp.ge.f32.partialorder %v1159, 1.0
  %v1161 = vsel %vm1160, 1.0, 0.0
  %1163 = vrot.lane.b32.xlu0 %v1161, 118
  %v1164 = vpop.permute.xlu0 %1163
  %v1166 = vmax.f32 %v1161, %v1164
  %1168 = vrot.lane.b32.xlu0 %v1166, 127
  %v1169 = vpop.permute.xlu0 %1168
  %v1171 = vmax.f32 %v1166, %v1169
  %1173 = vrot.lane.b32.xlu0 %v1171, 127
  %v1174 = vpop.permute.xlu0 %1173
  %1176 = vrot.lane.b32.xlu0 %v1171, 126
  %v1177 = vpop.permute.xlu0 %1176
  %1179 = vrot.lane.b32.xlu0 %v1171, 125
  %v1180 = vpop.permute.xlu0 %1179
  %v1182 = vsel %vm220, %v1171, %v1174
  %v1183 = vsel %vm222, %v1182, %v1177
  %v1184 = vsel %vm224, %v1183, %v1180
  %1185 = vrot.lane.b32.xlu0 %v1171, 108
  %v1186 = vpop.permute.xlu0 %1185
  %1188 = vrot.lane.b32.xlu0 %v1171, 107
  %v1189 = vpop.permute.xlu0 %1188
  %1191 = vrot.lane.b32.xlu0 %v1171, 106
  %v1192 = vpop.permute.xlu0 %1191
  %1194 = vrot.lane.b32.xlu0 %v1171, 105
  %v1195 = vpop.permute.xlu0 %1194
  %v1197 = vsel %vm220, %v1186, %v1189
  %v1198 = vsel %vm222, %v1197, %v1192
  %v1199 = vsel %vm224, %v1198, %v1195
  %1200 = vrot.lane.b32.xlu0 %v1171, 88
  %v1201 = vpop.permute.xlu0 %1200
  %1203 = vrot.lane.b32.xlu0 %v1171, 87
  %v1204 = vpop.permute.xlu0 %1203
  %1206 = vrot.lane.b32.xlu0 %v1171, 86
  %v1207 = vpop.permute.xlu0 %1206
  %1209 = vrot.lane.b32.xlu0 %v1171, 85
  %v1210 = vpop.permute.xlu0 %1209
  %v1212 = vsel %vm220, %v1201, %v1204
  %v1213 = vsel %vm222, %v1212, %v1207
  %v1214 = vsel %vm224, %v1213, %v1210
  %1215 = vrot.lane.b32.xlu0 %v1171, 68
  %v1216 = vpop.permute.xlu0 %1215
  %1218 = vrot.lane.b32.xlu0 %v1171, 67
  %v1219 = vpop.permute.xlu0 %1218
  %1221 = vrot.lane.b32.xlu0 %v1171, 66
  %v1222 = vpop.permute.xlu0 %1221
  %1224 = vrot.lane.b32.xlu0 %v1171, 65
  %v1225 = vpop.permute.xlu0 %1224
  %v1227 = vsel %vm220, %v1216, %v1219
  %v1228 = vsel %vm222, %v1227, %v1222
  %v1229 = vsel %vm224, %v1228, %v1225
  %1231 = vrot.lane.b32.xlu0 %v1184, 7
  %v1232 = vpop.permute.xlu0 %1231
  %1235 = vrot.lane.b32.xlu0 %v1199, 13
  %v1236 = vpop.permute.xlu0 %1235
  %1239 = vrot.lane.b32.xlu0 %v1214, 19
  %v1240 = vpop.permute.xlu0 %1239
  %1243 = vrot.lane.b32.xlu0 %v1229, 25
  %v1244 = vpop.permute.xlu0 %1243
  %v1246 = vsel %vm287, 0.0, %v1232
  %v1247 = vsel %vm289, %v1246, 0.0
  %v1248 = vsel %vm291, %v1247, %v1236
  %v1249 = vsel %vm293, %v1248, 0.0
  %v1250 = vsel %vm295, %v1249, %v1240
  %v1251 = vsel %vm297, %v1250, 0.0
  %v1252 = vsel %vm299, %v1251, %v1244
  %v1253 = vsel %vm301, %v1252, 0.0
  %v1254 = vmul.f32 %v304, 10.0
  %v1255 = vadd.f32 %v1254, 0.0
  %v1256 = vmul.f32 %v304, 0.8
  %v1257 = vmul.f32 %v1253, 5.0
  %v1258 = vadd.f32 %v1256, %v1257
  %v1260 = vrot.slane %v1255, 6
  %v1262 = vrot.slane %v1255, 4
  %v1264 = vrot.slane %v1255, 2
  %v1266 = vsel %vm1049, %v1255, %v1260
  %v1267 = vsel %vm1051, %v1266, %v1262
  %v1268 = vsel %vm1053, %v1267, %v1264
  %v1269 = vsel %vm1049, %v1264, %v1255
  %v1270 = vsel %vm1051, %v1269, %v1260
  %v1271 = vsel %vm1053, %v1270, %v1262
  %v1272 = vsel %vm1049, %v1262, %v1264
  %v1273 = vsel %vm1051, %v1272, %v1255
  %v1274 = vsel %vm1053, %v1273, %v1260
  %v1275 = vsel %vm1049, %v1260, %v1262
  %v1276 = vsel %vm1051, %v1275, %v1264
  %v1277 = vsel %vm1053, %v1276, %v1255
  %v1278 = vmul.f32 %v1268, %v308
  %v1279 = vadd.f32 %v1278, 0.0
  %v1280 = vmul.f32 %v1271, %v314
  %v1281 = vadd.f32 %v1279, %v1280
  %v1282 = vmul.f32 %v1274, %v320
  %v1283 = vadd.f32 %v1281, %v1282
  %v1284 = vmul.f32 %v1277, %v326
  %v1285 = vadd.f32 %v1283, %v1284
  %v1286 = vmul.f32 %v1268, %v332
  %1288 = vrot.lane.b32.xlu0 %v1286, 127
  %v1289 = vpop.permute.xlu0 %1288
  %v1291 = vadd.f32 %v1285, %v1289
  %v1292 = vmul.f32 %v1271, %v342
  %1294 = vrot.lane.b32.xlu0 %v1292, 127
  %v1295 = vpop.permute.xlu0 %1294
  %v1297 = vadd.f32 %v1291, %v1295
  %v1298 = vmul.f32 %v1274, %v352
  %1300 = vrot.lane.b32.xlu0 %v1298, 127
  %v1301 = vpop.permute.xlu0 %1300
  %v1303 = vadd.f32 %v1297, %v1301
  %v1304 = vmul.f32 %v1277, %v362
  %1306 = vrot.lane.b32.xlu0 %v1304, 127
  %v1307 = vpop.permute.xlu0 %1306
  %v1309 = vadd.f32 %v1303, %v1307
  %v1310 = vmul.f32 %v1268, %v372
  %1312 = vrot.lane.b32.xlu0 %v1310, 126
  %v1313 = vpop.permute.xlu0 %1312
  %v1315 = vadd.f32 %v1309, %v1313
  %v1316 = vmul.f32 %v1271, %v382
  %1318 = vrot.lane.b32.xlu0 %v1316, 126
  %v1319 = vpop.permute.xlu0 %1318
  %v1321 = vadd.f32 %v1315, %v1319
  %v1322 = vmul.f32 %v1274, %v392
  %1324 = vrot.lane.b32.xlu0 %v1322, 126
  %v1325 = vpop.permute.xlu0 %1324
  %v1327 = vadd.f32 %v1321, %v1325
  %v1328 = vmul.f32 %v1277, %v402
  %1330 = vrot.lane.b32.xlu0 %v1328, 126
  %v1331 = vpop.permute.xlu0 %1330
  %v1333 = vadd.f32 %v1327, %v1331
  %v1334 = vmul.f32 %v1268, %v412
  %1336 = vrot.lane.b32.xlu0 %v1334, 122
  %v1337 = vpop.permute.xlu0 %1336
  %v1339 = vadd.f32 %v1333, %v1337
  %v1340 = vmul.f32 %v1271, %v422
  %1342 = vrot.lane.b32.xlu0 %v1340, 122
  %v1343 = vpop.permute.xlu0 %1342
  %v1345 = vadd.f32 %v1339, %v1343
  %v1346 = vmul.f32 %v1274, %v432
  %1348 = vrot.lane.b32.xlu0 %v1346, 122
  %v1349 = vpop.permute.xlu0 %1348
  %v1351 = vadd.f32 %v1345, %v1349
  %v1352 = vmul.f32 %v1277, %v442
  %1354 = vrot.lane.b32.xlu0 %v1352, 122
  %v1355 = vpop.permute.xlu0 %1354
  %v1357 = vadd.f32 %v1351, %v1355
  %v1358 = vmul.f32 %v1268, %v452
  %1360 = vrot.lane.b32.xlu0 %v1358, 121
  %v1361 = vpop.permute.xlu0 %1360
  %v1363 = vadd.f32 %v1357, %v1361
  %v1364 = vmul.f32 %v1271, %v462
  %1366 = vrot.lane.b32.xlu0 %v1364, 121
  %v1367 = vpop.permute.xlu0 %1366
  %v1369 = vadd.f32 %v1363, %v1367
  %v1370 = vmul.f32 %v1274, %v472
  %1372 = vrot.lane.b32.xlu0 %v1370, 121
  %v1373 = vpop.permute.xlu0 %1372
  %v1375 = vadd.f32 %v1369, %v1373
  %v1376 = vmul.f32 %v1277, %v482
  %1378 = vrot.lane.b32.xlu0 %v1376, 121
  %v1379 = vpop.permute.xlu0 %1378
  %v1381 = vadd.f32 %v1375, %v1379
  %v1382 = vmul.f32 %v1268, %v492
  %1384 = vrot.lane.b32.xlu0 %v1382, 120
  %v1385 = vpop.permute.xlu0 %1384
  %v1387 = vadd.f32 %v1381, %v1385
  %v1388 = vmul.f32 %v1271, %v502
  %1390 = vrot.lane.b32.xlu0 %v1388, 120
  %v1391 = vpop.permute.xlu0 %1390
  %v1393 = vadd.f32 %v1387, %v1391
  %v1394 = vmul.f32 %v1274, %v512
  %1396 = vrot.lane.b32.xlu0 %v1394, 120
  %v1397 = vpop.permute.xlu0 %1396
  %v1399 = vadd.f32 %v1393, %v1397
  %v1400 = vmul.f32 %v1277, %v522
  %1402 = vrot.lane.b32.xlu0 %v1400, 120
  %v1403 = vpop.permute.xlu0 %1402
  %v1405 = vadd.f32 %v1399, %v1403
  %v1406 = vmul.f32 %v1268, %v532
  %1408 = vrot.lane.b32.xlu0 %v1406, 116
  %v1409 = vpop.permute.xlu0 %1408
  %v1411 = vadd.f32 %v1405, %v1409
  %v1412 = vmul.f32 %v1271, %v542
  %1414 = vrot.lane.b32.xlu0 %v1412, 116
  %v1415 = vpop.permute.xlu0 %1414
  %v1417 = vadd.f32 %v1411, %v1415
  %v1418 = vmul.f32 %v1274, %v552
  %1420 = vrot.lane.b32.xlu0 %v1418, 116
  %v1421 = vpop.permute.xlu0 %1420
  %v1423 = vadd.f32 %v1417, %v1421
  %v1424 = vmul.f32 %v1277, %v562
  %1426 = vrot.lane.b32.xlu0 %v1424, 116
  %v1427 = vpop.permute.xlu0 %1426
  %v1429 = vadd.f32 %v1423, %v1427
  %v1430 = vmul.f32 %v1268, %v572
  %1432 = vrot.lane.b32.xlu0 %v1430, 115
  %v1433 = vpop.permute.xlu0 %1432
  %v1435 = vadd.f32 %v1429, %v1433
  %v1436 = vmul.f32 %v1271, %v582
  %1438 = vrot.lane.b32.xlu0 %v1436, 115
  %v1439 = vpop.permute.xlu0 %1438
  %v1441 = vadd.f32 %v1435, %v1439
  %v1442 = vmul.f32 %v1274, %v592
  %1444 = vrot.lane.b32.xlu0 %v1442, 115
  %v1445 = vpop.permute.xlu0 %1444
  %v1447 = vadd.f32 %v1441, %v1445
  %v1448 = vmul.f32 %v1277, %v602
  %1450 = vrot.lane.b32.xlu0 %v1448, 115
  %v1451 = vpop.permute.xlu0 %1450
  %v1453 = vadd.f32 %v1447, %v1451
  %v1454 = vmul.f32 %v1268, %v612
  %1456 = vrot.lane.b32.xlu0 %v1454, 114
  %v1457 = vpop.permute.xlu0 %1456
  %v1459 = vadd.f32 %v1453, %v1457
  %v1460 = vmul.f32 %v1271, %v622
  %1462 = vrot.lane.b32.xlu0 %v1460, 114
  %v1463 = vpop.permute.xlu0 %1462
  %v1465 = vadd.f32 %v1459, %v1463
  %v1466 = vmul.f32 %v1274, %v632
  %1468 = vrot.lane.b32.xlu0 %v1466, 114
  %v1469 = vpop.permute.xlu0 %1468
  %v1471 = vadd.f32 %v1465, %v1469
  %v1472 = vmul.f32 %v1277, %v642
  %1474 = vrot.lane.b32.xlu0 %v1472, 114
  %v1475 = vpop.permute.xlu0 %1474
  %v1477 = vadd.f32 %v1471, %v1475
  %v1478 = vmul.f32 %v653, 0.75
  %v1479 = vsub.f32 %v1477, %v1478
  %vm1480 = vcmp.ge.f32.partialorder %v1479, 1.0
  %v1481 = vsel %vm1480, 1.0, 0.0
  %v1482 = vmul.f32 %v1481, 4.0
  %v1483 = vadd.f32 %v1478, %v1482
  %1485 = vrot.lane.b32.xlu0 %v1481, 7
  %v1486 = vpop.permute.xlu0 %1485
  %v1488 = vsel %vm287, 0.0, %v1486
  %v1489 = vsel %vm289, %v1488, 0.0
  %v1490 = vsel %vm291, %v1489, %v1486
  %v1491 = vsel %vm293, %v1490, 0.0
  %v1492 = vsel %vm295, %v1491, %v1486
  %v1493 = vsel %vm297, %v1492, 0.0
  %v1494 = vsel %vm299, %v1493, %v1486
  %v1495 = vsel %vm301, %v1494, 0.0
  %v1496 = vmul.f32 %v667, 10.0
  %v1497 = vadd.f32 %v1496, 0.0
  %v1498 = vmul.f32 %v667, 0.8
  %v1499 = vmul.f32 %v1495, 5.0
  %v1500 = vadd.f32 %v1498, %v1499
  %v1502 = vrot.slane %v1497, 6
  %v1504 = vrot.slane %v1497, 4
  %v1506 = vrot.slane %v1497, 2
  %v1508 = vsel %vm1049, %v1497, %v1502
  %v1509 = vsel %vm1051, %v1508, %v1504
  %v1510 = vsel %vm1053, %v1509, %v1506
  %v1511 = vsel %vm1049, %v1506, %v1497
  %v1512 = vsel %vm1051, %v1511, %v1502
  %v1513 = vsel %vm1053, %v1512, %v1504
  %v1514 = vsel %vm1049, %v1504, %v1506
  %v1515 = vsel %vm1051, %v1514, %v1497
  %v1516 = vsel %vm1053, %v1515, %v1502
  %v1517 = vsel %vm1049, %v1502, %v1504
  %v1518 = vsel %vm1051, %v1517, %v1506
  %v1519 = vsel %vm1053, %v1518, %v1497
  %v1520 = vmul.f32 %v1510, %v671
  %v1521 = vadd.f32 %v1520, 0.0
  %v1522 = vmul.f32 %v1513, %v677
  %v1523 = vadd.f32 %v1521, %v1522
  %v1524 = vmul.f32 %v1516, %v683
  %v1525 = vadd.f32 %v1523, %v1524
  %v1526 = vmul.f32 %v1519, %v689
  %v1527 = vadd.f32 %v1525, %v1526
  %v1528 = vmul.f32 %v1510, %v695
  %1530 = vrot.lane.b32.xlu0 %v1528, 127
  %v1531 = vpop.permute.xlu0 %1530
  %v1533 = vadd.f32 %v1527, %v1531
  %v1534 = vmul.f32 %v1513, %v705
  %1536 = vrot.lane.b32.xlu0 %v1534, 127
  %v1537 = vpop.permute.xlu0 %1536
  %v1539 = vadd.f32 %v1533, %v1537
  %v1540 = vmul.f32 %v1516, %v715
  %1542 = vrot.lane.b32.xlu0 %v1540, 127
  %v1543 = vpop.permute.xlu0 %1542
  %v1545 = vadd.f32 %v1539, %v1543
  %v1546 = vmul.f32 %v1519, %v725
  %1548 = vrot.lane.b32.xlu0 %v1546, 127
  %v1549 = vpop.permute.xlu0 %1548
  %v1551 = vadd.f32 %v1545, %v1549
  %v1552 = vmul.f32 %v1510, %v735
  %1554 = vrot.lane.b32.xlu0 %v1552, 126
  %v1555 = vpop.permute.xlu0 %1554
  %v1557 = vadd.f32 %v1551, %v1555
  %v1558 = vmul.f32 %v1513, %v745
  %1560 = vrot.lane.b32.xlu0 %v1558, 126
  %v1561 = vpop.permute.xlu0 %1560
  %v1563 = vadd.f32 %v1557, %v1561
  %v1564 = vmul.f32 %v1516, %v755
  %1566 = vrot.lane.b32.xlu0 %v1564, 126
  %v1567 = vpop.permute.xlu0 %1566
  %v1569 = vadd.f32 %v1563, %v1567
  %v1570 = vmul.f32 %v1519, %v765
  %1572 = vrot.lane.b32.xlu0 %v1570, 126
  %v1573 = vpop.permute.xlu0 %1572
  %v1575 = vadd.f32 %v1569, %v1573
  %v1576 = vmul.f32 %v1510, %v775
  %1578 = vrot.lane.b32.xlu0 %v1576, 122
  %v1579 = vpop.permute.xlu0 %1578
  %v1581 = vadd.f32 %v1575, %v1579
  %v1582 = vmul.f32 %v1513, %v785
  %1584 = vrot.lane.b32.xlu0 %v1582, 122
  %v1585 = vpop.permute.xlu0 %1584
  %v1587 = vadd.f32 %v1581, %v1585
  %v1588 = vmul.f32 %v1516, %v795
  %1590 = vrot.lane.b32.xlu0 %v1588, 122
  %v1591 = vpop.permute.xlu0 %1590
  %v1593 = vadd.f32 %v1587, %v1591
  %v1594 = vmul.f32 %v1519, %v805
  %1596 = vrot.lane.b32.xlu0 %v1594, 122
  %v1597 = vpop.permute.xlu0 %1596
  %v1599 = vadd.f32 %v1593, %v1597
  %v1600 = vmul.f32 %v1510, %v815
  %1602 = vrot.lane.b32.xlu0 %v1600, 121
  %v1603 = vpop.permute.xlu0 %1602
  %v1605 = vadd.f32 %v1599, %v1603
  %v1606 = vmul.f32 %v1513, %v825
  %1608 = vrot.lane.b32.xlu0 %v1606, 121
  %v1609 = vpop.permute.xlu0 %1608
  %v1611 = vadd.f32 %v1605, %v1609
  %v1612 = vmul.f32 %v1516, %v835
  %1614 = vrot.lane.b32.xlu0 %v1612, 121
  %v1615 = vpop.permute.xlu0 %1614
  %v1617 = vadd.f32 %v1611, %v1615
  %v1618 = vmul.f32 %v1519, %v845
  %1620 = vrot.lane.b32.xlu0 %v1618, 121
  %v1621 = vpop.permute.xlu0 %1620
  %v1623 = vadd.f32 %v1617, %v1621
  %v1624 = vmul.f32 %v1510, %v855
  %1626 = vrot.lane.b32.xlu0 %v1624, 120
  %v1627 = vpop.permute.xlu0 %1626
  %v1629 = vadd.f32 %v1623, %v1627
  %v1630 = vmul.f32 %v1513, %v865
  %1632 = vrot.lane.b32.xlu0 %v1630, 120
  %v1633 = vpop.permute.xlu0 %1632
  %v1635 = vadd.f32 %v1629, %v1633
  %v1636 = vmul.f32 %v1516, %v875
  %1638 = vrot.lane.b32.xlu0 %v1636, 120
  %v1639 = vpop.permute.xlu0 %1638
  %v1641 = vadd.f32 %v1635, %v1639
  %v1642 = vmul.f32 %v1519, %v885
  %1644 = vrot.lane.b32.xlu0 %v1642, 120
  %v1645 = vpop.permute.xlu0 %1644
  %v1647 = vadd.f32 %v1641, %v1645
  %v1648 = vmul.f32 %v1510, %v895
  %1650 = vrot.lane.b32.xlu0 %v1648, 116
  %v1651 = vpop.permute.xlu0 %1650
  %v1653 = vadd.f32 %v1647, %v1651
  %v1654 = vmul.f32 %v1513, %v905
  %1656 = vrot.lane.b32.xlu0 %v1654, 116
  %v1657 = vpop.permute.xlu0 %1656
  %v1659 = vadd.f32 %v1653, %v1657
  %v1660 = vmul.f32 %v1516, %v915
  %1662 = vrot.lane.b32.xlu0 %v1660, 116
  %v1663 = vpop.permute.xlu0 %1662
  %v1665 = vadd.f32 %v1659, %v1663
  %v1666 = vmul.f32 %v1519, %v925
  %1668 = vrot.lane.b32.xlu0 %v1666, 116
  %v1669 = vpop.permute.xlu0 %1668
  %v1671 = vadd.f32 %v1665, %v1669
  %v1672 = vmul.f32 %v1510, %v935
  %1674 = vrot.lane.b32.xlu0 %v1672, 115
  %v1675 = vpop.permute.xlu0 %1674
  %v1677 = vadd.f32 %v1671, %v1675
  %v1678 = vmul.f32 %v1513, %v945
  %1680 = vrot.lane.b32.xlu0 %v1678, 115
  %v1681 = vpop.permute.xlu0 %1680
  %v1683 = vadd.f32 %v1677, %v1681
  %v1684 = vmul.f32 %v1516, %v955
  %1686 = vrot.lane.b32.xlu0 %v1684, 115
  %v1687 = vpop.permute.xlu0 %1686
  %v1689 = vadd.f32 %v1683, %v1687
  %v1690 = vmul.f32 %v1519, %v965
  %1692 = vrot.lane.b32.xlu0 %v1690, 115
  %v1693 = vpop.permute.xlu0 %1692
  %v1695 = vadd.f32 %v1689, %v1693
  %v1696 = vmul.f32 %v1510, %v975
  %1698 = vrot.lane.b32.xlu0 %v1696, 114
  %v1699 = vpop.permute.xlu0 %1698
  %v1701 = vadd.f32 %v1695, %v1699
  %v1702 = vmul.f32 %v1513, %v985
  %1704 = vrot.lane.b32.xlu0 %v1702, 114
  %v1705 = vpop.permute.xlu0 %1704
  %v1707 = vadd.f32 %v1701, %v1705
  %v1708 = vmul.f32 %v1516, %v995
  %1710 = vrot.lane.b32.xlu0 %v1708, 114
  %v1711 = vpop.permute.xlu0 %1710
  %v1713 = vadd.f32 %v1707, %v1711
  %v1714 = vmul.f32 %v1519, %v1005
  %1716 = vrot.lane.b32.xlu0 %v1714, 114
  %v1717 = vpop.permute.xlu0 %1716
  %v1719 = vadd.f32 %v1713, %v1717
  %v1720 = vmul.f32 %v1016, 0.75
  %v1721 = vsub.f32 %v1719, %v1720
  %vm1722 = vcmp.ge.f32.partialorder %v1721, 1.0
  %v1723 = vsel %vm1722, 1.0, 0.0
  %v1724 = vmul.f32 %v1723, 4.0
  %v1725 = vadd.f32 %v1720, %v1724
  %1727 = vrot.lane.b32.xlu0 %v1723, 122
  %v1728 = vpop.permute.xlu0 %1727
  %v1730 = vmax.f32 %v1723, %v1728
  %1732 = vrot.lane.b32.xlu0 %v1730, 127
  %v1733 = vpop.permute.xlu0 %1732
  %v1735 = vmax.f32 %v1730, %v1733
  %1737 = vrot.lane.b32.xlu0 %v1735, 127
  %v1738 = vpop.permute.xlu0 %1737
  %1740 = vrot.lane.b32.xlu0 %v1735, 118
  %v1741 = vpop.permute.xlu0 %1740
  %1743 = vrot.lane.b32.xlu0 %v1735, 117
  %v1744 = vpop.permute.xlu0 %1743
  %v1746 = vsel %vm220, %v1735, %v1738
  %v1747 = vsel %vm222, %v1746, %v1741
  %v1748 = vsel %vm224, %v1747, %v1744
  %v1749 = vmul.f32 %v1255, 0.9
  %v1750 = vmul.f32 %v1258, 10.0
  %v1751 = vadd.f32 %v1749, %v1750
  %v1753 = vrot.slane %v1751, 6
  %v1755 = vrot.slane %v1751, 4
  %v1757 = vrot.slane %v1751, 2
  %v1759 = vsel %vm1049, %v1751, %v1753
  %v1760 = vsel %vm1051, %v1759, %v1755
  %v1761 = vsel %vm1053, %v1760, %v1757
  %v1762 = vsel %vm1049, %v1757, %v1751
  %v1763 = vsel %vm1051, %v1762, %v1753
  %v1764 = vsel %vm1053, %v1763, %v1755
  %v1765 = vsel %vm1049, %v1755, %v1757
  %v1766 = vsel %vm1051, %v1765, %v1751
  %v1767 = vsel %vm1053, %v1766, %v1753
  %v1768 = vsel %vm1049, %v1753, %v1755
  %v1769 = vsel %vm1051, %v1768, %v1757
  %v1770 = vsel %vm1053, %v1769, %v1751
  %v1771 = vmul.f32 %v1761, %v308
  %v1772 = vadd.f32 %v1771, 0.0
  %v1773 = vmul.f32 %v1764, %v314
  %v1774 = vadd.f32 %v1772, %v1773
  %v1775 = vmul.f32 %v1767, %v320
  %v1776 = vadd.f32 %v1774, %v1775
  %v1777 = vmul.f32 %v1770, %v326
  %v1778 = vadd.f32 %v1776, %v1777
  %v1779 = vmul.f32 %v1761, %v332
  %1781 = vrot.lane.b32.xlu0 %v1779, 127
  %v1782 = vpop.permute.xlu0 %1781
  %v1784 = vadd.f32 %v1778, %v1782
  %v1785 = vmul.f32 %v1764, %v342
  %1787 = vrot.lane.b32.xlu0 %v1785, 127
  %v1788 = vpop.permute.xlu0 %1787
  %v1790 = vadd.f32 %v1784, %v1788
  %v1791 = vmul.f32 %v1767, %v352
  %1793 = vrot.lane.b32.xlu0 %v1791, 127
  %v1794 = vpop.permute.xlu0 %1793
  %v1796 = vadd.f32 %v1790, %v1794
  %v1797 = vmul.f32 %v1770, %v362
  %1799 = vrot.lane.b32.xlu0 %v1797, 127
  %v1800 = vpop.permute.xlu0 %1799
  %v1802 = vadd.f32 %v1796, %v1800
  %v1803 = vmul.f32 %v1761, %v372
  %1805 = vrot.lane.b32.xlu0 %v1803, 126
  %v1806 = vpop.permute.xlu0 %1805
  %v1808 = vadd.f32 %v1802, %v1806
  %v1809 = vmul.f32 %v1764, %v382
  %1811 = vrot.lane.b32.xlu0 %v1809, 126
  %v1812 = vpop.permute.xlu0 %1811
  %v1814 = vadd.f32 %v1808, %v1812
  %v1815 = vmul.f32 %v1767, %v392
  %1817 = vrot.lane.b32.xlu0 %v1815, 126
  %v1818 = vpop.permute.xlu0 %1817
  %v1820 = vadd.f32 %v1814, %v1818
  %v1821 = vmul.f32 %v1770, %v402
  %1823 = vrot.lane.b32.xlu0 %v1821, 126
  %v1824 = vpop.permute.xlu0 %1823
  %v1826 = vadd.f32 %v1820, %v1824
  %v1827 = vmul.f32 %v1761, %v412
  %1829 = vrot.lane.b32.xlu0 %v1827, 122
  %v1830 = vpop.permute.xlu0 %1829
  %v1832 = vadd.f32 %v1826, %v1830
  %v1833 = vmul.f32 %v1764, %v422
  %1835 = vrot.lane.b32.xlu0 %v1833, 122
  %v1836 = vpop.permute.xlu0 %1835
  %v1838 = vadd.f32 %v1832, %v1836
  %v1839 = vmul.f32 %v1767, %v432
  %1841 = vrot.lane.b32.xlu0 %v1839, 122
  %v1842 = vpop.permute.xlu0 %1841
  %v1844 = vadd.f32 %v1838, %v1842
  %v1845 = vmul.f32 %v1770, %v442
  %1847 = vrot.lane.b32.xlu0 %v1845, 122
  %v1848 = vpop.permute.xlu0 %1847
  %v1850 = vadd.f32 %v1844, %v1848
  %v1851 = vmul.f32 %v1761, %v452
  %1853 = vrot.lane.b32.xlu0 %v1851, 121
  %v1854 = vpop.permute.xlu0 %1853
  %v1856 = vadd.f32 %v1850, %v1854
  %v1857 = vmul.f32 %v1764, %v462
  %1859 = vrot.lane.b32.xlu0 %v1857, 121
  %v1860 = vpop.permute.xlu0 %1859
  %v1862 = vadd.f32 %v1856, %v1860
  %v1863 = vmul.f32 %v1767, %v472
  %1865 = vrot.lane.b32.xlu0 %v1863, 121
  %v1866 = vpop.permute.xlu0 %1865
  %v1868 = vadd.f32 %v1862, %v1866
  %v1869 = vmul.f32 %v1770, %v482
  %1871 = vrot.lane.b32.xlu0 %v1869, 121
  %v1872 = vpop.permute.xlu0 %1871
  %v1874 = vadd.f32 %v1868, %v1872
  %v1875 = vmul.f32 %v1761, %v492
  %1877 = vrot.lane.b32.xlu0 %v1875, 120
  %v1878 = vpop.permute.xlu0 %1877
  %v1880 = vadd.f32 %v1874, %v1878
  %v1881 = vmul.f32 %v1764, %v502
  %1883 = vrot.lane.b32.xlu0 %v1881, 120
  %v1884 = vpop.permute.xlu0 %1883
  %v1886 = vadd.f32 %v1880, %v1884
  %v1887 = vmul.f32 %v1767, %v512
  %1889 = vrot.lane.b32.xlu0 %v1887, 120
  %v1890 = vpop.permute.xlu0 %1889
  %v1892 = vadd.f32 %v1886, %v1890
  %v1893 = vmul.f32 %v1770, %v522
  %1895 = vrot.lane.b32.xlu0 %v1893, 120
  %v1896 = vpop.permute.xlu0 %1895
  %v1898 = vadd.f32 %v1892, %v1896
  %v1899 = vmul.f32 %v1761, %v532
  %1901 = vrot.lane.b32.xlu0 %v1899, 116
  %v1902 = vpop.permute.xlu0 %1901
  %v1904 = vadd.f32 %v1898, %v1902
  %v1905 = vmul.f32 %v1764, %v542
  %1907 = vrot.lane.b32.xlu0 %v1905, 116
  %v1908 = vpop.permute.xlu0 %1907
  %v1910 = vadd.f32 %v1904, %v1908
  %v1911 = vmul.f32 %v1767, %v552
  %1913 = vrot.lane.b32.xlu0 %v1911, 116
  %v1914 = vpop.permute.xlu0 %1913
  %v1916 = vadd.f32 %v1910, %v1914
  %v1917 = vmul.f32 %v1770, %v562
  %1919 = vrot.lane.b32.xlu0 %v1917, 116
  %v1920 = vpop.permute.xlu0 %1919
  %v1922 = vadd.f32 %v1916, %v1920
  %v1923 = vmul.f32 %v1761, %v572
  %1925 = vrot.lane.b32.xlu0 %v1923, 115
  %v1926 = vpop.permute.xlu0 %1925
  %v1928 = vadd.f32 %v1922, %v1926
  %v1929 = vmul.f32 %v1764, %v582
  %1931 = vrot.lane.b32.xlu0 %v1929, 115
  %v1932 = vpop.permute.xlu0 %1931
  %v1934 = vadd.f32 %v1928, %v1932
  %v1935 = vmul.f32 %v1767, %v592
  %1937 = vrot.lane.b32.xlu0 %v1935, 115
  %v1938 = vpop.permute.xlu0 %1937
  %v1940 = vadd.f32 %v1934, %v1938
  %v1941 = vmul.f32 %v1770, %v602
  %1943 = vrot.lane.b32.xlu0 %v1941, 115
  %v1944 = vpop.permute.xlu0 %1943
  %v1946 = vadd.f32 %v1940, %v1944
  %v1947 = vmul.f32 %v1761, %v612
  %1949 = vrot.lane.b32.xlu0 %v1947, 114
  %v1950 = vpop.permute.xlu0 %1949
  %v1952 = vadd.f32 %v1946, %v1950
  %v1953 = vmul.f32 %v1764, %v622
  %1955 = vrot.lane.b32.xlu0 %v1953, 114
  %v1956 = vpop.permute.xlu0 %1955
  %v1958 = vadd.f32 %v1952, %v1956
  %v1959 = vmul.f32 %v1767, %v632
  %1961 = vrot.lane.b32.xlu0 %v1959, 114
  %v1962 = vpop.permute.xlu0 %1961
  %v1964 = vadd.f32 %v1958, %v1962
  %v1965 = vmul.f32 %v1770, %v642
  %1967 = vrot.lane.b32.xlu0 %v1965, 114
  %v1968 = vpop.permute.xlu0 %1967
  %v1970 = vadd.f32 %v1964, %v1968
  %v1971 = vmul.f32 %v1483, 0.75
  %v1972 = vsub.f32 %v1970, %v1971
  %vm1973 = vcmp.ge.f32.partialorder %v1972, 1.0
  %v1974 = vsel %vm1973, 1.0, 0.0
  %1976 = vrot.lane.b32.xlu0 %v1974, 7
  %v1977 = vpop.permute.xlu0 %1976
  %v1979 = vsel %vm287, 0.0, %v1977
  %v1980 = vsel %vm289, %v1979, 0.0
  %v1981 = vsel %vm291, %v1980, %v1977
  %v1982 = vsel %vm293, %v1981, 0.0
  %v1983 = vsel %vm295, %v1982, %v1977
  %v1984 = vsel %vm297, %v1983, 0.0
  %v1985 = vsel %vm299, %v1984, %v1977
  %v1986 = vsel %vm301, %v1985, 0.0
  %v1987 = vmul.f32 %v1497, 0.9
  %v1988 = vmul.f32 %v1500, 10.0
  %v1989 = vadd.f32 %v1987, %v1988
  %v1990 = vmul.f32 %v1500, 0.8
  %v1991 = vmul.f32 %v1986, 5.0
  %v1992 = vadd.f32 %v1990, %v1991
  %v1994 = vrot.slane %v1989, 6
  %v1996 = vrot.slane %v1989, 4
  %v1998 = vrot.slane %v1989, 2
  %v2000 = vsel %vm1049, %v1989, %v1994
  %v2001 = vsel %vm1051, %v2000, %v1996
  %v2002 = vsel %vm1053, %v2001, %v1998
  %v2003 = vsel %vm1049, %v1998, %v1989
  %v2004 = vsel %vm1051, %v2003, %v1994
  %v2005 = vsel %vm1053, %v2004, %v1996
  %v2006 = vsel %vm1049, %v1996, %v1998
  %v2007 = vsel %vm1051, %v2006, %v1989
  %v2008 = vsel %vm1053, %v2007, %v1994
  %v2009 = vsel %vm1049, %v1994, %v1996
  %v2010 = vsel %vm1051, %v2009, %v1998
  %v2011 = vsel %vm1053, %v2010, %v1989
  %v2012 = vmul.f32 %v2002, %v671
  %v2013 = vadd.f32 %v2012, 0.0
  %v2014 = vmul.f32 %v2005, %v677
  %v2015 = vadd.f32 %v2013, %v2014
  %v2016 = vmul.f32 %v2008, %v683
  %v2017 = vadd.f32 %v2015, %v2016
  %v2018 = vmul.f32 %v2011, %v689
  %v2019 = vadd.f32 %v2017, %v2018
  %v2020 = vmul.f32 %v2002, %v695
  %2022 = vrot.lane.b32.xlu0 %v2020, 127
  %v2023 = vpop.permute.xlu0 %2022
  %v2025 = vadd.f32 %v2019, %v2023
  %v2026 = vmul.f32 %v2005, %v705
  %2028 = vrot.lane.b32.xlu0 %v2026, 127
  %v2029 = vpop.permute.xlu0 %2028
  %v2031 = vadd.f32 %v2025, %v2029
  %v2032 = vmul.f32 %v2008, %v715
  %2034 = vrot.lane.b32.xlu0 %v2032, 127
  %v2035 = vpop.permute.xlu0 %2034
  %v2037 = vadd.f32 %v2031, %v2035
  %v2038 = vmul.f32 %v2011, %v725
  %2040 = vrot.lane.b32.xlu0 %v2038, 127
  %v2041 = vpop.permute.xlu0 %2040
  %v2043 = vadd.f32 %v2037, %v2041
  %v2044 = vmul.f32 %v2002, %v735
  %2046 = vrot.lane.b32.xlu0 %v2044, 126
  %v2047 = vpop.permute.xlu0 %2046
  %v2049 = vadd.f32 %v2043, %v2047
  %v2050 = vmul.f32 %v2005, %v745
  %2052 = vrot.lane.b32.xlu0 %v2050, 126
  %v2053 = vpop.permute.xlu0 %2052
  %v2055 = vadd.f32 %v2049, %v2053
  %v2056 = vmul.f32 %v2008, %v755
  %2058 = vrot.lane.b32.xlu0 %v2056, 126
  %v2059 = vpop.permute.xlu0 %2058
  %v2061 = vadd.f32 %v2055, %v2059
  %v2062 = vmul.f32 %v2011, %v765
  %2064 = vrot.lane.b32.xlu0 %v2062, 126
  %v2065 = vpop.permute.xlu0 %2064
  %v2067 = vadd.f32 %v2061, %v2065
  %v2068 = vmul.f32 %v2002, %v775
  %2070 = vrot.lane.b32.xlu0 %v2068, 122
  %v2071 = vpop.permute.xlu0 %2070
  %v2073 = vadd.f32 %v2067, %v2071
  %v2074 = vmul.f32 %v2005, %v785
  %2076 = vrot.lane.b32.xlu0 %v2074, 122
  %v2077 = vpop.permute.xlu0 %2076
  %v2079 = vadd.f32 %v2073, %v2077
  %v2080 = vmul.f32 %v2008, %v795
  %2082 = vrot.lane.b32.xlu0 %v2080, 122
  %v2083 = vpop.permute.xlu0 %2082
  %v2085 = vadd.f32 %v2079, %v2083
  %v2086 = vmul.f32 %v2011, %v805
  %2088 = vrot.lane.b32.xlu0 %v2086, 122
  %v2089 = vpop.permute.xlu0 %2088
  %v2091 = vadd.f32 %v2085, %v2089
  %v2092 = vmul.f32 %v2002, %v815
  %2094 = vrot.lane.b32.xlu0 %v2092, 121
  %v2095 = vpop.permute.xlu0 %2094
  %v2097 = vadd.f32 %v2091, %v2095
  %v2098 = vmul.f32 %v2005, %v825
  %2100 = vrot.lane.b32.xlu0 %v2098, 121
  %v2101 = vpop.permute.xlu0 %2100
  %v2103 = vadd.f32 %v2097, %v2101
  %v2104 = vmul.f32 %v2008, %v835
  %2106 = vrot.lane.b32.xlu0 %v2104, 121
  %v2107 = vpop.permute.xlu0 %2106
  %v2109 = vadd.f32 %v2103, %v2107
  %v2110 = vmul.f32 %v2011, %v845
  %2112 = vrot.lane.b32.xlu0 %v2110, 121
  %v2113 = vpop.permute.xlu0 %2112
  %v2115 = vadd.f32 %v2109, %v2113
  %v2116 = vmul.f32 %v2002, %v855
  %2118 = vrot.lane.b32.xlu0 %v2116, 120
  %v2119 = vpop.permute.xlu0 %2118
  %v2121 = vadd.f32 %v2115, %v2119
  %v2122 = vmul.f32 %v2005, %v865
  %2124 = vrot.lane.b32.xlu0 %v2122, 120
  %v2125 = vpop.permute.xlu0 %2124
  %v2127 = vadd.f32 %v2121, %v2125
  %v2128 = vmul.f32 %v2008, %v875
  %2130 = vrot.lane.b32.xlu0 %v2128, 120
  %v2131 = vpop.permute.xlu0 %2130
  %v2133 = vadd.f32 %v2127, %v2131
  %v2134 = vmul.f32 %v2011, %v885
  %2136 = vrot.lane.b32.xlu0 %v2134, 120
  %v2137 = vpop.permute.xlu0 %2136
  %v2139 = vadd.f32 %v2133, %v2137
  %v2140 = vmul.f32 %v2002, %v895
  %2142 = vrot.lane.b32.xlu0 %v2140, 116
  %v2143 = vpop.permute.xlu0 %2142
  %v2145 = vadd.f32 %v2139, %v2143
  %v2146 = vmul.f32 %v2005, %v905
  %2148 = vrot.lane.b32.xlu0 %v2146, 116
  %v2149 = vpop.permute.xlu0 %2148
  %v2151 = vadd.f32 %v2145, %v2149
  %v2152 = vmul.f32 %v2008, %v915
  %2154 = vrot.lane.b32.xlu0 %v2152, 116
  %v2155 = vpop.permute.xlu0 %2154
  %v2157 = vadd.f32 %v2151, %v2155
  %v2158 = vmul.f32 %v2011, %v925
  %2160 = vrot.lane.b32.xlu0 %v2158, 116
  %v2161 = vpop.permute.xlu0 %2160
  %v2163 = vadd.f32 %v2157, %v2161
  %v2164 = vmul.f32 %v2002, %v935
  %2166 = vrot.lane.b32.xlu0 %v2164, 115
  %v2167 = vpop.permute.xlu0 %2166
  %v2169 = vadd.f32 %v2163, %v2167
  %v2170 = vmul.f32 %v2005, %v945
  %2172 = vrot.lane.b32.xlu0 %v2170, 115
  %v2173 = vpop.permute.xlu0 %2172
  %v2175 = vadd.f32 %v2169, %v2173
  %v2176 = vmul.f32 %v2008, %v955
  %2178 = vrot.lane.b32.xlu0 %v2176, 115
  %v2179 = vpop.permute.xlu0 %2178
  %v2181 = vadd.f32 %v2175, %v2179
  %v2182 = vmul.f32 %v2011, %v965
  %2184 = vrot.lane.b32.xlu0 %v2182, 115
  %v2185 = vpop.permute.xlu0 %2184
  %v2187 = vadd.f32 %v2181, %v2185
  %v2188 = vmul.f32 %v2002, %v975
  %2190 = vrot.lane.b32.xlu0 %v2188, 114
  %v2191 = vpop.permute.xlu0 %2190
  %v2193 = vadd.f32 %v2187, %v2191
  %v2194 = vmul.f32 %v2005, %v985
  %2196 = vrot.lane.b32.xlu0 %v2194, 114
  %v2197 = vpop.permute.xlu0 %2196
  %v2199 = vadd.f32 %v2193, %v2197
  %v2200 = vmul.f32 %v2008, %v995
  %2202 = vrot.lane.b32.xlu0 %v2200, 114
  %v2203 = vpop.permute.xlu0 %2202
  %v2205 = vadd.f32 %v2199, %v2203
  %v2206 = vmul.f32 %v2011, %v1005
  %2208 = vrot.lane.b32.xlu0 %v2206, 114
  %v2209 = vpop.permute.xlu0 %2208
  %v2211 = vadd.f32 %v2205, %v2209
  %v2212 = vmul.f32 %v1725, 0.75
  %v2213 = vsub.f32 %v2211, %v2212
  %vm2214 = vcmp.ge.f32.partialorder %v2213, 1.0
  %v2215 = vsel %vm2214, 1.0, 0.0
  %v2216 = vmul.f32 %v2215, 4.0
  %v2217 = vadd.f32 %v2212, %v2216
  %2219 = vrot.lane.b32.xlu0 %v2215, 122
  %v2220 = vpop.permute.xlu0 %2219
  %v2222 = vmax.f32 %v2215, %v2220
  %2224 = vrot.lane.b32.xlu0 %v2222, 127
  %v2225 = vpop.permute.xlu0 %2224
  %v2227 = vmax.f32 %v2222, %v2225
  %2229 = vrot.lane.b32.xlu0 %v2227, 127
  %v2230 = vpop.permute.xlu0 %2229
  %2232 = vrot.lane.b32.xlu0 %v2227, 118
  %v2233 = vpop.permute.xlu0 %2232
  %2235 = vrot.lane.b32.xlu0 %v2227, 117
  %v2236 = vpop.permute.xlu0 %2235
  %v2238 = vsel %vm220, %v2227, %v2230
  %v2239 = vsel %vm222, %v2238, %v2233
  %v2240 = vsel %vm224, %v2239, %v2236
  %v2241 = vmul.f32 %v1989, 0.9
  %v2242 = vmul.f32 %v1992, 10.0
  %v2243 = vadd.f32 %v2241, %v2242
  %v2245 = vrot.slane %v2243, 6
  %v2247 = vrot.slane %v2243, 4
  %v2249 = vrot.slane %v2243, 2
  %v2251 = vsel %vm1049, %v2243, %v2245
  %v2252 = vsel %vm1051, %v2251, %v2247
  %v2253 = vsel %vm1053, %v2252, %v2249
  %v2254 = vsel %vm1049, %v2249, %v2243
  %v2255 = vsel %vm1051, %v2254, %v2245
  %v2256 = vsel %vm1053, %v2255, %v2247
  %v2257 = vsel %vm1049, %v2247, %v2249
  %v2258 = vsel %vm1051, %v2257, %v2243
  %v2259 = vsel %vm1053, %v2258, %v2245
  %v2260 = vsel %vm1049, %v2245, %v2247
  %v2261 = vsel %vm1051, %v2260, %v2249
  %v2262 = vsel %vm1053, %v2261, %v2243
  %v2263 = vmul.f32 %v2253, %v671
  %v2264 = vadd.f32 %v2263, 0.0
  %v2265 = vmul.f32 %v2256, %v677
  %v2266 = vadd.f32 %v2264, %v2265
  %v2267 = vmul.f32 %v2259, %v683
  %v2268 = vadd.f32 %v2266, %v2267
  %v2269 = vmul.f32 %v2262, %v689
  %v2270 = vadd.f32 %v2268, %v2269
  %v2271 = vmul.f32 %v2253, %v695
  %2273 = vrot.lane.b32.xlu0 %v2271, 127
  %v2274 = vpop.permute.xlu0 %2273
  %v2276 = vadd.f32 %v2270, %v2274
  %v2277 = vmul.f32 %v2256, %v705
  %2279 = vrot.lane.b32.xlu0 %v2277, 127
  %v2280 = vpop.permute.xlu0 %2279
  %v2282 = vadd.f32 %v2276, %v2280
  %v2283 = vmul.f32 %v2259, %v715
  %2285 = vrot.lane.b32.xlu0 %v2283, 127
  %v2286 = vpop.permute.xlu0 %2285
  %v2288 = vadd.f32 %v2282, %v2286
  %v2289 = vmul.f32 %v2262, %v725
  %2291 = vrot.lane.b32.xlu0 %v2289, 127
  %v2292 = vpop.permute.xlu0 %2291
  %v2294 = vadd.f32 %v2288, %v2292
  %v2295 = vmul.f32 %v2253, %v735
  %2297 = vrot.lane.b32.xlu0 %v2295, 126
  %v2298 = vpop.permute.xlu0 %2297
  %v2300 = vadd.f32 %v2294, %v2298
  %v2301 = vmul.f32 %v2256, %v745
  %2303 = vrot.lane.b32.xlu0 %v2301, 126
  %v2304 = vpop.permute.xlu0 %2303
  %v2306 = vadd.f32 %v2300, %v2304
  %v2307 = vmul.f32 %v2259, %v755
  %2309 = vrot.lane.b32.xlu0 %v2307, 126
  %v2310 = vpop.permute.xlu0 %2309
  %v2312 = vadd.f32 %v2306, %v2310
  %v2313 = vmul.f32 %v2262, %v765
  %2315 = vrot.lane.b32.xlu0 %v2313, 126
  %v2316 = vpop.permute.xlu0 %2315
  %v2318 = vadd.f32 %v2312, %v2316
  %v2319 = vmul.f32 %v2253, %v775
  %2321 = vrot.lane.b32.xlu0 %v2319, 122
  %v2322 = vpop.permute.xlu0 %2321
  %v2324 = vadd.f32 %v2318, %v2322
  %v2325 = vmul.f32 %v2256, %v785
  %2327 = vrot.lane.b32.xlu0 %v2325, 122
  %v2328 = vpop.permute.xlu0 %2327
  %v2330 = vadd.f32 %v2324, %v2328
  %v2331 = vmul.f32 %v2259, %v795
  %2333 = vrot.lane.b32.xlu0 %v2331, 122
  %v2334 = vpop.permute.xlu0 %2333
  %v2336 = vadd.f32 %v2330, %v2334
  %v2337 = vmul.f32 %v2262, %v805
  %2339 = vrot.lane.b32.xlu0 %v2337, 122
  %v2340 = vpop.permute.xlu0 %2339
  %v2342 = vadd.f32 %v2336, %v2340
  %v2343 = vmul.f32 %v2253, %v815
  %2345 = vrot.lane.b32.xlu0 %v2343, 121
  %v2346 = vpop.permute.xlu0 %2345
  %v2348 = vadd.f32 %v2342, %v2346
  %v2349 = vmul.f32 %v2256, %v825
  %2351 = vrot.lane.b32.xlu0 %v2349, 121
  %v2352 = vpop.permute.xlu0 %2351
  %v2354 = vadd.f32 %v2348, %v2352
  %v2355 = vmul.f32 %v2259, %v835
  %2357 = vrot.lane.b32.xlu0 %v2355, 121
  %v2358 = vpop.permute.xlu0 %2357
  %v2360 = vadd.f32 %v2354, %v2358
  %v2361 = vmul.f32 %v2262, %v845
  %2363 = vrot.lane.b32.xlu0 %v2361, 121
  %v2364 = vpop.permute.xlu0 %2363
  %v2366 = vadd.f32 %v2360, %v2364
  %v2367 = vmul.f32 %v2253, %v855
  %2369 = vrot.lane.b32.xlu0 %v2367, 120
  %v2370 = vpop.permute.xlu0 %2369
  %v2372 = vadd.f32 %v2366, %v2370
  %v2373 = vmul.f32 %v2256, %v865
  %2375 = vrot.lane.b32.xlu0 %v2373, 120
  %v2376 = vpop.permute.xlu0 %2375
  %v2378 = vadd.f32 %v2372, %v2376
  %v2379 = vmul.f32 %v2259, %v875
  %2381 = vrot.lane.b32.xlu0 %v2379, 120
  %v2382 = vpop.permute.xlu0 %2381
  %v2384 = vadd.f32 %v2378, %v2382
  %v2385 = vmul.f32 %v2262, %v885
  %2387 = vrot.lane.b32.xlu0 %v2385, 120
  %v2388 = vpop.permute.xlu0 %2387
  %v2390 = vadd.f32 %v2384, %v2388
  %v2391 = vmul.f32 %v2253, %v895
  %2393 = vrot.lane.b32.xlu0 %v2391, 116
  %v2394 = vpop.permute.xlu0 %2393
  %v2396 = vadd.f32 %v2390, %v2394
  %v2397 = vmul.f32 %v2256, %v905
  %2399 = vrot.lane.b32.xlu0 %v2397, 116
  %v2400 = vpop.permute.xlu0 %2399
  %v2402 = vadd.f32 %v2396, %v2400
  %v2403 = vmul.f32 %v2259, %v915
  %2405 = vrot.lane.b32.xlu0 %v2403, 116
  %v2406 = vpop.permute.xlu0 %2405
  %v2408 = vadd.f32 %v2402, %v2406
  %v2409 = vmul.f32 %v2262, %v925
  %2411 = vrot.lane.b32.xlu0 %v2409, 116
  %v2412 = vpop.permute.xlu0 %2411
  %v2414 = vadd.f32 %v2408, %v2412
  %v2415 = vmul.f32 %v2253, %v935
  %2417 = vrot.lane.b32.xlu0 %v2415, 115
  %v2418 = vpop.permute.xlu0 %2417
  %v2420 = vadd.f32 %v2414, %v2418
  %v2421 = vmul.f32 %v2256, %v945
  %2423 = vrot.lane.b32.xlu0 %v2421, 115
  %v2424 = vpop.permute.xlu0 %2423
  %v2426 = vadd.f32 %v2420, %v2424
  %v2427 = vmul.f32 %v2259, %v955
  %2429 = vrot.lane.b32.xlu0 %v2427, 115
  %v2430 = vpop.permute.xlu0 %2429
  %v2432 = vadd.f32 %v2426, %v2430
  %v2433 = vmul.f32 %v2262, %v965
  %2435 = vrot.lane.b32.xlu0 %v2433, 115
  %v2436 = vpop.permute.xlu0 %2435
  %v2438 = vadd.f32 %v2432, %v2436
  %v2439 = vmul.f32 %v2253, %v975
  %2441 = vrot.lane.b32.xlu0 %v2439, 114
  %v2442 = vpop.permute.xlu0 %2441
  %v2444 = vadd.f32 %v2438, %v2442
  %v2445 = vmul.f32 %v2256, %v985
  %2447 = vrot.lane.b32.xlu0 %v2445, 114
  %v2448 = vpop.permute.xlu0 %2447
  %v2450 = vadd.f32 %v2444, %v2448
  %v2451 = vmul.f32 %v2259, %v995
  %2453 = vrot.lane.b32.xlu0 %v2451, 114
  %v2454 = vpop.permute.xlu0 %2453
  %v2456 = vadd.f32 %v2450, %v2454
  %v2457 = vmul.f32 %v2262, %v1005
  %2459 = vrot.lane.b32.xlu0 %v2457, 114
  %v2460 = vpop.permute.xlu0 %2459
  %v2462 = vadd.f32 %v2456, %v2460
  %v2463 = vmul.f32 %v2217, 0.75
  %v2464 = vsub.f32 %v2462, %v2463
  %vm2465 = vcmp.ge.f32.partialorder %v2464, 1.0
  %v2466 = vsel %vm2465, 1.0, 0.0
  %2468 = vrot.lane.b32.xlu0 %v2466, 122
  %v2469 = vpop.permute.xlu0 %2468
  %v2471 = vmax.f32 %v2466, %v2469
  %2473 = vrot.lane.b32.xlu0 %v2471, 127
  %v2474 = vpop.permute.xlu0 %2473
  %v2476 = vmax.f32 %v2471, %v2474
  %2478 = vrot.lane.b32.xlu0 %v2476, 127
  %v2479 = vpop.permute.xlu0 %2478
  %2481 = vrot.lane.b32.xlu0 %v2476, 118
  %v2482 = vpop.permute.xlu0 %2481
  %2484 = vrot.lane.b32.xlu0 %v2476, 117
  %v2485 = vpop.permute.xlu0 %2484
  %v2487 = vsel %vm220, %v2476, %v2479
  %v2488 = vsel %vm222, %v2487, %v2482
  %v2489 = vsel %vm224, %v2488, %v2485
  %2491 = vrot.lane.b32.xlu0 %v1748, 4
  %v2492 = vpop.permute.xlu0 %2491
  %2495 = vrot.lane.b32.xlu0 %v2240, 8
  %v2496 = vpop.permute.xlu0 %2495
  %2499 = vrot.lane.b32.xlu0 %v2489, 12
  %v2500 = vpop.permute.xlu0 %2499
  %vm2502 = vcmask 31744
  %v2503 = vsel %vm2502, %v1039, %v2492
  %vm2504 = vcmask 64512
  %v2505 = vsel %vm2504, %v2503, %v2496
  %vm2506 = vcmask 97280
  %v2507 = vsel %vm2506, %v2505, %v2500
  %vm2508 = vcmask 130048
  %2509 = vst.msk [vmem:[%s4] sm:$0xff] %vm2508, %v2507
  // Predicated region
  $region18: #{backbone_forward.1} parent=0 // pred_check
    _
  $region19: #{backbone_forward.1} parent=0 // pred_check_branch
    %2511 = sbr.rel (0) target = $region21
  $region20: #{backbone_forward.1} parent=0 // pred_region
    _
  $region21: #{backbone_forward.1} parent=0 // pred_fallthru
    _
  // Predicated region
  $region22: #{backbone_forward.1} parent=0 // pred_check
    _
  $region23: #{backbone_forward.1} parent=0 // pred_check_branch
    %2513 = sbr.rel (0) target = $region25
  $region24: #{backbone_forward.1} parent=0 // pred_region
    _
  $region25: #{backbone_forward.1} parent=0 // pred_fallthru
    _

</llo_original>
